<compile_context>
chip_gen: v7x
topology: tpu7x:2x2x1
jax: 0.10.0
libtpu: 0.0.40
codegen_flags: <defaults>
</compile_context>

<pallas_src>
import jax
import jax.numpy as jnp
import numpy as np
from jax.experimental import pallas as pl
from jax.experimental.pallas import tpu as pltpu

VOCAB = 2048        # stands in for 30000
EMB = 128           # stands in for 512 (embedding dim == LSTM input == hidden)
HIDDEN = 128
NUM_LAYERS = 2
SEQ = 8
BATCH = 8


def _round_up(x, m):
    return (x + m - 1) // m * m


# ------------------------- fused multi-layer LSTM kernel -------------------------

def _lstm_stack_kernel(x_ref, wih_ref, whh_ref, b_ref,
                       y_ref, hn_ref, cn_ref, gates_scr):
    """All layers + all time steps in one kernel invocation.

    x_ref:    (T*B, D)   bf16 embedded inputs, pre-flattened
    wih_ref:  (L, D, 4H) bf16 W_ih^T stacked over layers, gate order (i,f,o,g)
    whh_ref:  (L, H, 4H) bf16 W_hh^T stacked over layers, gate order (i,f,o,g)
    b_ref:    (L, 1, 4H) f32  b_ih + b_hh, gate order (i,f,o,g)
    y_ref:    (T, B, H)  f32  last-layer hidden sequence (doubles as the
                              inter-layer activation buffer -> stays in VMEM)
    hn_ref:   (L, B, H)  f32  final hidden state per layer
    cn_ref:   (L, B, H)  f32  final cell state per layer
    gates_scr:(T, B, 4H) f32  scratch for the hoisted input projection
    """
    T, B, H = y_ref.shape
    L, _, G = wih_ref.shape

    x2d = x_ref[...]                              # (T*B, D) bf16, layer-0 input

    for l in range(L):                            # static Python loop over layers
        wih_l = wih_ref[l]                        # (D, 4H) bf16, loaded once per layer
        whh_l = whh_ref[l]                        # (H, 4H) bf16, loaded once per layer

        # ---- (1) input projection hoisted off the time-dependency chain:
        #          (T*B, D) @ (D, 4H) bf16 MXU matmul, f32 acc, bias added once.
        gates_scr[...] = (jnp.dot(x2d, wih_l, preferred_element_type=jnp.float32)
                          + b_ref[l]).reshape(T, B, G)

        # ---- (2) serial recurrence: only h_prev @ W_hh^T + elementwise gates.
        def step(t, carry, whh_l=whh_l):
            h_prev, c_prev = carry
            g = gates_scr[t] + jnp.dot(h_prev.astype(jnp.bfloat16), whh_l,
                                       preferred_element_type=jnp.float32)
            # gate order (i, f, o, g): one sigmoid over (B, 3H), one tanh over (B, H)
            sig = jax.nn.sigmoid(g[:, :3 * H])
            i_g = sig[:, 0 * H:1 * H]
            f_g = sig[:, 1 * H:2 * H]
            o_g = sig[:, 2 * H:3 * H]
            g_g = jnp.tanh(g[:, 3 * H:])
            c_new = f_g * c_prev + i_g * g_g
            h_new = o_g * jnp.tanh(c_new)
            y_ref[t] = h_new                      # VMEM write; inter-layer buffer
            return h_new, c_new

        h0 = jnp.zeros((B, H), jnp.float32)
        c0 = jnp.zeros((B, H), jnp.float32)
        # TODO(synk): partial unroll (unroll=4/8) for realistic sequence lengths.
        h_n, c_n = jax.lax.fori_loop(0, T, step, (h0, c0), unroll=True)

        hn_ref[l] = h_n
        cn_ref[l] = c_n

        # next layer consumes this layer's outputs straight from VMEM (cast once)
        x2d = y_ref[...].reshape(T * B, H).astype(jnp.bfloat16)


def lstm_stack(x2d_bf16, w_ih_t, w_hh_t, bias, *, seq_len, batch):
    """Run the whole NUM_LAYERS LSTM over the full sequence in one pallas_call."""
    TB, D = x2d_bf16.shape
    L, H, G = w_hh_t.shape
    T, B = seq_len, batch
    return pl.pallas_call(
        _lstm_stack_kernel,
        out_shape=(jax.ShapeDtypeStruct((T, B, H), jnp.float32),   # y (last layer seq)
                   jax.ShapeDtypeStruct((L, B, H), jnp.float32),   # h_n
                   jax.ShapeDtypeStruct((L, B, H), jnp.float32)),  # c_n
        grid=(1,),
        in_specs=[
            pl.BlockSpec((TB, D), lambda i: (0, 0)),
            pl.BlockSpec((L, D, G), lambda i: (0, 0, 0)),
            pl.BlockSpec((L, H, G), lambda i: (0, 0, 0)),
            pl.BlockSpec((L, 1, G), lambda i: (0, 0, 0)),
        ],
        out_specs=(
            pl.BlockSpec((T, B, H), lambda i: (0, 0, 0)),
            pl.BlockSpec((L, B, H), lambda i: (0, 0, 0)),
            pl.BlockSpec((L, B, H), lambda i: (0, 0, 0)),
        ),
        scratch_shapes=[pltpu.VMEM((T, B, G), jnp.float32)],
        compiler_params=pltpu.CompilerParams(
            dimension_semantics=("arbitrary",),
            vmem_limit_bytes=32 * 1024 * 1024),
    )(x2d_bf16, w_ih_t, w_hh_t, bias)


# ------------------------- logits kernel (hidden @ emb^T, pre-transposed weight) -------------------------

def _logits_kernel(x_ref, w_ref, o_ref):
    # x_ref: (tm, H) bf16, w_ref: (H, tv) bf16, o_ref: (tm, tv) f32.
    o_ref[...] = jnp.dot(x_ref[...], w_ref[...],
                         preferred_element_type=jnp.float32)


def project_to_vocab(x2d_bf16, emb_t_bf16, *, tm=256, tv=1024):
    """(M, H) bf16 x (H, V) bf16 -> (M, V) f32, vocab-outer grid so each
    embedding tile is DMA'd once; non-multiple M/V handled by padding."""
    M, H = x2d_bf16.shape
    _, V = emb_t_bf16.shape
    tm = min(tm, _round_up(M, 8))
    tv = min(tv, _round_up(V, 128))
    Mp = _round_up(M, tm)
    Vp = _round_up(V, tv)
    if Mp != M:
        x2d_bf16 = jnp.pad(x2d_bf16, ((0, Mp - M), (0, 0)))
    if Vp != V:
        emb_t_bf16 = jnp.pad(emb_t_bf16, ((0, 0), (0, Vp - V)))
    out = pl.pallas_call(
        _logits_kernel,
        out_shape=jax.ShapeDtypeStruct((Mp, Vp), jnp.float32),
        grid=(Vp // tv, Mp // tm),          # vocab outer -> emb tile reused across M tiles
        in_specs=[pl.BlockSpec((tm, H), lambda jv, im: (im, 0)),
                  pl.BlockSpec((H, tv), lambda jv, im: (0, jv))],
        out_specs=pl.BlockSpec((tm, tv), lambda jv, im: (im, jv)),
        compiler_params=pltpu.CompilerParams(
            dimension_semantics=("parallel", "parallel")),
    )(x2d_bf16, emb_t_bf16)
    if Mp != M or Vp != V:
        out = out[:M, :V]
    return out


# ------------------------- model glue -------------------------

def init_params(key):
    assert EMB == HIDDEN, "stacked W_ih layout assumes layer-0 input dim == hidden"
    H = HIDDEN
    k_emb, *k_layers = jax.random.split(key, NUM_LAYERS + 1)
    # Weights are snapped to bf16-representable values so the bf16 kernel and the
    # f32 reference share identical parameter values (only activation-cast error remains).
    emb = jax.random.normal(k_emb, (VOCAB, EMB), jnp.float32)
    emb = emb.astype(jnp.bfloat16).astype(jnp.float32)
    bound = 1.0 / np.sqrt(H)      # nn.LSTM default: U(-1/sqrt(H), 1/sqrt(H))
    # PyTorch gate order (i, f, g, o) -> kernel gate order (i, f, o, g)
    perm = np.concatenate([np.arange(0, H), np.arange(H, 2 * H),
                           np.arange(3 * H, 4 * H), np.arange(2 * H, 3 * H)])
    k_w_ih, k_w_hh, k_bias = [], [], []
    r_w_ih, r_w_hh, r_bias = [], [], []
    for l in range(NUM_LAYERS):
        k1, k2, k3, k4 = jax.random.split(k_layers[l], 4)
        in_dim = EMB if l == 0 else HIDDEN
        w_ih = jax.random.uniform(k1, (4 * H, in_dim), jnp.float32, -bound, bound)
        w_hh = jax.random.uniform(k2, (4 * H, H), jnp.float32, -bound, bound)
        w_ih = w_ih.astype(jnp.bfloat16).astype(jnp.float32)
        w_hh = w_hh.astype(jnp.bfloat16).astype(jnp.float32)
        b = (jax.random.uniform(k3, (4 * H,), jnp.float32, -bound, bound)
             + jax.random.uniform(k4, (4 * H,), jnp.float32, -bound, bound))
        # kernel-packed (bf16, permuted, transposed)
        k_w_ih.append(w_ih[perm].T.astype(jnp.bfloat16))
        k_w_hh.append(w_hh[perm].T.astype(jnp.bfloat16))
        k_bias.append(b[perm].reshape(1, 4 * H))
        # reference (f32, PyTorch order)
        r_w_ih.append(w_ih.T)
        r_w_hh.append(w_hh.T)
        r_bias.append(b.reshape(1, 4 * H))
    return {
        "emb": emb,                               # f32 (V, D): embedding gather + reference
        "emb_t_bf16": emb.T.astype(jnp.bfloat16), # bf16 (D, V): pre-transposed logits weight
        "w_ih_t": jnp.stack(k_w_ih),              # bf16 (L, D, 4H), gate order i,f,o,g
        "w_hh_t": jnp.stack(k_w_hh),              # bf16 (L, H, 4H), gate order i,f,o,g
        "bias": jnp.stack(k_bias),                # f32  (L, 1, 4H), gate order i,f,o,g
        "ref_w_ih_t": jnp.stack(r_w_ih),          # f32 reference copies (PyTorch order)
        "ref_w_hh_t": jnp.stack(r_w_hh),
        "ref_bias": jnp.stack(r_bias),
    }


def lstm_model_forward(tokens, params):
    """Mirrors LSTM_Model.forward: emb -> LSTM -> (logits = y @ emb.T, (h_n, c_n))."""
    T, B = tokens.shape
    # embedding gather stays in XLA (data-dependent row gather); values are
    # bf16-representable so the bf16 cast is exact.
    x = params["emb"][tokens].astype(jnp.bfloat16).reshape(T * B, EMB)
    y, h_n, c_n = lstm_stack(x, params["w_ih_t"], params["w_hh_t"], params["bias"],
                             seq_len=T, batch=B)
    # single wrapper-side cast of the activations for the logits matmul
    y_bf = y.reshape(T * B, HIDDEN).astype(jnp.bfloat16)
    logits = project_to_vocab(y_bf, params["emb_t_bf16"])
    return logits.reshape(T, B, VOCAB), (h_n, c_n)


def reference_forward(tokens, params):
    """Pure-JAX f32 reference (same math, PyTorch gate order, lax.scan over time)."""
    emb = params["emb"]
    x = emb[tokens]
    B = tokens.shape[1]
    h_list, c_list = [], []
    for l in range(NUM_LAYERS):
        w_ih_t = params["ref_w_ih_t"][l]
        w_hh_t = params["ref_w_hh_t"][l]
        bias = params["ref_bias"][l]

        def step(carry, x_t, w_ih_t=w_ih_t, w_hh_t=w_hh_t, bias=bias):
            h, c = carry
            gates = x_t @ w_ih_t + h @ w_hh_t + bias
            H = h.shape[-1]
            i = jax.nn.sigmoid(gates[:, :H])
            f = jax.nn.sigmoid(gates[:, H:2 * H])
            g = jnp.tanh(gates[:, 2 * H:3 * H])
            o = jax.nn.sigmoid(gates[:, 3 * H:])
            c = f * c + i * g
            h = o * jnp.tanh(c)
            return (h, c), h

        init = (jnp.zeros((B, HIDDEN), jnp.float32),
                jnp.zeros((B, HIDDEN), jnp.float32))
        (hn, cn), x = jax.lax.scan(step, init, x)
        h_list.append(hn)
        c_list.append(cn)
    logits = x @ emb.T
    return logits, (jnp.stack(h_list), jnp.stack(c_list))


if __name__ == "__main__":
    key = jax.random.PRNGKey(0)
    k_tok, k_par = jax.random.split(key)
    tokens = jax.random.randint(k_tok, (SEQ, BATCH), 0, VOCAB, dtype=jnp.int32)
    params = init_params(k_par)

    logits, (h_n, c_n) = jax.block_until_ready(lstm_model_forward(tokens, params))
    ref_logits, (ref_h, ref_c) = jax.block_until_ready(reference_forward(tokens, params))

    # Weights are shared (bf16-representable) between kernel and reference; the
    # remaining error comes only from bf16 activation casts on the MXU inputs.
    np.testing.assert_allclose(np.asarray(logits), np.asarray(ref_logits),
                               rtol=2e-2, atol=1e-1)
    np.testing.assert_allclose(np.asarray(h_n), np.asarray(ref_h), rtol=3e-2, atol=3e-2)
    np.testing.assert_allclose(np.asarray(c_n), np.asarray(ref_c), rtol=3e-2, atol=3e-2)

    assert logits.shape == (SEQ, BATCH, VOCAB)
    assert h_n.shape == (NUM_LAYERS, BATCH, HIDDEN)
    assert c_n.shape == (NUM_LAYERS, BATCH, HIDDEN)
    print("KERNEL_OK")
</pallas_src>

<mosaic_0001>
module attributes {stable_mosaic.version = 11 : i64} {
  func.func @_lstm_stack_kernel(%arg0: i32, %arg1: memref<64x128xbf16, #tpu.memory_space<vmem>>, %arg2: memref<2x128x512xbf16, #tpu.memory_space<vmem>>, %arg3: memref<2x128x512xbf16, #tpu.memory_space<vmem>>, %arg4: memref<2x1x512xf32, #tpu.memory_space<vmem>>, %arg5: memref<8x8x128xf32, #tpu.memory_space<vmem>>, %arg6: memref<2x8x128xf32, #tpu.memory_space<vmem>>, %arg7: memref<2x8x128xf32, #tpu.memory_space<vmem>>, %arg8: memref<8x8x512xf32, #tpu.memory_space<vmem>>) attributes {dimension_semantics = [#tpu.dimension_semantics<arbitrary>], iteration_bounds = array<i64: 1>, scalar_prefetch = 0 : i64, scratch_operands = 1 : i64, tpu.core_type = #tpu.core_type<tc>, window_params = [{pipeline_mode = #tpu.pipeline_mode<synchronous>, transform_indices = @transform_0, window_bounds = array<i64: 64, 128>}, {pipeline_mode = #tpu.pipeline_mode<synchronous>, transform_indices = @transform_1, window_bounds = array<i64: 2, 128, 512>}, {pipeline_mode = #tpu.pipeline_mode<synchronous>, transform_indices = @transform_2, window_bounds = array<i64: 2, 128, 512>}, {pipeline_mode = #tpu.pipeline_mode<synchronous>, transform_indices = @transform_3, window_bounds = array<i64: 2, 1, 512>}, {pipeline_mode = #tpu.pipeline_mode<synchronous>, transform_indices = @transform_4, window_bounds = array<i64: 8, 8, 128>}, {pipeline_mode = #tpu.pipeline_mode<synchronous>, transform_indices = @transform_5, window_bounds = array<i64: 2, 8, 128>}, {pipeline_mode = #tpu.pipeline_mode<synchronous>, transform_indices = @transform_6, window_bounds = array<i64: 2, 8, 128>}]} {
    %c0 = arith.constant 0 : index
    %c0_0 = arith.constant 0 : index
    %0 = vector.load %arg1[%c0, %c0_0] : memref<64x128xbf16, #tpu.memory_space<vmem>>, vector<64x128xbf16>
    %c0_1 = arith.constant 0 : index
    %c0_2 = arith.constant 0 : index
    %c0_3 = arith.constant 0 : index
    %1 = vector.load %arg2[%c0_1, %c0_2, %c0_3] : memref<2x128x512xbf16, #tpu.memory_space<vmem>>, vector<1x128x512xbf16>
    %2 = vector.shape_cast %1 : vector<1x128x512xbf16> to vector<128x512xbf16>
    %c0_4 = arith.constant 0 : index
    %c0_5 = arith.constant 0 : index
    %c0_6 = arith.constant 0 : index
    %3 = vector.load %arg3[%c0_4, %c0_5, %c0_6] : memref<2x128x512xbf16, #tpu.memory_space<vmem>>, vector<1x128x512xbf16>
    %4 = vector.shape_cast %3 : vector<1x128x512xbf16> to vector<128x512xbf16>
    %cst = arith.constant dense<0.000000e+00> : vector<64x512xf32>
    %5 = tpu.matmul %0, %2, %cst {dimension_numbers = #tpu.dot_dimension_numbers<[1], [0], [0], [1], [0, 0, 1, 1], [], []>} : vector<64x128xbf16>, vector<128x512xbf16>, vector<64x512xf32> -> vector<64x512xf32>
    %c0_7 = arith.constant 0 : index
    %c0_8 = arith.constant 0 : index
    %c0_9 = arith.constant 0 : index
    %6 = vector.load %arg4[%c0_7, %c0_8, %c0_9] : memref<2x1x512xf32, #tpu.memory_space<vmem>>, vector<1x1x512xf32>
    %7 = vector.shape_cast %6 : vector<1x1x512xf32> to vector<1x512xf32>
    %8 = vector.broadcast %7 : vector<1x512xf32> to vector<64x512xf32>
    %9 = arith.addf %5, %8 : vector<64x512xf32>
    %10 = vector.shape_cast %9 : vector<64x512xf32> to vector<8x8x512xf32>
    %c0_10 = arith.constant 0 : index
    %c0_11 = arith.constant 0 : index
    %c0_12 = arith.constant 0 : index
    %11 = vector.load %arg8[%c0_10, %c0_11, %c0_12] : memref<8x8x512xf32, #tpu.memory_space<vmem>>, vector<8x8x512xf32>
    tpu.vector_store %arg8[%c0_10, %c0_11, %c0_12], %10 {strides = array<i32>} : memref<8x8x512xf32, #tpu.memory_space<vmem>>, vector<8x8x512xf32>,
    %cst_13 = arith.constant 0.000000e+00 : f32
    %12 = vector.broadcast %cst_13 : f32 to vector<8x128xf32>
    %cst_14 = arith.constant 0.000000e+00 : f32
    %13 = vector.broadcast %cst_14 : f32 to vector<8x128xf32>
    %c0_i32 = arith.constant 0 : i32
    %14 = arith.index_cast %c0_i32 : i32 to index
    %c0_15 = arith.constant 0 : index
    %c0_16 = arith.constant 0 : index
    %15 = vector.load %arg8[%14, %c0_15, %c0_16] : memref<8x8x512xf32, #tpu.memory_space<vmem>>, vector<1x8x512xf32>
    %16 = vector.shape_cast %15 : vector<1x8x512xf32> to vector<8x512xf32>
    %17 = arith.truncf %12 : vector<8x128xf32> to vector<8x128xbf16>
    %cst_17 = arith.constant dense<0.000000e+00> : vector<8x512xf32>
    %18 = tpu.matmul %17, %4, %cst_17 {dimension_numbers = #tpu.dot_dimension_numbers<[1], [0], [0], [1], [0, 0, 1, 1], [], []>} : vector<8x128xbf16>, vector<128x512xbf16>, vector<8x512xf32> -> vector<8x512xf32>
    %19 = arith.addf %16, %18 : vector<8x512xf32>
    %20 = vector.extract_strided_slice %19 {offsets = [0, 0], sizes = [8, 384], strides = [1, 1]} : vector<8x512xf32> to vector<8x384xf32>
    %21 = arith.negf %20 : vector<8x384xf32>
    %22 = math.exp %21 : vector<8x384xf32>
    %cst_18 = arith.constant 1.000000e+00 : f32
    %23 = vector.broadcast %cst_18 : f32 to vector<8x384xf32>
    %24 = arith.addf %23, %22 : vector<8x384xf32>
    %25 = arith.divf %23, %24 : vector<8x384xf32>
    %26 = vector.extract_strided_slice %25 {offsets = [0, 0], sizes = [8, 128], strides = [1, 1]} : vector<8x384xf32> to vector<8x128xf32>
    %27 = vector.extract_strided_slice %25 {offsets = [0, 128], sizes = [8, 128], strides = [1, 1]} : vector<8x384xf32> to vector<8x128xf32>
    %28 = vector.extract_strided_slice %25 {offsets = [0, 256], sizes = [8, 128], strides = [1, 1]} : vector<8x384xf32> to vector<8x128xf32>
    %29 = vector.extract_strided_slice %19 {offsets = [0, 384], sizes = [8, 128], strides = [1, 1]} : vector<8x512xf32> to vector<8x128xf32>
    %30 = math.tanh %29 : vector<8x128xf32>
    %31 = arith.mulf %27, %13 : vector<8x128xf32>
    %32 = arith.mulf %26, %30 : vector<8x128xf32>
    %33 = arith.addf %31, %32 : vector<8x128xf32>
    %34 = math.tanh %33 : vector<8x128xf32>
    %35 = arith.mulf %28, %34 : vector<8x128xf32>
    %36 = arith.index_cast %c0_i32 : i32 to index
    %c0_19 = arith.constant 0 : index
    %c0_20 = arith.constant 0 : index
    %37 = vector.load %arg5[%36, %c0_19, %c0_20] : memref<8x8x128xf32, #tpu.memory_space<vmem>>, vector<1x8x128xf32>
    %38 = vector.shape_cast %37 : vector<1x8x128xf32> to vector<8x128xf32>
    %39 = vector.shape_cast %35 : vector<8x128xf32> to vector<1x8x128xf32>
    tpu.vector_store %arg5[%36, %c0_19, %c0_20], %39 {strides = array<i32>} : memref<8x8x128xf32, #tpu.memory_space<vmem>>, vector<1x8x128xf32>,
    %c1_i32 = arith.constant 1 : i32
    %40 = arith.index_cast %c1_i32 : i32 to index
    %c0_21 = arith.constant 0 : index
    %c0_22 = arith.constant 0 : index
    %41 = vector.load %arg8[%40, %c0_21, %c0_22] : memref<8x8x512xf32, #tpu.memory_space<vmem>>, vector<1x8x512xf32>
    %42 = vector.shape_cast %41 : vector<1x8x512xf32> to vector<8x512xf32>
    %43 = arith.truncf %35 : vector<8x128xf32> to vector<8x128xbf16>
    %cst_23 = arith.constant dense<0.000000e+00> : vector<8x512xf32>
    %44 = tpu.matmul %43, %4, %cst_23 {dimension_numbers = #tpu.dot_dimension_numbers<[1], [0], [0], [1], [0, 0, 1, 1], [], []>} : vector<8x128xbf16>, vector<128x512xbf16>, vector<8x512xf32> -> vector<8x512xf32>
    %45 = arith.addf %42, %44 : vector<8x512xf32>
    %46 = vector.extract_strided_slice %45 {offsets = [0, 0], sizes = [8, 384], strides = [1, 1]} : vector<8x512xf32> to vector<8x384xf32>
    %47 = arith.negf %46 : vector<8x384xf32>
    %48 = math.exp %47 : vector<8x384xf32>
    %cst_24 = arith.constant 1.000000e+00 : f32
    %49 = vector.broadcast %cst_24 : f32 to vector<8x384xf32>
    %50 = arith.addf %49, %48 : vector<8x384xf32>
    %51 = arith.divf %49, %50 : vector<8x384xf32>
    %52 = vector.extract_strided_slice %51 {offsets = [0, 0], sizes = [8, 128], strides = [1, 1]} : vector<8x384xf32> to vector<8x128xf32>
    %53 = vector.extract_strided_slice %51 {offsets = [0, 128], sizes = [8, 128], strides = [1, 1]} : vector<8x384xf32> to vector<8x128xf32>
    %54 = vector.extract_strided_slice %51 {offsets = [0, 256], sizes = [8, 128], strides = [1, 1]} : vector<8x384xf32> to vector<8x128xf32>
    %55 = vector.extract_strided_slice %45 {offsets = [0, 384], sizes = [8, 128], strides = [1, 1]} : vector<8x512xf32> to vector<8x128xf32>
    %56 = math.tanh %55 : vector<8x128xf32>
    %57 = arith.mulf %53, %33 : vector<8x128xf32>
    %58 = arith.mulf %52, %56 : vector<8x128xf32>
    %59 = arith.addf %57, %58 : vector<8x128xf32>
    %60 = math.tanh %59 : vector<8x128xf32>
    %61 = arith.mulf %54, %60 : vector<8x128xf32>
    %62 = arith.index_cast %c1_i32 : i32 to index
    %c0_25 = arith.constant 0 : index
    %c0_26 = arith.constant 0 : index
    %63 = vector.load %arg5[%62, %c0_25, %c0_26] : memref<8x8x128xf32, #tpu.memory_space<vmem>>, vector<1x8x128xf32>
    %64 = vector.shape_cast %63 : vector<1x8x128xf32> to vector<8x128xf32>
    %65 = vector.shape_cast %61 : vector<8x128xf32> to vector<1x8x128xf32>
    tpu.vector_store %arg5[%62, %c0_25, %c0_26], %65 {strides = array<i32>} : memref<8x8x128xf32, #tpu.memory_space<vmem>>, vector<1x8x128xf32>,
    %c2_i32 = arith.constant 2 : i32
    %66 = arith.index_cast %c2_i32 : i32 to index
    %c0_27 = arith.constant 0 : index
    %c0_28 = arith.constant 0 : index
    %67 = vector.load %arg8[%66, %c0_27, %c0_28] : memref<8x8x512xf32, #tpu.memory_space<vmem>>, vector<1x8x512xf32>
    %68 = vector.shape_cast %67 : vector<1x8x512xf32> to vector<8x512xf32>
    %69 = arith.truncf %61 : vector<8x128xf32> to vector<8x128xbf16>
    %cst_29 = arith.constant dense<0.000000e+00> : vector<8x512xf32>
    %70 = tpu.matmul %69, %4, %cst_29 {dimension_numbers = #tpu.dot_dimension_numbers<[1], [0], [0], [1], [0, 0, 1, 1], [], []>} : vector<8x128xbf16>, vector<128x512xbf16>, vector<8x512xf32> -> vector<8x512xf32>
    %71 = arith.addf %68, %70 : vector<8x512xf32>
    %72 = vector.extract_strided_slice %71 {offsets = [0, 0], sizes = [8, 384], strides = [1, 1]} : vector<8x512xf32> to vector<8x384xf32>
    %73 = arith.negf %72 : vector<8x384xf32>
    %74 = math.exp %73 : vector<8x384xf32>
    %cst_30 = arith.constant 1.000000e+00 : f32
    %75 = vector.broadcast %cst_30 : f32 to vector<8x384xf32>
    %76 = arith.addf %75, %74 : vector<8x384xf32>
    %77 = arith.divf %75, %76 : vector<8x384xf32>
    %78 = vector.extract_strided_slice %77 {offsets = [0, 0], sizes = [8, 128], strides = [1, 1]} : vector<8x384xf32> to vector<8x128xf32>
    %79 = vector.extract_strided_slice %77 {offsets = [0, 128], sizes = [8, 128], strides = [1, 1]} : vector<8x384xf32> to vector<8x128xf32>
    %80 = vector.extract_strided_slice %77 {offsets = [0, 256], sizes = [8, 128], strides = [1, 1]} : vector<8x384xf32> to vector<8x128xf32>
    %81 = vector.extract_strided_slice %71 {offsets = [0, 384], sizes = [8, 128], strides = [1, 1]} : vector<8x512xf32> to vector<8x128xf32>
    %82 = math.tanh %81 : vector<8x128xf32>
    %83 = arith.mulf %79, %59 : vector<8x128xf32>
    %84 = arith.mulf %78, %82 : vector<8x128xf32>
    %85 = arith.addf %83, %84 : vector<8x128xf32>
    %86 = math.tanh %85 : vector<8x128xf32>
    %87 = arith.mulf %80, %86 : vector<8x128xf32>
    %88 = arith.index_cast %c2_i32 : i32 to index
    %c0_31 = arith.constant 0 : index
    %c0_32 = arith.constant 0 : index
    %89 = vector.load %arg5[%88, %c0_31, %c0_32] : memref<8x8x128xf32, #tpu.memory_space<vmem>>, vector<1x8x128xf32>
    %90 = vector.shape_cast %89 : vector<1x8x128xf32> to vector<8x128xf32>
    %91 = vector.shape_cast %87 : vector<8x128xf32> to vector<1x8x128xf32>
    tpu.vector_store %arg5[%88, %c0_31, %c0_32], %91 {strides = array<i32>} : memref<8x8x128xf32, #tpu.memory_space<vmem>>, vector<1x8x128xf32>,
    %c3_i32 = arith.constant 3 : i32
    %92 = arith.index_cast %c3_i32 : i32 to index
    %c0_33 = arith.constant 0 : index
    %c0_34 = arith.constant 0 : index
    %93 = vector.load %arg8[%92, %c0_33, %c0_34] : memref<8x8x512xf32, #tpu.memory_space<vmem>>, vector<1x8x512xf32>
    %94 = vector.shape_cast %93 : vector<1x8x512xf32> to vector<8x512xf32>
    %95 = arith.truncf %87 : vector<8x128xf32> to vector<8x128xbf16>
    %cst_35 = arith.constant dense<0.000000e+00> : vector<8x512xf32>
    %96 = tpu.matmul %95, %4, %cst_35 {dimension_numbers = #tpu.dot_dimension_numbers<[1], [0], [0], [1], [0, 0, 1, 1], [], []>} : vector<8x128xbf16>, vector<128x512xbf16>, vector<8x512xf32> -> vector<8x512xf32>
    %97 = arith.addf %94, %96 : vector<8x512xf32>
    %98 = vector.extract_strided_slice %97 {offsets = [0, 0], sizes = [8, 384], strides = [1, 1]} : vector<8x512xf32> to vector<8x384xf32>
    %99 = arith.negf %98 : vector<8x384xf32>
    %100 = math.exp %99 : vector<8x384xf32>
    %cst_36 = arith.constant 1.000000e+00 : f32
    %101 = vector.broadcast %cst_36 : f32 to vector<8x384xf32>
    %102 = arith.addf %101, %100 : vector<8x384xf32>
    %103 = arith.divf %101, %102 : vector<8x384xf32>
    %104 = vector.extract_strided_slice %103 {offsets = [0, 0], sizes = [8, 128], strides = [1, 1]} : vector<8x384xf32> to vector<8x128xf32>
    %105 = vector.extract_strided_slice %103 {offsets = [0, 128], sizes = [8, 128], strides = [1, 1]} : vector<8x384xf32> to vector<8x128xf32>
    %106 = vector.extract_strided_slice %103 {offsets = [0, 256], sizes = [8, 128], strides = [1, 1]} : vector<8x384xf32> to vector<8x128xf32>
    %107 = vector.extract_strided_slice %97 {offsets = [0, 384], sizes = [8, 128], strides = [1, 1]} : vector<8x512xf32> to vector<8x128xf32>
    %108 = math.tanh %107 : vector<8x128xf32>
    %109 = arith.mulf %105, %85 : vector<8x128xf32>
    %110 = arith.mulf %104, %108 : vector<8x128xf32>
    %111 = arith.addf %109, %110 : vector<8x128xf32>
    %112 = math.tanh %111 : vector<8x128xf32>
    %113 = arith.mulf %106, %112 : vector<8x128xf32>
    %114 = arith.index_cast %c3_i32 : i32 to index
    %c0_37 = arith.constant 0 : index
    %c0_38 = arith.constant 0 : index
    %115 = vector.load %arg5[%114, %c0_37, %c0_38] : memref<8x8x128xf32, #tpu.memory_space<vmem>>, vector<1x8x128xf32>
    %116 = vector.shape_cast %115 : vector<1x8x128xf32> to vector<8x128xf32>
    %117 = vector.shape_cast %113 : vector<8x128xf32> to vector<1x8x128xf32>
    tpu.vector_store %arg5[%114, %c0_37, %c0_38], %117 {strides = array<i32>} : memref<8x8x128xf32, #tpu.memory_space<vmem>>, vector<1x8x128xf32>,
    %c4_i32 = arith.constant 4 : i32
    %118 = arith.index_cast %c4_i32 : i32 to index
    %c0_39 = arith.constant 0 : index
    %c0_40 = arith.constant 0 : index
    %119 = vector.load %arg8[%118, %c0_39, %c0_40] : memref<8x8x512xf32, #tpu.memory_space<vmem>>, vector<1x8x512xf32>
    %120 = vector.shape_cast %119 : vector<1x8x512xf32> to vector<8x512xf32>
    %121 = arith.truncf %113 : vector<8x128xf32> to vector<8x128xbf16>
    %cst_41 = arith.constant dense<0.000000e+00> : vector<8x512xf32>
    %122 = tpu.matmul %121, %4, %cst_41 {dimension_numbers = #tpu.dot_dimension_numbers<[1], [0], [0], [1], [0, 0, 1, 1], [], []>} : vector<8x128xbf16>, vector<128x512xbf16>, vector<8x512xf32> -> vector<8x512xf32>
    %123 = arith.addf %120, %122 : vector<8x512xf32>
    %124 = vector.extract_strided_slice %123 {offsets = [0, 0], sizes = [8, 384], strides = [1, 1]} : vector<8x512xf32> to vector<8x384xf32>
    %125 = arith.negf %124 : vector<8x384xf32>
    %126 = math.exp %125 : vector<8x384xf32>
    %cst_42 = arith.constant 1.000000e+00 : f32
    %127 = vector.broadcast %cst_42 : f32 to vector<8x384xf32>
    %128 = arith.addf %127, %126 : vector<8x384xf32>
    %129 = arith.divf %127, %128 : vector<8x384xf32>
    %130 = vector.extract_strided_slice %129 {offsets = [0, 0], sizes = [8, 128], strides = [1, 1]} : vector<8x384xf32> to vector<8x128xf32>
    %131 = vector.extract_strided_slice %129 {offsets = [0, 128], sizes = [8, 128], strides = [1, 1]} : vector<8x384xf32> to vector<8x128xf32>
    %132 = vector.extract_strided_slice %129 {offsets = [0, 256], sizes = [8, 128], strides = [1, 1]} : vector<8x384xf32> to vector<8x128xf32>
    %133 = vector.extract_strided_slice %123 {offsets = [0, 384], sizes = [8, 128], strides = [1, 1]} : vector<8x512xf32> to vector<8x128xf32>
    %134 = math.tanh %133 : vector<8x128xf32>
    %135 = arith.mulf %131, %111 : vector<8x128xf32>
    %136 = arith.mulf %130, %134 : vector<8x128xf32>
    %137 = arith.addf %135, %136 : vector<8x128xf32>
    %138 = math.tanh %137 : vector<8x128xf32>
    %139 = arith.mulf %132, %138 : vector<8x128xf32>
    %140 = arith.index_cast %c4_i32 : i32 to index
    %c0_43 = arith.constant 0 : index
    %c0_44 = arith.constant 0 : index
    %141 = vector.load %arg5[%140, %c0_43, %c0_44] : memref<8x8x128xf32, #tpu.memory_space<vmem>>, vector<1x8x128xf32>
    %142 = vector.shape_cast %141 : vector<1x8x128xf32> to vector<8x128xf32>
    %143 = vector.shape_cast %139 : vector<8x128xf32> to vector<1x8x128xf32>
    tpu.vector_store %arg5[%140, %c0_43, %c0_44], %143 {strides = array<i32>} : memref<8x8x128xf32, #tpu.memory_space<vmem>>, vector<1x8x128xf32>,
    %c5_i32 = arith.constant 5 : i32
    %144 = arith.index_cast %c5_i32 : i32 to index
    %c0_45 = arith.constant 0 : index
    %c0_46 = arith.constant 0 : index
    %145 = vector.load %arg8[%144, %c0_45, %c0_46] : memref<8x8x512xf32, #tpu.memory_space<vmem>>, vector<1x8x512xf32>
    %146 = vector.shape_cast %145 : vector<1x8x512xf32> to vector<8x512xf32>
    %147 = arith.truncf %139 : vector<8x128xf32> to vector<8x128xbf16>
    %cst_47 = arith.constant dense<0.000000e+00> : vector<8x512xf32>
    %148 = tpu.matmul %147, %4, %cst_47 {dimension_numbers = #tpu.dot_dimension_numbers<[1], [0], [0], [1], [0, 0, 1, 1], [], []>} : vector<8x128xbf16>, vector<128x512xbf16>, vector<8x512xf32> -> vector<8x512xf32>
    %149 = arith.addf %146, %148 : vector<8x512xf32>
    %150 = vector.extract_strided_slice %149 {offsets = [0, 0], sizes = [8, 384], strides = [1, 1]} : vector<8x512xf32> to vector<8x384xf32>
    %151 = arith.negf %150 : vector<8x384xf32>
    %152 = math.exp %151 : vector<8x384xf32>
    %cst_48 = arith.constant 1.000000e+00 : f32
    %153 = vector.broadcast %cst_48 : f32 to vector<8x384xf32>
    %154 = arith.addf %153, %152 : vector<8x384xf32>
    %155 = arith.divf %153, %154 : vector<8x384xf32>
    %156 = vector.extract_strided_slice %155 {offsets = [0, 0], sizes = [8, 128], strides = [1, 1]} : vector<8x384xf32> to vector<8x128xf32>
    %157 = vector.extract_strided_slice %155 {offsets = [0, 128], sizes = [8, 128], strides = [1, 1]} : vector<8x384xf32> to vector<8x128xf32>
    %158 = vector.extract_strided_slice %155 {offsets = [0, 256], sizes = [8, 128], strides = [1, 1]} : vector<8x384xf32> to vector<8x128xf32>
    %159 = vector.extract_strided_slice %149 {offsets = [0, 384], sizes = [8, 128], strides = [1, 1]} : vector<8x512xf32> to vector<8x128xf32>
    %160 = math.tanh %159 : vector<8x128xf32>
    %161 = arith.mulf %157, %137 : vector<8x128xf32>
    %162 = arith.mulf %156, %160 : vector<8x128xf32>
    %163 = arith.addf %161, %162 : vector<8x128xf32>
    %164 = math.tanh %163 : vector<8x128xf32>
    %165 = arith.mulf %158, %164 : vector<8x128xf32>
    %166 = arith.index_cast %c5_i32 : i32 to index
    %c0_49 = arith.constant 0 : index
    %c0_50 = arith.constant 0 : index
    %167 = vector.load %arg5[%166, %c0_49, %c0_50] : memref<8x8x128xf32, #tpu.memory_space<vmem>>, vector<1x8x128xf32>
    %168 = vector.shape_cast %167 : vector<1x8x128xf32> to vector<8x128xf32>
    %169 = vector.shape_cast %165 : vector<8x128xf32> to vector<1x8x128xf32>
    tpu.vector_store %arg5[%166, %c0_49, %c0_50], %169 {strides = array<i32>} : memref<8x8x128xf32, #tpu.memory_space<vmem>>, vector<1x8x128xf32>,
    %c6_i32 = arith.constant 6 : i32
    %170 = arith.index_cast %c6_i32 : i32 to index
    %c0_51 = arith.constant 0 : index
    %c0_52 = arith.constant 0 : index
    %171 = vector.load %arg8[%170, %c0_51, %c0_52] : memref<8x8x512xf32, #tpu.memory_space<vmem>>, vector<1x8x512xf32>
    %172 = vector.shape_cast %171 : vector<1x8x512xf32> to vector<8x512xf32>
    %173 = arith.truncf %165 : vector<8x128xf32> to vector<8x128xbf16>
    %cst_53 = arith.constant dense<0.000000e+00> : vector<8x512xf32>
    %174 = tpu.matmul %173, %4, %cst_53 {dimension_numbers = #tpu.dot_dimension_numbers<[1], [0], [0], [1], [0, 0, 1, 1], [], []>} : vector<8x128xbf16>, vector<128x512xbf16>, vector<8x512xf32> -> vector<8x512xf32>
    %175 = arith.addf %172, %174 : vector<8x512xf32>
    %176 = vector.extract_strided_slice %175 {offsets = [0, 0], sizes = [8, 384], strides = [1, 1]} : vector<8x512xf32> to vector<8x384xf32>
    %177 = arith.negf %176 : vector<8x384xf32>
    %178 = math.exp %177 : vector<8x384xf32>
    %cst_54 = arith.constant 1.000000e+00 : f32
    %179 = vector.broadcast %cst_54 : f32 to vector<8x384xf32>
    %180 = arith.addf %179, %178 : vector<8x384xf32>
    %181 = arith.divf %179, %180 : vector<8x384xf32>
    %182 = vector.extract_strided_slice %181 {offsets = [0, 0], sizes = [8, 128], strides = [1, 1]} : vector<8x384xf32> to vector<8x128xf32>
    %183 = vector.extract_strided_slice %181 {offsets = [0, 128], sizes = [8, 128], strides = [1, 1]} : vector<8x384xf32> to vector<8x128xf32>
    %184 = vector.extract_strided_slice %181 {offsets = [0, 256], sizes = [8, 128], strides = [1, 1]} : vector<8x384xf32> to vector<8x128xf32>
    %185 = vector.extract_strided_slice %175 {offsets = [0, 384], sizes = [8, 128], strides = [1, 1]} : vector<8x512xf32> to vector<8x128xf32>
    %186 = math.tanh %185 : vector<8x128xf32>
    %187 = arith.mulf %183, %163 : vector<8x128xf32>
    %188 = arith.mulf %182, %186 : vector<8x128xf32>
    %189 = arith.addf %187, %188 : vector<8x128xf32>
    %190 = math.tanh %189 : vector<8x128xf32>
    %191 = arith.mulf %184, %190 : vector<8x128xf32>
    %192 = arith.index_cast %c6_i32 : i32 to index
    %c0_55 = arith.constant 0 : index
    %c0_56 = arith.constant 0 : index
    %193 = vector.load %arg5[%192, %c0_55, %c0_56] : memref<8x8x128xf32, #tpu.memory_space<vmem>>, vector<1x8x128xf32>
    %194 = vector.shape_cast %193 : vector<1x8x128xf32> to vector<8x128xf32>
    %195 = vector.shape_cast %191 : vector<8x128xf32> to vector<1x8x128xf32>
    tpu.vector_store %arg5[%192, %c0_55, %c0_56], %195 {strides = array<i32>} : memref<8x8x128xf32, #tpu.memory_space<vmem>>, vector<1x8x128xf32>,
    %c7_i32 = arith.constant 7 : i32
    %196 = arith.index_cast %c7_i32 : i32 to index
    %c0_57 = arith.constant 0 : index
    %c0_58 = arith.constant 0 : index
    %197 = vector.load %arg8[%196, %c0_57, %c0_58] : memref<8x8x512xf32, #tpu.memory_space<vmem>>, vector<1x8x512xf32>
    %198 = vector.shape_cast %197 : vector<1x8x512xf32> to vector<8x512xf32>
    %199 = arith.truncf %191 : vector<8x128xf32> to vector<8x128xbf16>
    %cst_59 = arith.constant dense<0.000000e+00> : vector<8x512xf32>
    %200 = tpu.matmul %199, %4, %cst_59 {dimension_numbers = #tpu.dot_dimension_numbers<[1], [0], [0], [1], [0, 0, 1, 1], [], []>} : vector<8x128xbf16>, vector<128x512xbf16>, vector<8x512xf32> -> vector<8x512xf32>
    %201 = arith.addf %198, %200 : vector<8x512xf32>
    %202 = vector.extract_strided_slice %201 {offsets = [0, 0], sizes = [8, 384], strides = [1, 1]} : vector<8x512xf32> to vector<8x384xf32>
    %203 = arith.negf %202 : vector<8x384xf32>
    %204 = math.exp %203 : vector<8x384xf32>
    %cst_60 = arith.constant 1.000000e+00 : f32
    %205 = vector.broadcast %cst_60 : f32 to vector<8x384xf32>
    %206 = arith.addf %205, %204 : vector<8x384xf32>
    %207 = arith.divf %205, %206 : vector<8x384xf32>
    %208 = vector.extract_strided_slice %207 {offsets = [0, 0], sizes = [8, 128], strides = [1, 1]} : vector<8x384xf32> to vector<8x128xf32>
    %209 = vector.extract_strided_slice %207 {offsets = [0, 128], sizes = [8, 128], strides = [1, 1]} : vector<8x384xf32> to vector<8x128xf32>
    %210 = vector.extract_strided_slice %207 {offsets = [0, 256], sizes = [8, 128], strides = [1, 1]} : vector<8x384xf32> to vector<8x128xf32>
    %211 = vector.extract_strided_slice %201 {offsets = [0, 384], sizes = [8, 128], strides = [1, 1]} : vector<8x512xf32> to vector<8x128xf32>
    %212 = math.tanh %211 : vector<8x128xf32>
    %213 = arith.mulf %209, %189 : vector<8x128xf32>
    %214 = arith.mulf %208, %212 : vector<8x128xf32>
    %215 = arith.addf %213, %214 : vector<8x128xf32>
    %216 = math.tanh %215 : vector<8x128xf32>
    %217 = arith.mulf %210, %216 : vector<8x128xf32>
    %218 = arith.index_cast %c7_i32 : i32 to index
    %c0_61 = arith.constant 0 : index
    %c0_62 = arith.constant 0 : index
    %219 = vector.load %arg5[%218, %c0_61, %c0_62] : memref<8x8x128xf32, #tpu.memory_space<vmem>>, vector<1x8x128xf32>
    %220 = vector.shape_cast %219 : vector<1x8x128xf32> to vector<8x128xf32>
    %221 = vector.shape_cast %217 : vector<8x128xf32> to vector<1x8x128xf32>
    tpu.vector_store %arg5[%218, %c0_61, %c0_62], %221 {strides = array<i32>} : memref<8x8x128xf32, #tpu.memory_space<vmem>>, vector<1x8x128xf32>,
    %c8_i32 = arith.constant 8 : i32
    %c0_63 = arith.constant 0 : index
    %c0_64 = arith.constant 0 : index
    %c0_65 = arith.constant 0 : index
    %222 = vector.load %arg6[%c0_63, %c0_64, %c0_65] : memref<2x8x128xf32, #tpu.memory_space<vmem>>, vector<1x8x128xf32>
    %223 = vector.shape_cast %222 : vector<1x8x128xf32> to vector<8x128xf32>
    %224 = vector.shape_cast %217 : vector<8x128xf32> to vector<1x8x128xf32>
    tpu.vector_store %arg6[%c0_63, %c0_64, %c0_65], %224 {strides = array<i32>} : memref<2x8x128xf32, #tpu.memory_space<vmem>>, vector<1x8x128xf32>,
    %c0_66 = arith.constant 0 : index
    %c0_67 = arith.constant 0 : index
    %c0_68 = arith.constant 0 : index
    %225 = vector.load %arg7[%c0_66, %c0_67, %c0_68] : memref<2x8x128xf32, #tpu.memory_space<vmem>>, vector<1x8x128xf32>
    %226 = vector.shape_cast %225 : vector<1x8x128xf32> to vector<8x128xf32>
    %227 = vector.shape_cast %215 : vector<8x128xf32> to vector<1x8x128xf32>
    tpu.vector_store %arg7[%c0_66, %c0_67, %c0_68], %227 {strides = array<i32>} : memref<2x8x128xf32, #tpu.memory_space<vmem>>, vector<1x8x128xf32>,
    %c0_69 = arith.constant 0 : index
    %c0_70 = arith.constant 0 : index
    %c0_71 = arith.constant 0 : index
    %228 = vector.load %arg5[%c0_69, %c0_70, %c0_71] : memref<8x8x128xf32, #tpu.memory_space<vmem>>, vector<8x8x128xf32>
    %229 = vector.shape_cast %228 : vector<8x8x128xf32> to vector<64x128xf32>
    %230 = arith.truncf %229 : vector<64x128xf32> to vector<64x128xbf16>
    %c1 = arith.constant 1 : index
    %c0_72 = arith.constant 0 : index
    %c0_73 = arith.constant 0 : index
    %231 = vector.load %arg2[%c1, %c0_72, %c0_73] : memref<2x128x512xbf16, #tpu.memory_space<vmem>>, vector<1x128x512xbf16>
    %232 = vector.shape_cast %231 : vector<1x128x512xbf16> to vector<128x512xbf16>
    %c1_74 = arith.constant 1 : index
    %c0_75 = arith.constant 0 : index
    %c0_76 = arith.constant 0 : index
    %233 = vector.load %arg3[%c1_74, %c0_75, %c0_76] : memref<2x128x512xbf16, #tpu.memory_space<vmem>>, vector<1x128x512xbf16>
    %234 = vector.shape_cast %233 : vector<1x128x512xbf16> to vector<128x512xbf16>
    %cst_77 = arith.constant dense<0.000000e+00> : vector<64x512xf32>
    %235 = tpu.matmul %230, %232, %cst_77 {dimension_numbers = #tpu.dot_dimension_numbers<[1], [0], [0], [1], [0, 0, 1, 1], [], []>} : vector<64x128xbf16>, vector<128x512xbf16>, vector<64x512xf32> -> vector<64x512xf32>
    %c1_78 = arith.constant 1 : index
    %c0_79 = arith.constant 0 : index
    %c0_80 = arith.constant 0 : index
    %236 = vector.load %arg4[%c1_78, %c0_79, %c0_80] : memref<2x1x512xf32, #tpu.memory_space<vmem>>, vector<1x1x512xf32>
    %237 = vector.shape_cast %236 : vector<1x1x512xf32> to vector<1x512xf32>
    %238 = vector.broadcast %237 : vector<1x512xf32> to vector<64x512xf32>
    %239 = arith.addf %235, %238 : vector<64x512xf32>
    %240 = vector.shape_cast %239 : vector<64x512xf32> to vector<8x8x512xf32>
    %c0_81 = arith.constant 0 : index
    %c0_82 = arith.constant 0 : index
    %c0_83 = arith.constant 0 : index
    %241 = vector.load %arg8[%c0_81, %c0_82, %c0_83] : memref<8x8x512xf32, #tpu.memory_space<vmem>>, vector<8x8x512xf32>
    tpu.vector_store %arg8[%c0_81, %c0_82, %c0_83], %240 {strides = array<i32>} : memref<8x8x512xf32, #tpu.memory_space<vmem>>, vector<8x8x512xf32>,
    %cst_84 = arith.constant 0.000000e+00 : f32
    %242 = vector.broadcast %cst_84 : f32 to vector<8x128xf32>
    %cst_85 = arith.constant 0.000000e+00 : f32
    %243 = vector.broadcast %cst_85 : f32 to vector<8x128xf32>
    %c0_i32_86 = arith.constant 0 : i32
    %244 = arith.index_cast %c0_i32_86 : i32 to index
    %c0_87 = arith.constant 0 : index
    %c0_88 = arith.constant 0 : index
    %245 = vector.load %arg8[%244, %c0_87, %c0_88] : memref<8x8x512xf32, #tpu.memory_space<vmem>>, vector<1x8x512xf32>
    %246 = vector.shape_cast %245 : vector<1x8x512xf32> to vector<8x512xf32>
    %247 = arith.truncf %242 : vector<8x128xf32> to vector<8x128xbf16>
    %cst_89 = arith.constant dense<0.000000e+00> : vector<8x512xf32>
    %248 = tpu.matmul %247, %234, %cst_89 {dimension_numbers = #tpu.dot_dimension_numbers<[1], [0], [0], [1], [0, 0, 1, 1], [], []>} : vector<8x128xbf16>, vector<128x512xbf16>, vector<8x512xf32> -> vector<8x512xf32>
    %249 = arith.addf %246, %248 : vector<8x512xf32>
    %250 = vector.extract_strided_slice %249 {offsets = [0, 0], sizes = [8, 384], strides = [1, 1]} : vector<8x512xf32> to vector<8x384xf32>
    %251 = arith.negf %250 : vector<8x384xf32>
    %252 = math.exp %251 : vector<8x384xf32>
    %cst_90 = arith.constant 1.000000e+00 : f32
    %253 = vector.broadcast %cst_90 : f32 to vector<8x384xf32>
    %254 = arith.addf %253, %252 : vector<8x384xf32>
    %255 = arith.divf %253, %254 : vector<8x384xf32>
    %256 = vector.extract_strided_slice %255 {offsets = [0, 0], sizes = [8, 128], strides = [1, 1]} : vector<8x384xf32> to vector<8x128xf32>
    %257 = vector.extract_strided_slice %255 {offsets = [0, 128], sizes = [8, 128], strides = [1, 1]} : vector<8x384xf32> to vector<8x128xf32>
    %258 = vector.extract_strided_slice %255 {offsets = [0, 256], sizes = [8, 128], strides = [1, 1]} : vector<8x384xf32> to vector<8x128xf32>
    %259 = vector.extract_strided_slice %249 {offsets = [0, 384], sizes = [8, 128], strides = [1, 1]} : vector<8x512xf32> to vector<8x128xf32>
    %260 = math.tanh %259 : vector<8x128xf32>
    %261 = arith.mulf %257, %243 : vector<8x128xf32>
    %262 = arith.mulf %256, %260 : vector<8x128xf32>
    %263 = arith.addf %261, %262 : vector<8x128xf32>
    %264 = math.tanh %263 : vector<8x128xf32>
    %265 = arith.mulf %258, %264 : vector<8x128xf32>
    %266 = arith.index_cast %c0_i32_86 : i32 to index
    %c0_91 = arith.constant 0 : index
    %c0_92 = arith.constant 0 : index
    %267 = vector.load %arg5[%266, %c0_91, %c0_92] : memref<8x8x128xf32, #tpu.memory_space<vmem>>, vector<1x8x128xf32>
    %268 = vector.shape_cast %267 : vector<1x8x128xf32> to vector<8x128xf32>
    %269 = vector.shape_cast %265 : vector<8x128xf32> to vector<1x8x128xf32>
    tpu.vector_store %arg5[%266, %c0_91, %c0_92], %269 {strides = array<i32>} : memref<8x8x128xf32, #tpu.memory_space<vmem>>, vector<1x8x128xf32>,
    %c1_i32_93 = arith.constant 1 : i32
    %270 = arith.index_cast %c1_i32_93 : i32 to index
    %c0_94 = arith.constant 0 : index
    %c0_95 = arith.constant 0 : index
    %271 = vector.load %arg8[%270, %c0_94, %c0_95] : memref<8x8x512xf32, #tpu.memory_space<vmem>>, vector<1x8x512xf32>
    %272 = vector.shape_cast %271 : vector<1x8x512xf32> to vector<8x512xf32>
    %273 = arith.truncf %265 : vector<8x128xf32> to vector<8x128xbf16>
    %cst_96 = arith.constant dense<0.000000e+00> : vector<8x512xf32>
    %274 = tpu.matmul %273, %234, %cst_96 {dimension_numbers = #tpu.dot_dimension_numbers<[1], [0], [0], [1], [0, 0, 1, 1], [], []>} : vector<8x128xbf16>, vector<128x512xbf16>, vector<8x512xf32> -> vector<8x512xf32>
    %275 = arith.addf %272, %274 : vector<8x512xf32>
    %276 = vector.extract_strided_slice %275 {offsets = [0, 0], sizes = [8, 384], strides = [1, 1]} : vector<8x512xf32> to vector<8x384xf32>
    %277 = arith.negf %276 : vector<8x384xf32>
    %278 = math.exp %277 : vector<8x384xf32>
    %cst_97 = arith.constant 1.000000e+00 : f32
    %279 = vector.broadcast %cst_97 : f32 to vector<8x384xf32>
    %280 = arith.addf %279, %278 : vector<8x384xf32>
    %281 = arith.divf %279, %280 : vector<8x384xf32>
    %282 = vector.extract_strided_slice %281 {offsets = [0, 0], sizes = [8, 128], strides = [1, 1]} : vector<8x384xf32> to vector<8x128xf32>
    %283 = vector.extract_strided_slice %281 {offsets = [0, 128], sizes = [8, 128], strides = [1, 1]} : vector<8x384xf32> to vector<8x128xf32>
    %284 = vector.extract_strided_slice %281 {offsets = [0, 256], sizes = [8, 128], strides = [1, 1]} : vector<8x384xf32> to vector<8x128xf32>
    %285 = vector.extract_strided_slice %275 {offsets = [0, 384], sizes = [8, 128], strides = [1, 1]} : vector<8x512xf32> to vector<8x128xf32>
    %286 = math.tanh %285 : vector<8x128xf32>
    %287 = arith.mulf %283, %263 : vector<8x128xf32>
    %288 = arith.mulf %282, %286 : vector<8x128xf32>
    %289 = arith.addf %287, %288 : vector<8x128xf32>
    %290 = math.tanh %289 : vector<8x128xf32>
    %291 = arith.mulf %284, %290 : vector<8x128xf32>
    %292 = arith.index_cast %c1_i32_93 : i32 to index
    %c0_98 = arith.constant 0 : index
    %c0_99 = arith.constant 0 : index
    %293 = vector.load %arg5[%292, %c0_98, %c0_99] : memref<8x8x128xf32, #tpu.memory_space<vmem>>, vector<1x8x128xf32>
    %294 = vector.shape_cast %293 : vector<1x8x128xf32> to vector<8x128xf32>
    %295 = vector.shape_cast %291 : vector<8x128xf32> to vector<1x8x128xf32>
    tpu.vector_store %arg5[%292, %c0_98, %c0_99], %295 {strides = array<i32>} : memref<8x8x128xf32, #tpu.memory_space<vmem>>, vector<1x8x128xf32>,
    %c2_i32_100 = arith.constant 2 : i32
    %296 = arith.index_cast %c2_i32_100 : i32 to index
    %c0_101 = arith.constant 0 : index
    %c0_102 = arith.constant 0 : index
    %297 = vector.load %arg8[%296, %c0_101, %c0_102] : memref<8x8x512xf32, #tpu.memory_space<vmem>>, vector<1x8x512xf32>
    %298 = vector.shape_cast %297 : vector<1x8x512xf32> to vector<8x512xf32>
    %299 = arith.truncf %291 : vector<8x128xf32> to vector<8x128xbf16>
    %cst_103 = arith.constant dense<0.000000e+00> : vector<8x512xf32>
    %300 = tpu.matmul %299, %234, %cst_103 {dimension_numbers = #tpu.dot_dimension_numbers<[1], [0], [0], [1], [0, 0, 1, 1], [], []>} : vector<8x128xbf16>, vector<128x512xbf16>, vector<8x512xf32> -> vector<8x512xf32>
    %301 = arith.addf %298, %300 : vector<8x512xf32>
    %302 = vector.extract_strided_slice %301 {offsets = [0, 0], sizes = [8, 384], strides = [1, 1]} : vector<8x512xf32> to vector<8x384xf32>
    %303 = arith.negf %302 : vector<8x384xf32>
    %304 = math.exp %303 : vector<8x384xf32>
    %cst_104 = arith.constant 1.000000e+00 : f32
    %305 = vector.broadcast %cst_104 : f32 to vector<8x384xf32>
    %306 = arith.addf %305, %304 : vector<8x384xf32>
    %307 = arith.divf %305, %306 : vector<8x384xf32>
    %308 = vector.extract_strided_slice %307 {offsets = [0, 0], sizes = [8, 128], strides = [1, 1]} : vector<8x384xf32> to vector<8x128xf32>
    %309 = vector.extract_strided_slice %307 {offsets = [0, 128], sizes = [8, 128], strides = [1, 1]} : vector<8x384xf32> to vector<8x128xf32>
    %310 = vector.extract_strided_slice %307 {offsets = [0, 256], sizes = [8, 128], strides = [1, 1]} : vector<8x384xf32> to vector<8x128xf32>
    %311 = vector.extract_strided_slice %301 {offsets = [0, 384], sizes = [8, 128], strides = [1, 1]} : vector<8x512xf32> to vector<8x128xf32>
    %312 = math.tanh %311 : vector<8x128xf32>
    %313 = arith.mulf %309, %289 : vector<8x128xf32>
    %314 = arith.mulf %308, %312 : vector<8x128xf32>
    %315 = arith.addf %313, %314 : vector<8x128xf32>
    %316 = math.tanh %315 : vector<8x128xf32>
    %317 = arith.mulf %310, %316 : vector<8x128xf32>
    %318 = arith.index_cast %c2_i32_100 : i32 to index
    %c0_105 = arith.constant 0 : index
    %c0_106 = arith.constant 0 : index
    %319 = vector.load %arg5[%318, %c0_105, %c0_106] : memref<8x8x128xf32, #tpu.memory_space<vmem>>, vector<1x8x128xf32>
    %320 = vector.shape_cast %319 : vector<1x8x128xf32> to vector<8x128xf32>
    %321 = vector.shape_cast %317 : vector<8x128xf32> to vector<1x8x128xf32>
    tpu.vector_store %arg5[%318, %c0_105, %c0_106], %321 {strides = array<i32>} : memref<8x8x128xf32, #tpu.memory_space<vmem>>, vector<1x8x128xf32>,
    %c3_i32_107 = arith.constant 3 : i32
    %322 = arith.index_cast %c3_i32_107 : i32 to index
    %c0_108 = arith.constant 0 : index
    %c0_109 = arith.constant 0 : index
    %323 = vector.load %arg8[%322, %c0_108, %c0_109] : memref<8x8x512xf32, #tpu.memory_space<vmem>>, vector<1x8x512xf32>
    %324 = vector.shape_cast %323 : vector<1x8x512xf32> to vector<8x512xf32>
    %325 = arith.truncf %317 : vector<8x128xf32> to vector<8x128xbf16>
    %cst_110 = arith.constant dense<0.000000e+00> : vector<8x512xf32>
    %326 = tpu.matmul %325, %234, %cst_110 {dimension_numbers = #tpu.dot_dimension_numbers<[1], [0], [0], [1], [0, 0, 1, 1], [], []>} : vector<8x128xbf16>, vector<128x512xbf16>, vector<8x512xf32> -> vector<8x512xf32>
    %327 = arith.addf %324, %326 : vector<8x512xf32>
    %328 = vector.extract_strided_slice %327 {offsets = [0, 0], sizes = [8, 384], strides = [1, 1]} : vector<8x512xf32> to vector<8x384xf32>
    %329 = arith.negf %328 : vector<8x384xf32>
    %330 = math.exp %329 : vector<8x384xf32>
    %cst_111 = arith.constant 1.000000e+00 : f32
    %331 = vector.broadcast %cst_111 : f32 to vector<8x384xf32>
    %332 = arith.addf %331, %330 : vector<8x384xf32>
    %333 = arith.divf %331, %332 : vector<8x384xf32>
    %334 = vector.extract_strided_slice %333 {offsets = [0, 0], sizes = [8, 128], strides = [1, 1]} : vector<8x384xf32> to vector<8x128xf32>
    %335 = vector.extract_strided_slice %333 {offsets = [0, 128], sizes = [8, 128], strides = [1, 1]} : vector<8x384xf32> to vector<8x128xf32>
    %336 = vector.extract_strided_slice %333 {offsets = [0, 256], sizes = [8, 128], strides = [1, 1]} : vector<8x384xf32> to vector<8x128xf32>
    %337 = vector.extract_strided_slice %327 {offsets = [0, 384], sizes = [8, 128], strides = [1, 1]} : vector<8x512xf32> to vector<8x128xf32>
    %338 = math.tanh %337 : vector<8x128xf32>
    %339 = arith.mulf %335, %315 : vector<8x128xf32>
    %340 = arith.mulf %334, %338 : vector<8x128xf32>
    %341 = arith.addf %339, %340 : vector<8x128xf32>
    %342 = math.tanh %341 : vector<8x128xf32>
    %343 = arith.mulf %336, %342 : vector<8x128xf32>
    %344 = arith.index_cast %c3_i32_107 : i32 to index
    %c0_112 = arith.constant 0 : index
    %c0_113 = arith.constant 0 : index
    %345 = vector.load %arg5[%344, %c0_112, %c0_113] : memref<8x8x128xf32, #tpu.memory_space<vmem>>, vector<1x8x128xf32>
    %346 = vector.shape_cast %345 : vector<1x8x128xf32> to vector<8x128xf32>
    %347 = vector.shape_cast %343 : vector<8x128xf32> to vector<1x8x128xf32>
    tpu.vector_store %arg5[%344, %c0_112, %c0_113], %347 {strides = array<i32>} : memref<8x8x128xf32, #tpu.memory_space<vmem>>, vector<1x8x128xf32>,
    %c4_i32_114 = arith.constant 4 : i32
    %348 = arith.index_cast %c4_i32_114 : i32 to index
    %c0_115 = arith.constant 0 : index
    %c0_116 = arith.constant 0 : index
    %349 = vector.load %arg8[%348, %c0_115, %c0_116] : memref<8x8x512xf32, #tpu.memory_space<vmem>>, vector<1x8x512xf32>
    %350 = vector.shape_cast %349 : vector<1x8x512xf32> to vector<8x512xf32>
    %351 = arith.truncf %343 : vector<8x128xf32> to vector<8x128xbf16>
    %cst_117 = arith.constant dense<0.000000e+00> : vector<8x512xf32>
    %352 = tpu.matmul %351, %234, %cst_117 {dimension_numbers = #tpu.dot_dimension_numbers<[1], [0], [0], [1], [0, 0, 1, 1], [], []>} : vector<8x128xbf16>, vector<128x512xbf16>, vector<8x512xf32> -> vector<8x512xf32>
    %353 = arith.addf %350, %352 : vector<8x512xf32>
    %354 = vector.extract_strided_slice %353 {offsets = [0, 0], sizes = [8, 384], strides = [1, 1]} : vector<8x512xf32> to vector<8x384xf32>
    %355 = arith.negf %354 : vector<8x384xf32>
    %356 = math.exp %355 : vector<8x384xf32>
    %cst_118 = arith.constant 1.000000e+00 : f32
    %357 = vector.broadcast %cst_118 : f32 to vector<8x384xf32>
    %358 = arith.addf %357, %356 : vector<8x384xf32>
    %359 = arith.divf %357, %358 : vector<8x384xf32>
    %360 = vector.extract_strided_slice %359 {offsets = [0, 0], sizes = [8, 128], strides = [1, 1]} : vector<8x384xf32> to vector<8x128xf32>
    %361 = vector.extract_strided_slice %359 {offsets = [0, 128], sizes = [8, 128], strides = [1, 1]} : vector<8x384xf32> to vector<8x128xf32>
    %362 = vector.extract_strided_slice %359 {offsets = [0, 256], sizes = [8, 128], strides = [1, 1]} : vector<8x384xf32> to vector<8x128xf32>
    %363 = vector.extract_strided_slice %353 {offsets = [0, 384], sizes = [8, 128], strides = [1, 1]} : vector<8x512xf32> to vector<8x128xf32>
    %364 = math.tanh %363 : vector<8x128xf32>
    %365 = arith.mulf %361, %341 : vector<8x128xf32>
    %366 = arith.mulf %360, %364 : vector<8x128xf32>
    %367 = arith.addf %365, %366 : vector<8x128xf32>
    %368 = math.tanh %367 : vector<8x128xf32>
    %369 = arith.mulf %362, %368 : vector<8x128xf32>
    %370 = arith.index_cast %c4_i32_114 : i32 to index
    %c0_119 = arith.constant 0 : index
    %c0_120 = arith.constant 0 : index
    %371 = vector.load %arg5[%370, %c0_119, %c0_120] : memref<8x8x128xf32, #tpu.memory_space<vmem>>, vector<1x8x128xf32>
    %372 = vector.shape_cast %371 : vector<1x8x128xf32> to vector<8x128xf32>
    %373 = vector.shape_cast %369 : vector<8x128xf32> to vector<1x8x128xf32>
    tpu.vector_store %arg5[%370, %c0_119, %c0_120], %373 {strides = array<i32>} : memref<8x8x128xf32, #tpu.memory_space<vmem>>, vector<1x8x128xf32>,
    %c5_i32_121 = arith.constant 5 : i32
    %374 = arith.index_cast %c5_i32_121 : i32 to index
    %c0_122 = arith.constant 0 : index
    %c0_123 = arith.constant 0 : index
    %375 = vector.load %arg8[%374, %c0_122, %c0_123] : memref<8x8x512xf32, #tpu.memory_space<vmem>>, vector<1x8x512xf32>
    %376 = vector.shape_cast %375 : vector<1x8x512xf32> to vector<8x512xf32>
    %377 = arith.truncf %369 : vector<8x128xf32> to vector<8x128xbf16>
    %cst_124 = arith.constant dense<0.000000e+00> : vector<8x512xf32>
    %378 = tpu.matmul %377, %234, %cst_124 {dimension_numbers = #tpu.dot_dimension_numbers<[1], [0], [0], [1], [0, 0, 1, 1], [], []>} : vector<8x128xbf16>, vector<128x512xbf16>, vector<8x512xf32> -> vector<8x512xf32>
    %379 = arith.addf %376, %378 : vector<8x512xf32>
    %380 = vector.extract_strided_slice %379 {offsets = [0, 0], sizes = [8, 384], strides = [1, 1]} : vector<8x512xf32> to vector<8x384xf32>
    %381 = arith.negf %380 : vector<8x384xf32>
    %382 = math.exp %381 : vector<8x384xf32>
    %cst_125 = arith.constant 1.000000e+00 : f32
    %383 = vector.broadcast %cst_125 : f32 to vector<8x384xf32>
    %384 = arith.addf %383, %382 : vector<8x384xf32>
    %385 = arith.divf %383, %384 : vector<8x384xf32>
    %386 = vector.extract_strided_slice %385 {offsets = [0, 0], sizes = [8, 128], strides = [1, 1]} : vector<8x384xf32> to vector<8x128xf32>
    %387 = vector.extract_strided_slice %385 {offsets = [0, 128], sizes = [8, 128], strides = [1, 1]} : vector<8x384xf32> to vector<8x128xf32>
    %388 = vector.extract_strided_slice %385 {offsets = [0, 256], sizes = [8, 128], strides = [1, 1]} : vector<8x384xf32> to vector<8x128xf32>
    %389 = vector.extract_strided_slice %379 {offsets = [0, 384], sizes = [8, 128], strides = [1, 1]} : vector<8x512xf32> to vector<8x128xf32>
    %390 = math.tanh %389 : vector<8x128xf32>
    %391 = arith.mulf %387, %367 : vector<8x128xf32>
    %392 = arith.mulf %386, %390 : vector<8x128xf32>
    %393 = arith.addf %391, %392 : vector<8x128xf32>
    %394 = math.tanh %393 : vector<8x128xf32>
    %395 = arith.mulf %388, %394 : vector<8x128xf32>
    %396 = arith.index_cast %c5_i32_121 : i32 to index
    %c0_126 = arith.constant 0 : index
    %c0_127 = arith.constant 0 : index
    %397 = vector.load %arg5[%396, %c0_126, %c0_127] : memref<8x8x128xf32, #tpu.memory_space<vmem>>, vector<1x8x128xf32>
    %398 = vector.shape_cast %397 : vector<1x8x128xf32> to vector<8x128xf32>
    %399 = vector.shape_cast %395 : vector<8x128xf32> to vector<1x8x128xf32>
    tpu.vector_store %arg5[%396, %c0_126, %c0_127], %399 {strides = array<i32>} : memref<8x8x128xf32, #tpu.memory_space<vmem>>, vector<1x8x128xf32>,
    %c6_i32_128 = arith.constant 6 : i32
    %400 = arith.index_cast %c6_i32_128 : i32 to index
    %c0_129 = arith.constant 0 : index
    %c0_130 = arith.constant 0 : index
    %401 = vector.load %arg8[%400, %c0_129, %c0_130] : memref<8x8x512xf32, #tpu.memory_space<vmem>>, vector<1x8x512xf32>
    %402 = vector.shape_cast %401 : vector<1x8x512xf32> to vector<8x512xf32>
    %403 = arith.truncf %395 : vector<8x128xf32> to vector<8x128xbf16>
    %cst_131 = arith.constant dense<0.000000e+00> : vector<8x512xf32>
    %404 = tpu.matmul %403, %234, %cst_131 {dimension_numbers = #tpu.dot_dimension_numbers<[1], [0], [0], [1], [0, 0, 1, 1], [], []>} : vector<8x128xbf16>, vector<128x512xbf16>, vector<8x512xf32> -> vector<8x512xf32>
    %405 = arith.addf %402, %404 : vector<8x512xf32>
    %406 = vector.extract_strided_slice %405 {offsets = [0, 0], sizes = [8, 384], strides = [1, 1]} : vector<8x512xf32> to vector<8x384xf32>
    %407 = arith.negf %406 : vector<8x384xf32>
    %408 = math.exp %407 : vector<8x384xf32>
    %cst_132 = arith.constant 1.000000e+00 : f32
    %409 = vector.broadcast %cst_132 : f32 to vector<8x384xf32>
    %410 = arith.addf %409, %408 : vector<8x384xf32>
    %411 = arith.divf %409, %410 : vector<8x384xf32>
    %412 = vector.extract_strided_slice %411 {offsets = [0, 0], sizes = [8, 128], strides = [1, 1]} : vector<8x384xf32> to vector<8x128xf32>
    %413 = vector.extract_strided_slice %411 {offsets = [0, 128], sizes = [8, 128], strides = [1, 1]} : vector<8x384xf32> to vector<8x128xf32>
    %414 = vector.extract_strided_slice %411 {offsets = [0, 256], sizes = [8, 128], strides = [1, 1]} : vector<8x384xf32> to vector<8x128xf32>
    %415 = vector.extract_strided_slice %405 {offsets = [0, 384], sizes = [8, 128], strides = [1, 1]} : vector<8x512xf32> to vector<8x128xf32>
    %416 = math.tanh %415 : vector<8x128xf32>
    %417 = arith.mulf %413, %393 : vector<8x128xf32>
    %418 = arith.mulf %412, %416 : vector<8x128xf32>
    %419 = arith.addf %417, %418 : vector<8x128xf32>
    %420 = math.tanh %419 : vector<8x128xf32>
    %421 = arith.mulf %414, %420 : vector<8x128xf32>
    %422 = arith.index_cast %c6_i32_128 : i32 to index
    %c0_133 = arith.constant 0 : index
    %c0_134 = arith.constant 0 : index
    %423 = vector.load %arg5[%422, %c0_133, %c0_134] : memref<8x8x128xf32, #tpu.memory_space<vmem>>, vector<1x8x128xf32>
    %424 = vector.shape_cast %423 : vector<1x8x128xf32> to vector<8x128xf32>
    %425 = vector.shape_cast %421 : vector<8x128xf32> to vector<1x8x128xf32>
    tpu.vector_store %arg5[%422, %c0_133, %c0_134], %425 {strides = array<i32>} : memref<8x8x128xf32, #tpu.memory_space<vmem>>, vector<1x8x128xf32>,
    %c7_i32_135 = arith.constant 7 : i32
    %426 = arith.index_cast %c7_i32_135 : i32 to index
    %c0_136 = arith.constant 0 : index
    %c0_137 = arith.constant 0 : index
    %427 = vector.load %arg8[%426, %c0_136, %c0_137] : memref<8x8x512xf32, #tpu.memory_space<vmem>>, vector<1x8x512xf32>
    %428 = vector.shape_cast %427 : vector<1x8x512xf32> to vector<8x512xf32>
    %429 = arith.truncf %421 : vector<8x128xf32> to vector<8x128xbf16>
    %cst_138 = arith.constant dense<0.000000e+00> : vector<8x512xf32>
    %430 = tpu.matmul %429, %234, %cst_138 {dimension_numbers = #tpu.dot_dimension_numbers<[1], [0], [0], [1], [0, 0, 1, 1], [], []>} : vector<8x128xbf16>, vector<128x512xbf16>, vector<8x512xf32> -> vector<8x512xf32>
    %431 = arith.addf %428, %430 : vector<8x512xf32>
    %432 = vector.extract_strided_slice %431 {offsets = [0, 0], sizes = [8, 384], strides = [1, 1]} : vector<8x512xf32> to vector<8x384xf32>
    %433 = arith.negf %432 : vector<8x384xf32>
    %434 = math.exp %433 : vector<8x384xf32>
    %cst_139 = arith.constant 1.000000e+00 : f32
    %435 = vector.broadcast %cst_139 : f32 to vector<8x384xf32>
    %436 = arith.addf %435, %434 : vector<8x384xf32>
    %437 = arith.divf %435, %436 : vector<8x384xf32>
    %438 = vector.extract_strided_slice %437 {offsets = [0, 0], sizes = [8, 128], strides = [1, 1]} : vector<8x384xf32> to vector<8x128xf32>
    %439 = vector.extract_strided_slice %437 {offsets = [0, 128], sizes = [8, 128], strides = [1, 1]} : vector<8x384xf32> to vector<8x128xf32>
    %440 = vector.extract_strided_slice %437 {offsets = [0, 256], sizes = [8, 128], strides = [1, 1]} : vector<8x384xf32> to vector<8x128xf32>
    %441 = vector.extract_strided_slice %431 {offsets = [0, 384], sizes = [8, 128], strides = [1, 1]} : vector<8x512xf32> to vector<8x128xf32>
    %442 = math.tanh %441 : vector<8x128xf32>
    %443 = arith.mulf %439, %419 : vector<8x128xf32>
    %444 = arith.mulf %438, %442 : vector<8x128xf32>
    %445 = arith.addf %443, %444 : vector<8x128xf32>
    %446 = math.tanh %445 : vector<8x128xf32>
    %447 = arith.mulf %440, %446 : vector<8x128xf32>
    %448 = arith.index_cast %c7_i32_135 : i32 to index
    %c0_140 = arith.constant 0 : index
    %c0_141 = arith.constant 0 : index
    %449 = vector.load %arg5[%448, %c0_140, %c0_141] : memref<8x8x128xf32, #tpu.memory_space<vmem>>, vector<1x8x128xf32>
    %450 = vector.shape_cast %449 : vector<1x8x128xf32> to vector<8x128xf32>
    %451 = vector.shape_cast %447 : vector<8x128xf32> to vector<1x8x128xf32>
    tpu.vector_store %arg5[%448, %c0_140, %c0_141], %451 {strides = array<i32>} : memref<8x8x128xf32, #tpu.memory_space<vmem>>, vector<1x8x128xf32>,
    %c8_i32_142 = arith.constant 8 : i32
    %c1_143 = arith.constant 1 : index
    %c0_144 = arith.constant 0 : index
    %c0_145 = arith.constant 0 : index
    %452 = vector.load %arg6[%c1_143, %c0_144, %c0_145] : memref<2x8x128xf32, #tpu.memory_space<vmem>>, vector<1x8x128xf32>
    %453 = vector.shape_cast %452 : vector<1x8x128xf32> to vector<8x128xf32>
    %454 = vector.shape_cast %447 : vector<8x128xf32> to vector<1x8x128xf32>
    tpu.vector_store %arg6[%c1_143, %c0_144, %c0_145], %454 {strides = array<i32>} : memref<2x8x128xf32, #tpu.memory_space<vmem>>, vector<1x8x128xf32>,
    %c1_146 = arith.constant 1 : index
    %c0_147 = arith.constant 0 : index
    %c0_148 = arith.constant 0 : index
    %455 = vector.load %arg7[%c1_146, %c0_147, %c0_148] : memref<2x8x128xf32, #tpu.memory_space<vmem>>, vector<1x8x128xf32>
    %456 = vector.shape_cast %455 : vector<1x8x128xf32> to vector<8x128xf32>
    %457 = vector.shape_cast %445 : vector<8x128xf32> to vector<1x8x128xf32>
    tpu.vector_store %arg7[%c1_146, %c0_147, %c0_148], %457 {strides = array<i32>} : memref<2x8x128xf32, #tpu.memory_space<vmem>>, vector<1x8x128xf32>,
    return
  }
  func.func @transform_0(%arg0: i32) -> (i32, i32) {
    %c0_i32 = arith.constant 0 : i32
    %c0_i32_0 = arith.constant 0 : i32
    %c0_i32_1 = arith.constant 0 : i32
    return %c0_i32, %c0_i32_0 : i32, i32
  }
  func.func @transform_1(%arg0: i32) -> (i32, i32, i32) {
    %c0_i32 = arith.constant 0 : i32
    %c0_i32_0 = arith.constant 0 : i32
    %c0_i32_1 = arith.constant 0 : i32
    %c0_i32_2 = arith.constant 0 : i32
    return %c0_i32, %c0_i32_0, %c0_i32_1 : i32, i32, i32
  }
  func.func @transform_2(%arg0: i32) -> (i32, i32, i32) {
    %c0_i32 = arith.constant 0 : i32
    %c0_i32_0 = arith.constant 0 : i32
    %c0_i32_1 = arith.constant 0 : i32
    %c0_i32_2 = arith.constant 0 : i32
    return %c0_i32, %c0_i32_0, %c0_i32_1 : i32, i32, i32
  }
  func.func @transform_3(%arg0: i32) -> (i32, i32, i32) {
    %c0_i32 = arith.constant 0 : i32
    %c0_i32_0 = arith.constant 0 : i32
    %c0_i32_1 = arith.constant 0 : i32
    %c0_i32_2 = arith.constant 0 : i32
    return %c0_i32, %c0_i32_0, %c0_i32_1 : i32, i32, i32
  }
  func.func @transform_4(%arg0: i32) -> (i32, i32, i32) {
    %c0_i32 = arith.constant 0 : i32
    %c0_i32_0 = arith.constant 0 : i32
    %c0_i32_1 = arith.constant 0 : i32
    %c0_i32_2 = arith.constant 0 : i32
    return %c0_i32, %c0_i32_0, %c0_i32_1 : i32, i32, i32
  }
  func.func @transform_5(%arg0: i32) -> (i32, i32, i32) {
    %c0_i32 = arith.constant 0 : i32
    %c0_i32_0 = arith.constant 0 : i32
    %c0_i32_1 = arith.constant 0 : i32
    %c0_i32_2 = arith.constant 0 : i32
    return %c0_i32, %c0_i32_0, %c0_i32_1 : i32, i32, i32
  }
  func.func @transform_6(%arg0: i32) -> (i32, i32, i32) {
    %c0_i32 = arith.constant 0 : i32
    %c0_i32_0 = arith.constant 0 : i32
    %c0_i32_1 = arith.constant 0 : i32
    %c0_i32_2 = arith.constant 0 : i32
    return %c0_i32, %c0_i32_0, %c0_i32_1 : i32, i32, i32
  }
}

</mosaic_0001>

<llo_original>
// kernel: tpu_custom_call.1
$region0: #{tpu_custom_call.1}
  #allocation0 [shape = 'u32[]', space=smem, size = 0x4, offset = 0x4, fixed_abs, tag = 'smem constant byte address 0x4 - core index']
  #allocation1 [shape = 'u32[144,128]{1,0:T(1,128)}', space=vmem, size = 0x12000, scoped, tag = 'internal scratch']
  #allocation2 [shape = 'f32[8,8,512]{2,1,0:T(8,128)}', space=vmem, size = 0x20000, scoped, tag = 'scratch operand']
  %s0 = inlined_call_operand.hbm [shape: bf16[64,128], index: 0, kind: input, shape index: {}]
  %s1 = inlined_call_operand.hbm [shape: bf16[2,128,512], index: 1, kind: input, shape index: {}]
  %s2 = inlined_call_operand.hbm [shape: bf16[2,128,512], index: 2, kind: input, shape index: {}]
  %s3 = inlined_call_operand.vmem [shape: f32[2,1,512], index: 3, kind: input, shape index: {}]
  %s4 = inlined_call_operand.hbm [shape: f32[8,8,128], index: 4, kind: output, shape index: {0}]
  %s5 = inlined_call_operand.hbm [shape: f32[2,8,128], index: 5, kind: output, shape index: {1}]
  %s6 = inlined_call_operand.hbm [shape: f32[2,8,128], index: 6, kind: output, shape index: {2}]
  %7 = xla_tuple %s4, %s5, %s6
  %s8 = sld [smem:[#allocation0]]
  $region54: #{tpu_custom_call.1} parent=0
    _
  %s10 = ssub.s32 1, %s8
  %s11 = scalar_select 0, %s10, %s8
  $region1: #{tpu_custom_call.1} parent=0
    #allocation3 [shape = 'u8[16384]{0}', space=vmem, size = 0x4000, scoped, tag = 'input window, operand 0, single buffered']
    #allocation4 [shape = 's32[1]{0}', space=sflag, size = 0x4, scoped, tag = 'scoped memory for tpu_custom_call.1']
    #allocation5 [shape = 's32[1]{0}', space=sflag, size = 0x4, scoped, tag = 'scoped memory for tpu_custom_call.1']
    #allocation6 [shape = 'u8[262144]{0}', space=vmem, size = 0x40000, scoped, tag = 'input window, operand 1, single buffered']
    #allocation7 [shape = 's32[1]{0}', space=sflag, size = 0x4, scoped, tag = 'scoped memory for tpu_custom_call.1']
    #allocation8 [shape = 'u8[262144]{0}', space=vmem, size = 0x40000, scoped, tag = 'input window, operand 2, single buffered']
    #allocation9 [shape = 'u8[32768]{0}', space=vmem, size = 0x8000, scoped, tag = 'output window, operand 0, single buffered']
    #allocation10 [shape = 'u8[8192]{0}', space=vmem, size = 0x2000, scoped, tag = 'output window, operand 1, single buffered']
    #allocation11 [shape = 's32[1]{0}', space=sflag, size = 0x4, scoped, tag = 'scoped memory for tpu_custom_call.1']
    #allocation12 [shape = 'u8[8192]{0}', space=vmem, size = 0x2000, scoped, tag = 'output window, operand 2, single buffered']
    %12 = vsyncpa [#allocation4], 0
    %13 = vsyncpa [#allocation7], 0
    %14 = vsyncpa [#allocation5], 0
    %15 = vsyncpa [#allocation11], 0
    // Predicated region
    $region2: #{tpu_custom_call.1} parent=1 // pred_check
      _
    $region3: #{tpu_custom_call.1} parent=1 // pred_check_branch
      %17 = sbr.rel (0) target = $region5
    $region4: #{tpu_custom_call.1} parent=1 // pred_region
      %s19 = ssub.s32 512, 512
      %20 = vsyncadd [#allocation4], %s19
      %s21 = sshll.u32 [#allocation3], 4
      %s22 = int_to_ptr.vmem [resolvable:$true] %s21
      %27 = dma.hbm_to_vmem [thread:$0]  %s0, 512, %s22, [#allocation4], 64, 64, 4
    $region5: #{tpu_custom_call.1} parent=1 // pred_fallthru
      _
    // Predicated region
    $region6: #{tpu_custom_call.1} parent=1 // pred_check
      _
    $region7: #{tpu_custom_call.1} parent=1 // pred_check_branch
      %29 = sbr.rel (0) target = $region9
    $region8: #{tpu_custom_call.1} parent=1 // pred_region
      %s31 = ssub.s32 8192, 8192
      %32 = vsyncadd [#allocation7], %s31
      %s33 = sshll.u32 [#allocation6], 4
      %s34 = int_to_ptr.vmem [resolvable:$true] %s33
      %39 = dma.hbm_to_vmem [thread:$0]  %s1, 8192, %s34, [#allocation7], 256, 256, 16
    $region9: #{tpu_custom_call.1} parent=1 // pred_fallthru
      _
    // Predicated region
    $region10: #{tpu_custom_call.1} parent=1 // pred_check
      _
    $region11: #{tpu_custom_call.1} parent=1 // pred_check_branch
      %41 = sbr.rel (0) target = $region13
    $region12: #{tpu_custom_call.1} parent=1 // pred_region
      %s43 = ssub.s32 8192, 8192
      %44 = vsyncadd [#allocation7], %s43
      %s45 = sshll.u32 [#allocation8], 4
      %s46 = int_to_ptr.vmem [resolvable:$true] %s45
      %51 = dma.hbm_to_vmem [thread:$0]  %s2, 8192, %s46, [#allocation7], 256, 256, 16
    $region13: #{tpu_custom_call.1} parent=1 // pred_fallthru
      _
    // Predicated region
    $region14: #{tpu_custom_call.1} parent=1 // pred_check
      _
    $region15: #{tpu_custom_call.1} parent=1 // pred_check_branch
      %53 = sbr.rel (0) target = $region17
    $region16: #{tpu_custom_call.1} parent=1 // pred_region
      _
    $region17: #{tpu_custom_call.1} parent=1 // pred_fallthru
      _
    // Predicated region
    $region18: #{tpu_custom_call.1} parent=1 // pred_check
      _
    $region19: #{tpu_custom_call.1} parent=1 // pred_check_branch
      %55 = sbr.rel (0) target = $region21
    $region20: #{tpu_custom_call.1} parent=1 // pred_region
      %56 = dma.done [#allocation4], 512
    $region21: #{tpu_custom_call.1} parent=1 // pred_fallthru
      _
    // Predicated region
    $region22: #{tpu_custom_call.1} parent=1 // pred_check
      _
    $region23: #{tpu_custom_call.1} parent=1 // pred_check_branch
      %58 = sbr.rel (0) target = $region25
    $region24: #{tpu_custom_call.1} parent=1 // pred_region
      %59 = dma.done [#allocation7], 8192
    $region25: #{tpu_custom_call.1} parent=1 // pred_fallthru
      _
    // Predicated region
    $region26: #{tpu_custom_call.1} parent=1 // pred_check
      _
    $region27: #{tpu_custom_call.1} parent=1 // pred_check_branch
      %61 = sbr.rel (0) target = $region29
    $region28: #{tpu_custom_call.1} parent=1 // pred_region
      %62 = dma.done [#allocation7], 8192
    $region29: #{tpu_custom_call.1} parent=1 // pred_fallthru
      _
    %v64 = vld [vmem:[#allocation3] sm:$0xf]
    %v65 = vld [vmem:[#allocation3 + $0x4] sm:$0xf]
    %v66 = vld [vmem:[#allocation3 + $0x8] sm:$0xf]
    %v67 = vld [vmem:[#allocation3 + $0xc] sm:$0xf]
    %v68 = vld [vmem:[#allocation3 + $0x10] sm:$0xf]
    %v69 = vld [vmem:[#allocation3 + $0x14] sm:$0xf]
    %v70 = vld [vmem:[#allocation3 + $0x18] sm:$0xf]
    %v71 = vld [vmem:[#allocation3 + $0x1c] sm:$0xf]
    %v72 = vld [vmem:[#allocation6] sm:$0xff]
    %v73 = vld [vmem:[#allocation6 + $0x8] sm:$0xff]
    %v74 = vld [vmem:[#allocation6 + $0x10] sm:$0xff]
    %v75 = vld [vmem:[#allocation6 + $0x18] sm:$0xff]
    %v76 = vld [vmem:[#allocation6 + $0x20] sm:$0xff]
    %v77 = vld [vmem:[#allocation6 + $0x28] sm:$0xff]
    %v78 = vld [vmem:[#allocation6 + $0x30] sm:$0xff]
    %v79 = vld [vmem:[#allocation6 + $0x38] sm:$0xff]
    %v80 = vld [vmem:[#allocation6 + $0x40] sm:$0xff]
    %v81 = vld [vmem:[#allocation6 + $0x48] sm:$0xff]
    %v82 = vld [vmem:[#allocation6 + $0x50] sm:$0xff]
    %v83 = vld [vmem:[#allocation6 + $0x58] sm:$0xff]
    %v84 = vld [vmem:[#allocation6 + $0x60] sm:$0xff]
    %v85 = vld [vmem:[#allocation6 + $0x68] sm:$0xff]
    %v86 = vld [vmem:[#allocation6 + $0x70] sm:$0xff]
    %v87 = vld [vmem:[#allocation6 + $0x78] sm:$0xff]
    %v88 = vld [vmem:[#allocation6 + $0x80] sm:$0xff]
    %v89 = vld [vmem:[#allocation6 + $0x88] sm:$0xff]
    %v90 = vld [vmem:[#allocation6 + $0x90] sm:$0xff]
    %v91 = vld [vmem:[#allocation6 + $0x98] sm:$0xff]
    %v92 = vld [vmem:[#allocation6 + $0xa0] sm:$0xff]
    %v93 = vld [vmem:[#allocation6 + $0xa8] sm:$0xff]
    %v94 = vld [vmem:[#allocation6 + $0xb0] sm:$0xff]
    %v95 = vld [vmem:[#allocation6 + $0xb8] sm:$0xff]
    %v96 = vld [vmem:[#allocation6 + $0xc0] sm:$0xff]
    %v97 = vld [vmem:[#allocation6 + $0xc8] sm:$0xff]
    %v98 = vld [vmem:[#allocation6 + $0xd0] sm:$0xff]
    %v99 = vld [vmem:[#allocation6 + $0xd8] sm:$0xff]
    %v100 = vld [vmem:[#allocation6 + $0xe0] sm:$0xff]
    %v101 = vld [vmem:[#allocation6 + $0xe8] sm:$0xff]
    %v102 = vld [vmem:[#allocation6 + $0xf0] sm:$0xff]
    %v103 = vld [vmem:[#allocation6 + $0xf8] sm:$0xff]
    %v104 = vld [vmem:[#allocation8] sm:$0xff]
    %v105 = vld [vmem:[#allocation8 + $0x8] sm:$0xff]
    %v106 = vld [vmem:[#allocation8 + $0x10] sm:$0xff]
    %v107 = vld [vmem:[#allocation8 + $0x18] sm:$0xff]
    %v108 = vld [vmem:[#allocation8 + $0x20] sm:$0xff]
    %v109 = vld [vmem:[#allocation8 + $0x28] sm:$0xff]
    %v110 = vld [vmem:[#allocation8 + $0x30] sm:$0xff]
    %v111 = vld [vmem:[#allocation8 + $0x38] sm:$0xff]
    %v112 = vld [vmem:[#allocation8 + $0x40] sm:$0xff]
    %v113 = vld [vmem:[#allocation8 + $0x48] sm:$0xff]
    %v114 = vld [vmem:[#allocation8 + $0x50] sm:$0xff]
    %v115 = vld [vmem:[#allocation8 + $0x58] sm:$0xff]
    %v116 = vld [vmem:[#allocation8 + $0x60] sm:$0xff]
    %v117 = vld [vmem:[#allocation8 + $0x68] sm:$0xff]
    %v118 = vld [vmem:[#allocation8 + $0x70] sm:$0xff]
    %v119 = vld [vmem:[#allocation8 + $0x78] sm:$0xff]
    %v120 = vld [vmem:[#allocation8 + $0x80] sm:$0xff]
    %v121 = vld [vmem:[#allocation8 + $0x88] sm:$0xff]
    %v122 = vld [vmem:[#allocation8 + $0x90] sm:$0xff]
    %v123 = vld [vmem:[#allocation8 + $0x98] sm:$0xff]
    %v124 = vld [vmem:[#allocation8 + $0xa0] sm:$0xff]
    %v125 = vld [vmem:[#allocation8 + $0xa8] sm:$0xff]
    %v126 = vld [vmem:[#allocation8 + $0xb0] sm:$0xff]
    %v127 = vld [vmem:[#allocation8 + $0xb8] sm:$0xff]
    %v128 = vld [vmem:[#allocation8 + $0xc0] sm:$0xff]
    %v129 = vld [vmem:[#allocation8 + $0xc8] sm:$0xff]
    %v130 = vld [vmem:[#allocation8 + $0xd0] sm:$0xff]
    %v131 = vld [vmem:[#allocation8 + $0xd8] sm:$0xff]
    %v132 = vld [vmem:[#allocation8 + $0xe0] sm:$0xff]
    %v133 = vld [vmem:[#allocation8 + $0xe8] sm:$0xff]
    %v134 = vld [vmem:[#allocation8 + $0xf0] sm:$0xff]
    %v135 = vld [vmem:[#allocation8 + $0xf8] sm:$0xff]
    %v136 = vld [vmem:[%s3] sm:$0xf]
    %v138 = vlaneseq
    %v139 = vshrl.u32 %v138, 7
    %v140 = vsub.s32 0, %v139
    %v141 = vrot.slane %v136, %v140
    %v142 = vlaneseq
    %v143 = vshrl.u32 %v142, 7
    %v144 = vsub.s32 1, %v143
    %v145 = vrot.slane %v136, %v144
    %v146 = vlaneseq
    %v147 = vshrl.u32 %v146, 7
    %v148 = vsub.s32 2, %v147
    %v149 = vrot.slane %v136, %v148
    %v150 = vlaneseq
    %v151 = vshrl.u32 %v150, 7
    %v152 = vsub.s32 3, %v151
    %v153 = vrot.slane %v136, %v152
    %v166 = vunpack.c.l.b16 %v64
    %v167 = vunpack.c.l.b16 %v65
    %v168 = vunpack.c.l.b16 %v66
    %v169 = vunpack.c.l.b16 %v67
    %v170 = vunpack.c.l.b16 %v68
    %v171 = vunpack.c.l.b16 %v69
    %v172 = vunpack.c.l.b16 %v70
    %v173 = vunpack.c.l.b16 %v71
    %v174 = vpack.c.b16 %v167, %v166
    %v175 = vpack.c.b16 %v169, %v168
    %v176 = vpack.c.b16 %v171, %v170
    %v177 = vpack.c.b16 %v173, %v172
    %v214 = vunpack.c.l.b16 %v72
    %v215 = vunpack.c.h.b16 %v72
    %v216 = vunpack.c.l.b16 %v73
    %v217 = vunpack.c.h.b16 %v73
    %v218 = vunpack.c.l.b16 %v74
    %v219 = vunpack.c.h.b16 %v74
    %v220 = vunpack.c.l.b16 %v75
    %v221 = vunpack.c.h.b16 %v75
    %v222 = vunpack.c.l.b16 %v76
    %v223 = vunpack.c.h.b16 %v76
    %v224 = vunpack.c.l.b16 %v77
    %v225 = vunpack.c.h.b16 %v77
    %v226 = vunpack.c.l.b16 %v78
    %v227 = vunpack.c.h.b16 %v78
    %v228 = vunpack.c.l.b16 %v79
    %v229 = vunpack.c.h.b16 %v79
    %v230 = vunpack.c.l.b16 %v80
    %v231 = vunpack.c.h.b16 %v80
    %v232 = vunpack.c.l.b16 %v81
    %v233 = vunpack.c.h.b16 %v81
    %v234 = vunpack.c.l.b16 %v82
    %v235 = vunpack.c.h.b16 %v82
    %v236 = vunpack.c.l.b16 %v83
    %v237 = vunpack.c.h.b16 %v83
    %v238 = vunpack.c.l.b16 %v84
    %v239 = vunpack.c.h.b16 %v84
    %v240 = vunpack.c.l.b16 %v85
    %v241 = vunpack.c.h.b16 %v85
    %v242 = vunpack.c.l.b16 %v86
    %v243 = vunpack.c.h.b16 %v86
    %v244 = vunpack.c.l.b16 %v87
    %v245 = vunpack.c.h.b16 %v87
    %v246 = vunpack.c.l.b16 %v88
    %v247 = vunpack.c.h.b16 %v88
    %v248 = vunpack.c.l.b16 %v89
    %v249 = vunpack.c.h.b16 %v89
    %v250 = vunpack.c.l.b16 %v90
    %v251 = vunpack.c.h.b16 %v90
    %v252 = vunpack.c.l.b16 %v91
    %v253 = vunpack.c.h.b16 %v91
    %v254 = vunpack.c.l.b16 %v92
    %v255 = vunpack.c.h.b16 %v92
    %v256 = vunpack.c.l.b16 %v93
    %v257 = vunpack.c.h.b16 %v93
    %v258 = vunpack.c.l.b16 %v94
    %v259 = vunpack.c.h.b16 %v94
    %v260 = vunpack.c.l.b16 %v95
    %v261 = vunpack.c.h.b16 %v95
    %v262 = vunpack.c.l.b16 %v96
    %v263 = vunpack.c.h.b16 %v96
    %v264 = vunpack.c.l.b16 %v97
    %v265 = vunpack.c.h.b16 %v97
    %v266 = vunpack.c.l.b16 %v98
    %v267 = vunpack.c.h.b16 %v98
    %v268 = vunpack.c.l.b16 %v99
    %v269 = vunpack.c.h.b16 %v99
    %v270 = vunpack.c.l.b16 %v100
    %v271 = vunpack.c.h.b16 %v100
    %v272 = vunpack.c.l.b16 %v101
    %v273 = vunpack.c.h.b16 %v101
    %v274 = vunpack.c.l.b16 %v102
    %v275 = vunpack.c.h.b16 %v102
    %v276 = vunpack.c.l.b16 %v103
    %v277 = vunpack.c.h.b16 %v103
    %v278 = vpack.c.b16 %v218, %v214
    %v279 = vpack.c.b16 %v219, %v215
    %v280 = vpack.c.b16 %v220, %v216
    %v281 = vpack.c.b16 %v221, %v217
    %v282 = vpack.c.b16 %v226, %v222
    %v283 = vpack.c.b16 %v227, %v223
    %v284 = vpack.c.b16 %v228, %v224
    %v285 = vpack.c.b16 %v229, %v225
    %v286 = vpack.c.b16 %v234, %v230
    %v287 = vpack.c.b16 %v235, %v231
    %v288 = vpack.c.b16 %v236, %v232
    %v289 = vpack.c.b16 %v237, %v233
    %v290 = vpack.c.b16 %v242, %v238
    %v291 = vpack.c.b16 %v243, %v239
    %v292 = vpack.c.b16 %v244, %v240
    %v293 = vpack.c.b16 %v245, %v241
    %v294 = vpack.c.b16 %v250, %v246
    %v295 = vpack.c.b16 %v251, %v247
    %v296 = vpack.c.b16 %v252, %v248
    %v297 = vpack.c.b16 %v253, %v249
    %v298 = vpack.c.b16 %v258, %v254
    %v299 = vpack.c.b16 %v259, %v255
    %v300 = vpack.c.b16 %v260, %v256
    %v301 = vpack.c.b16 %v261, %v257
    %v302 = vpack.c.b16 %v266, %v262
    %v303 = vpack.c.b16 %v267, %v263
    %v304 = vpack.c.b16 %v268, %v264
    %v305 = vpack.c.b16 %v269, %v265
    %v306 = vpack.c.b16 %v274, %v270
    %v307 = vpack.c.b16 %v275, %v271
    %v308 = vpack.c.b16 %v276, %v272
    %v309 = vpack.c.b16 %v277, %v273
    %342 = vmatprep.subr.bf16.mxu0 %v279
    %343 = vmatpush1.bf16.msra.mxu0 %v278
    %344 = vmatprep.subr.bf16.mxu0 %v283
    %345 = vmatpush1.bf16.msra.mxu0 %v282
    %346 = vmatprep.subr.bf16.mxu0 %v287
    %347 = vmatpush1.bf16.msra.mxu0 %v286
    %348 = vmatprep.subr.bf16.mxu0 %v291
    %349 = vmatpush1.bf16.msra.mxu0 %v290
    %350 = vmatprep.subr.bf16.mxu0 %v295
    %351 = vmatpush1.bf16.msra.mxu0 %v294
    %352 = vmatprep.subr.bf16.mxu0 %v299
    %353 = vmatpush1.bf16.msra.mxu0 %v298
    %354 = vmatprep.subr.bf16.mxu0 %v303
    %355 = vmatpush1.bf16.msra.mxu0 %v302
    %356 = vmatprep.subr.bf16.mxu0 %v307
    %357 = vmatpush1.bf16.msra.mxu0 %v306
    %358 = vmatprep.subr.bf16.mxu0 0
    %359 = vmatpush1.bf16.msra.mxu0 0
    %360 = vmatprep.subr.bf16.mxu0 0
    %361 = vmatpush1.bf16.msra.mxu0 0
    %362 = vmatprep.subr.bf16.mxu0 0
    %363 = vmatpush1.bf16.msra.mxu0 0
    %364 = vmatprep.subr.bf16.mxu0 0
    %365 = vmatpush1.bf16.msra.mxu0 0
    %366 = vmatprep.subr.bf16.mxu0 0
    %367 = vmatpush1.bf16.msra.mxu0 0
    %368 = vmatprep.subr.bf16.mxu0 0
    %369 = vmatpush1.bf16.msra.mxu0 0
    %370 = vmatprep.subr.bf16.mxu0 0
    %371 = vmatpush1.bf16.msra.mxu0 0
    %372 = vmatprep.subr.bf16.mxu0 0
    %373 = vmatpush1.bf16.msra.mxu0 0
    %374 = vmatprep.mubr.bf16.mxu0 0
    %375 = vmatmul.mubr.bf16.gmra.mrb[0].mxu0 %v174
    %v376 = vpop.f32.mrb[0].mxu0
    %v377 = vadd.f32 %v141, %v376
    %v378 = vpop.f32.mrb[0].mxu0
    %v379 = vadd.f32 %v145, %v378
    %v380 = vpop.f32.mrb[0].mxu0
    %v381 = vadd.f32 %v141, %v380
    %v382 = vpop.f32.mrb[0].mxu0
    %v383 = vadd.f32 %v145, %v382
    %384 = vmatprep.mubr.bf16.mxu0 0
    %385 = vmatmul.mubr.bf16.gmra.mrb[0].mxu0 %v175
    %v386 = vpop.f32.mrb[0].mxu0
    %v387 = vadd.f32 %v141, %v386
    %v388 = vpop.f32.mrb[0].mxu0
    %v389 = vadd.f32 %v145, %v388
    %v390 = vpop.f32.mrb[0].mxu0
    %v391 = vadd.f32 %v141, %v390
    %v392 = vpop.f32.mrb[0].mxu0
    %v393 = vadd.f32 %v145, %v392
    %394 = vmatprep.mubr.bf16.mxu0 0
    %395 = vmatmul.mubr.bf16.gmra.mrb[0].mxu0 %v176
    %v396 = vpop.f32.mrb[0].mxu0
    %v397 = vadd.f32 %v141, %v396
    %v398 = vpop.f32.mrb[0].mxu0
    %v399 = vadd.f32 %v145, %v398
    %v400 = vpop.f32.mrb[0].mxu0
    %v401 = vadd.f32 %v141, %v400
    %v402 = vpop.f32.mrb[0].mxu0
    %v403 = vadd.f32 %v145, %v402
    %404 = vmatprep.mubr.bf16.mxu0 0
    %405 = vmatmul.mubr.bf16.gmra.mrb[0].mxu0 %v177
    %v406 = vpop.f32.mrb[0].mxu0
    %v407 = vadd.f32 %v141, %v406
    %v408 = vpop.f32.mrb[0].mxu0
    %v409 = vadd.f32 %v145, %v408
    %v410 = vpop.f32.mrb[0].mxu0
    %v411 = vadd.f32 %v141, %v410
    %v412 = vpop.f32.mrb[0].mxu0
    %v413 = vadd.f32 %v145, %v412
    %414 = vdwg.mxu0
    %415 = vmatprep.subr.bf16.mxu0 %v281
    %416 = vmatpush1.bf16.msra.mxu0 %v280
    %417 = vmatprep.subr.bf16.mxu0 %v285
    %418 = vmatpush1.bf16.msra.mxu0 %v284
    %419 = vmatprep.subr.bf16.mxu0 %v289
    %420 = vmatpush1.bf16.msra.mxu0 %v288
    %421 = vmatprep.subr.bf16.mxu0 %v293
    %422 = vmatpush1.bf16.msra.mxu0 %v292
    %423 = vmatprep.subr.bf16.mxu0 %v297
    %424 = vmatpush1.bf16.msra.mxu0 %v296
    %425 = vmatprep.subr.bf16.mxu0 %v301
    %426 = vmatpush1.bf16.msra.mxu0 %v300
    %427 = vmatprep.subr.bf16.mxu0 %v305
    %428 = vmatpush1.bf16.msra.mxu0 %v304
    %429 = vmatprep.subr.bf16.mxu0 %v309
    %430 = vmatpush1.bf16.msra.mxu0 %v308
    %431 = vmatprep.subr.bf16.mxu0 0
    %432 = vmatpush1.bf16.msra.mxu0 0
    %433 = vmatprep.subr.bf16.mxu0 0
    %434 = vmatpush1.bf16.msra.mxu0 0
    %435 = vmatprep.subr.bf16.mxu0 0
    %436 = vmatpush1.bf16.msra.mxu0 0
    %437 = vmatprep.subr.bf16.mxu0 0
    %438 = vmatpush1.bf16.msra.mxu0 0
    %439 = vmatprep.subr.bf16.mxu0 0
    %440 = vmatpush1.bf16.msra.mxu0 0
    %441 = vmatprep.subr.bf16.mxu0 0
    %442 = vmatpush1.bf16.msra.mxu0 0
    %443 = vmatprep.subr.bf16.mxu0 0
    %444 = vmatpush1.bf16.msra.mxu0 0
    %445 = vmatprep.subr.bf16.mxu0 0
    %446 = vmatpush1.bf16.msra.mxu0 0
    %447 = vmatprep.mubr.bf16.mxu0 0
    %448 = vmatmul.mubr.bf16.gmra.mrb[0].mxu0 %v174
    %v449 = vpop.f32.mrb[0].mxu0
    %v450 = vadd.f32 %v149, %v449
    %v451 = vpop.f32.mrb[0].mxu0
    %v452 = vadd.f32 %v153, %v451
    %v453 = vpop.f32.mrb[0].mxu0
    %v454 = vadd.f32 %v149, %v453
    %v455 = vpop.f32.mrb[0].mxu0
    %v456 = vadd.f32 %v153, %v455
    %457 = vmatprep.mubr.bf16.mxu0 0
    %458 = vmatmul.mubr.bf16.gmra.mrb[0].mxu0 %v175
    %v459 = vpop.f32.mrb[0].mxu0
    %v460 = vadd.f32 %v149, %v459
    %v461 = vpop.f32.mrb[0].mxu0
    %v462 = vadd.f32 %v153, %v461
    %v463 = vpop.f32.mrb[0].mxu0
    %v464 = vadd.f32 %v149, %v463
    %v465 = vpop.f32.mrb[0].mxu0
    %v466 = vadd.f32 %v153, %v465
    %467 = vmatprep.mubr.bf16.mxu0 0
    %468 = vmatmul.mubr.bf16.gmra.mrb[0].mxu0 %v176
    %v469 = vpop.f32.mrb[0].mxu0
    %v470 = vadd.f32 %v149, %v469
    %v471 = vpop.f32.mrb[0].mxu0
    %v472 = vadd.f32 %v153, %v471
    %v473 = vpop.f32.mrb[0].mxu0
    %v474 = vadd.f32 %v149, %v473
    %v475 = vpop.f32.mrb[0].mxu0
    %v476 = vadd.f32 %v153, %v475
    %477 = vmatprep.mubr.bf16.mxu0 0
    %478 = vmatmul.mubr.bf16.gmra.mrb[0].mxu0 %v177
    %v479 = vpop.f32.mrb[0].mxu0
    %v480 = vadd.f32 %v149, %v479
    %v481 = vpop.f32.mrb[0].mxu0
    %v482 = vadd.f32 %v153, %v481
    %v483 = vpop.f32.mrb[0].mxu0
    %v484 = vadd.f32 %v149, %v483
    %v485 = vpop.f32.mrb[0].mxu0
    %v486 = vadd.f32 %v153, %v485
    %487 = vdwg.mxu0
    %488 = vst [vmem:[#allocation2] sm:$0xff] %v377
    %489 = vst [vmem:[#allocation2 + $0x8] sm:$0xff] %v379
    %490 = vst [vmem:[#allocation2 + $0x10] sm:$0xff] %v450
    %491 = vst [vmem:[#allocation2 + $0x18] sm:$0xff] %v452
    %492 = vst [vmem:[#allocation2 + $0x20] sm:$0xff] %v381
    %493 = vst [vmem:[#allocation2 + $0x28] sm:$0xff] %v383
    %494 = vst [vmem:[#allocation2 + $0x30] sm:$0xff] %v454
    %495 = vst [vmem:[#allocation2 + $0x38] sm:$0xff] %v456
    %496 = vst [vmem:[#allocation2 + $0x40] sm:$0xff] %v387
    %497 = vst [vmem:[#allocation2 + $0x48] sm:$0xff] %v389
    %498 = vst [vmem:[#allocation2 + $0x50] sm:$0xff] %v460
    %499 = vst [vmem:[#allocation2 + $0x58] sm:$0xff] %v462
    %500 = vst [vmem:[#allocation2 + $0x60] sm:$0xff] %v391
    %501 = vst [vmem:[#allocation2 + $0x68] sm:$0xff] %v393
    %502 = vst [vmem:[#allocation2 + $0x70] sm:$0xff] %v464
    %503 = vst [vmem:[#allocation2 + $0x78] sm:$0xff] %v466
    %504 = vst [vmem:[#allocation2 + $0x80] sm:$0xff] %v397
    %505 = vst [vmem:[#allocation2 + $0x88] sm:$0xff] %v399
    %506 = vst [vmem:[#allocation2 + $0x90] sm:$0xff] %v470
    %507 = vst [vmem:[#allocation2 + $0x98] sm:$0xff] %v472
    %508 = vst [vmem:[#allocation2 + $0xa0] sm:$0xff] %v401
    %509 = vst [vmem:[#allocation2 + $0xa8] sm:$0xff] %v403
    %510 = vst [vmem:[#allocation2 + $0xb0] sm:$0xff] %v474
    %511 = vst [vmem:[#allocation2 + $0xb8] sm:$0xff] %v476
    %512 = vst [vmem:[#allocation2 + $0xc0] sm:$0xff] %v407
    %513 = vst [vmem:[#allocation2 + $0xc8] sm:$0xff] %v409
    %514 = vst [vmem:[#allocation2 + $0xd0] sm:$0xff] %v480
    %515 = vst [vmem:[#allocation2 + $0xd8] sm:$0xff] %v482
    %516 = vst [vmem:[#allocation2 + $0xe0] sm:$0xff] %v411
    %517 = vst [vmem:[#allocation2 + $0xe8] sm:$0xff] %v413
    %518 = vst [vmem:[#allocation2 + $0xf0] sm:$0xff] %v484
    %519 = vst [vmem:[#allocation2 + $0xf8] sm:$0xff] %v486
    %v520 = vld [vmem:[#allocation2] sm:$0xff]
    %v521 = vld [vmem:[#allocation2 + $0x8] sm:$0xff]
    %v522 = vld [vmem:[#allocation2 + $0x10] sm:$0xff]
    %v523 = vld [vmem:[#allocation2 + $0x18] sm:$0xff]
    %v556 = vunpack.c.l.b16 %v104
    %v557 = vunpack.c.h.b16 %v104
    %v558 = vunpack.c.l.b16 %v105
    %v559 = vunpack.c.h.b16 %v105
    %v560 = vunpack.c.l.b16 %v106
    %v561 = vunpack.c.h.b16 %v106
    %v562 = vunpack.c.l.b16 %v107
    %v563 = vunpack.c.h.b16 %v107
    %v564 = vunpack.c.l.b16 %v108
    %v565 = vunpack.c.h.b16 %v108
    %v566 = vunpack.c.l.b16 %v109
    %v567 = vunpack.c.h.b16 %v109
    %v568 = vunpack.c.l.b16 %v110
    %v569 = vunpack.c.h.b16 %v110
    %v570 = vunpack.c.l.b16 %v111
    %v571 = vunpack.c.h.b16 %v111
    %v572 = vunpack.c.l.b16 %v112
    %v573 = vunpack.c.h.b16 %v112
    %v574 = vunpack.c.l.b16 %v113
    %v575 = vunpack.c.h.b16 %v113
    %v576 = vunpack.c.l.b16 %v114
    %v577 = vunpack.c.h.b16 %v114
    %v578 = vunpack.c.l.b16 %v115
    %v579 = vunpack.c.h.b16 %v115
    %v580 = vunpack.c.l.b16 %v116
    %v581 = vunpack.c.h.b16 %v116
    %v582 = vunpack.c.l.b16 %v117
    %v583 = vunpack.c.h.b16 %v117
    %v584 = vunpack.c.l.b16 %v118
    %v585 = vunpack.c.h.b16 %v118
    %v586 = vunpack.c.l.b16 %v119
    %v587 = vunpack.c.h.b16 %v119
    %v588 = vunpack.c.l.b16 %v120
    %v589 = vunpack.c.h.b16 %v120
    %v590 = vunpack.c.l.b16 %v121
    %v591 = vunpack.c.h.b16 %v121
    %v592 = vunpack.c.l.b16 %v122
    %v593 = vunpack.c.h.b16 %v122
    %v594 = vunpack.c.l.b16 %v123
    %v595 = vunpack.c.h.b16 %v123
    %v596 = vunpack.c.l.b16 %v124
    %v597 = vunpack.c.h.b16 %v124
    %v598 = vunpack.c.l.b16 %v125
    %v599 = vunpack.c.h.b16 %v125
    %v600 = vunpack.c.l.b16 %v126
    %v601 = vunpack.c.h.b16 %v126
    %v602 = vunpack.c.l.b16 %v127
    %v603 = vunpack.c.h.b16 %v127
    %v604 = vunpack.c.l.b16 %v128
    %v605 = vunpack.c.h.b16 %v128
    %v606 = vunpack.c.l.b16 %v129
    %v607 = vunpack.c.h.b16 %v129
    %v608 = vunpack.c.l.b16 %v130
    %v609 = vunpack.c.h.b16 %v130
    %v610 = vunpack.c.l.b16 %v131
    %v611 = vunpack.c.h.b16 %v131
    %v612 = vunpack.c.l.b16 %v132
    %v613 = vunpack.c.h.b16 %v132
    %v614 = vunpack.c.l.b16 %v133
    %v615 = vunpack.c.h.b16 %v133
    %v616 = vunpack.c.l.b16 %v134
    %v617 = vunpack.c.h.b16 %v134
    %v618 = vunpack.c.l.b16 %v135
    %v619 = vunpack.c.h.b16 %v135
    %v620 = vpack.c.b16 %v560, %v556
    %v621 = vpack.c.b16 %v561, %v557
    %v622 = vpack.c.b16 %v562, %v558
    %v623 = vpack.c.b16 %v563, %v559
    %v624 = vpack.c.b16 %v568, %v564
    %v625 = vpack.c.b16 %v569, %v565
    %v626 = vpack.c.b16 %v570, %v566
    %v627 = vpack.c.b16 %v571, %v567
    %v628 = vpack.c.b16 %v576, %v572
    %v629 = vpack.c.b16 %v577, %v573
    %v630 = vpack.c.b16 %v578, %v574
    %v631 = vpack.c.b16 %v579, %v575
    %v632 = vpack.c.b16 %v584, %v580
    %v633 = vpack.c.b16 %v585, %v581
    %v634 = vpack.c.b16 %v586, %v582
    %v635 = vpack.c.b16 %v587, %v583
    %v636 = vpack.c.b16 %v592, %v588
    %v637 = vpack.c.b16 %v593, %v589
    %v638 = vpack.c.b16 %v594, %v590
    %v639 = vpack.c.b16 %v595, %v591
    %v640 = vpack.c.b16 %v600, %v596
    %v641 = vpack.c.b16 %v601, %v597
    %v642 = vpack.c.b16 %v602, %v598
    %v643 = vpack.c.b16 %v603, %v599
    %v644 = vpack.c.b16 %v608, %v604
    %v645 = vpack.c.b16 %v609, %v605
    %v646 = vpack.c.b16 %v610, %v606
    %v647 = vpack.c.b16 %v611, %v607
    %v648 = vpack.c.b16 %v616, %v612
    %v649 = vpack.c.b16 %v617, %v613
    %v650 = vpack.c.b16 %v618, %v614
    %v651 = vpack.c.b16 %v619, %v615
    %684 = vmatprep.subr.bf16.mxu0 %v621
    %685 = vmatpush1.bf16.msra.mxu0 %v620
    %686 = vmatprep.subr.bf16.mxu0 %v625
    %687 = vmatpush1.bf16.msra.mxu0 %v624
    %688 = vmatprep.subr.bf16.mxu0 %v629
    %689 = vmatpush1.bf16.msra.mxu0 %v628
    %690 = vmatprep.subr.bf16.mxu0 %v633
    %691 = vmatpush1.bf16.msra.mxu0 %v632
    %692 = vmatprep.subr.bf16.mxu0 %v637
    %693 = vmatpush1.bf16.msra.mxu0 %v636
    %694 = vmatprep.subr.bf16.mxu0 %v641
    %695 = vmatpush1.bf16.msra.mxu0 %v640
    %696 = vmatprep.subr.bf16.mxu0 %v645
    %697 = vmatpush1.bf16.msra.mxu0 %v644
    %698 = vmatprep.subr.bf16.mxu0 %v649
    %699 = vmatpush1.bf16.msra.mxu0 %v648
    %700 = vmatprep.subr.bf16.mxu0 0
    %701 = vmatpush1.bf16.msra.mxu0 0
    %702 = vmatprep.subr.bf16.mxu0 0
    %703 = vmatpush1.bf16.msra.mxu0 0
    %704 = vmatprep.subr.bf16.mxu0 0
    %705 = vmatpush1.bf16.msra.mxu0 0
    %706 = vmatprep.subr.bf16.mxu0 0
    %707 = vmatpush1.bf16.msra.mxu0 0
    %708 = vmatprep.subr.bf16.mxu0 0
    %709 = vmatpush1.bf16.msra.mxu0 0
    %710 = vmatprep.subr.bf16.mxu0 0
    %711 = vmatpush1.bf16.msra.mxu0 0
    %712 = vmatprep.subr.bf16.mxu0 0
    %713 = vmatpush1.bf16.msra.mxu0 0
    %714 = vmatprep.subr.bf16.mxu0 0
    %715 = vmatpush1.bf16.msra.mxu0 0
    %716 = vmatprep.mubr.bf16.mxu0 0
    %717 = vmatmul.mubr.bf16.gmra.mrb[0].mxu0 0
    %v718 = vpop.f32.mrb[0].mxu0
    %v719 = vadd.f32 0.0, %v718
    %v720 = vpop.f32.mrb[0].mxu0
    %v721 = vadd.f32 0.0, %v720
    %v722 = vpop.f32.mrb[0].mxu0
    %v723 = vpop.f32.mrb[0].mxu0
    %724 = vdwg.mxu0
    %725 = vmatprep.subr.bf16.mxu0 %v623
    %726 = vmatpush1.bf16.msra.mxu0 %v622
    %727 = vmatprep.subr.bf16.mxu0 %v627
    %728 = vmatpush1.bf16.msra.mxu0 %v626
    %729 = vmatprep.subr.bf16.mxu0 %v631
    %730 = vmatpush1.bf16.msra.mxu0 %v630
    %731 = vmatprep.subr.bf16.mxu0 %v635
    %732 = vmatpush1.bf16.msra.mxu0 %v634
    %733 = vmatprep.subr.bf16.mxu0 %v639
    %734 = vmatpush1.bf16.msra.mxu0 %v638
    %735 = vmatprep.subr.bf16.mxu0 %v643
    %736 = vmatpush1.bf16.msra.mxu0 %v642
    %737 = vmatprep.subr.bf16.mxu0 %v647
    %738 = vmatpush1.bf16.msra.mxu0 %v646
    %739 = vmatprep.subr.bf16.mxu0 %v651
    %740 = vmatpush1.bf16.msra.mxu0 %v650
    %741 = vmatprep.subr.bf16.mxu0 0
    %742 = vmatpush1.bf16.msra.mxu0 0
    %743 = vmatprep.subr.bf16.mxu0 0
    %744 = vmatpush1.bf16.msra.mxu0 0
    %745 = vmatprep.subr.bf16.mxu0 0
    %746 = vmatpush1.bf16.msra.mxu0 0
    %747 = vmatprep.subr.bf16.mxu0 0
    %748 = vmatpush1.bf16.msra.mxu0 0
    %749 = vmatprep.subr.bf16.mxu0 0
    %750 = vmatpush1.bf16.msra.mxu0 0
    %751 = vmatprep.subr.bf16.mxu0 0
    %752 = vmatpush1.bf16.msra.mxu0 0
    %753 = vmatprep.subr.bf16.mxu0 0
    %754 = vmatpush1.bf16.msra.mxu0 0
    %755 = vmatprep.subr.bf16.mxu0 0
    %756 = vmatpush1.bf16.msra.mxu0 0
    %757 = vmatprep.mubr.bf16.mxu0 0
    %758 = vmatmul.mubr.bf16.gmra.mrb[0].mxu0 0
    %v759 = vpop.f32.mrb[0].mxu0
    %v760 = vadd.f32 0.0, %v759
    %v761 = vpop.f32.mrb[0].mxu0
    %v762 = vadd.f32 0.0, %v761
    %v763 = vpop.f32.mrb[0].mxu0
    %v764 = vpop.f32.mrb[0].mxu0
    %765 = vdwg.mxu0
    %v766 = vadd.f32 %v520, %v719
    %v767 = vadd.f32 %v521, %v721
    %v768 = vadd.f32 %v522, %v760
    %v769 = vadd.f32 %v523, %v762
    %v770 = vxor.u32 %v766, 2147483648
    %v771 = vxor.u32 %v767, 2147483648
    %v772 = vxor.u32 %v768, 2147483648
    %v773 = vmul.f32 %v770, 1.442695
    %v774 = vpow.pop %v773
    %v775 = vmul.f32 %v771, 1.442695
    %v776 = vpow.pop %v775
    %v777 = vmul.f32 %v772, 1.442695
    %v778 = vpow.pop %v777
    %v779 = vadd.f32 %v774, 1.0
    %v780 = vadd.f32 %v776, 1.0
    %v781 = vadd.f32 %v778, 1.0
    %v782 = vrcp.pop %v779
    %v783 = vmul.f32 1.0, %v782
    %v784 = vrcp.pop %v780
    %v785 = vmul.f32 1.0, %v784
    %v786 = vrcp.pop %v781
    %v787 = vmul.f32 1.0, %v786
    %v788 = vtanh.pop %v769
    %v789 = vmul.f32 %v785, 0.0
    %v790 = vmul.f32 %v783, %v788
    %v791 = vadd.f32 %v789, %v790
    %v792 = vtanh.pop %v791
    %v793 = vmul.f32 %v787, %v792
    %794 = vst [vmem:[#allocation9] sm:$0xff] %v793
    %s795 = scalar_lea.vmem [#allocation2], 32
    %v796 = vld [vmem:[%s795] sm:$0xff]
    %v797 = vld [vmem:[%s795 + $0x8] sm:$0xff]
    %v798 = vld [vmem:[%s795 + $0x10] sm:$0xff]
    %v799 = vld [vmem:[%s795 + $0x18] sm:$0xff]
    %v800 = vpack.c.bf16 %v793, %v793
    %801 = vmatprep.subr.bf16.mxu0 %v621
    %802 = vmatpush1.bf16.msra.mxu0 %v620
    %803 = vmatprep.subr.bf16.mxu0 %v625
    %804 = vmatpush1.bf16.msra.mxu0 %v624
    %805 = vmatprep.subr.bf16.mxu0 %v629
    %806 = vmatpush1.bf16.msra.mxu0 %v628
    %807 = vmatprep.subr.bf16.mxu0 %v633
    %808 = vmatpush1.bf16.msra.mxu0 %v632
    %809 = vmatprep.subr.bf16.mxu0 %v637
    %810 = vmatpush1.bf16.msra.mxu0 %v636
    %811 = vmatprep.subr.bf16.mxu0 %v641
    %812 = vmatpush1.bf16.msra.mxu0 %v640
    %813 = vmatprep.subr.bf16.mxu0 %v645
    %814 = vmatpush1.bf16.msra.mxu0 %v644
    %815 = vmatprep.subr.bf16.mxu0 %v649
    %816 = vmatpush1.bf16.msra.mxu0 %v648
    %817 = vmatprep.subr.bf16.mxu0 0
    %818 = vmatpush1.bf16.msra.mxu0 0
    %819 = vmatprep.subr.bf16.mxu0 0
    %820 = vmatpush1.bf16.msra.mxu0 0
    %821 = vmatprep.subr.bf16.mxu0 0
    %822 = vmatpush1.bf16.msra.mxu0 0
    %823 = vmatprep.subr.bf16.mxu0 0
    %824 = vmatpush1.bf16.msra.mxu0 0
    %825 = vmatprep.subr.bf16.mxu0 0
    %826 = vmatpush1.bf16.msra.mxu0 0
    %827 = vmatprep.subr.bf16.mxu0 0
    %828 = vmatpush1.bf16.msra.mxu0 0
    %829 = vmatprep.subr.bf16.mxu0 0
    %830 = vmatpush1.bf16.msra.mxu0 0
    %831 = vmatprep.subr.bf16.mxu0 0
    %832 = vmatpush1.bf16.msra.mxu0 0
    %833 = vmatprep.mubr.bf16.mxu0 0
    %834 = vmatmul.mubr.bf16.gmra.mrb[0].mxu0 %v800
    %v835 = vpop.f32.mrb[0].mxu0
    %v836 = vadd.f32 0.0, %v835
    %v837 = vpop.f32.mrb[0].mxu0
    %v838 = vadd.f32 0.0, %v837
    %v839 = vpop.f32.mrb[0].mxu0
    %v840 = vpop.f32.mrb[0].mxu0
    %841 = vdwg.mxu0
    %842 = vmatprep.subr.bf16.mxu0 %v623
    %843 = vmatpush1.bf16.msra.mxu0 %v622
    %844 = vmatprep.subr.bf16.mxu0 %v627
    %845 = vmatpush1.bf16.msra.mxu0 %v626
    %846 = vmatprep.subr.bf16.mxu0 %v631
    %847 = vmatpush1.bf16.msra.mxu0 %v630
    %848 = vmatprep.subr.bf16.mxu0 %v635
    %849 = vmatpush1.bf16.msra.mxu0 %v634
    %850 = vmatprep.subr.bf16.mxu0 %v639
    %851 = vmatpush1.bf16.msra.mxu0 %v638
    %852 = vmatprep.subr.bf16.mxu0 %v643
    %853 = vmatpush1.bf16.msra.mxu0 %v642
    %854 = vmatprep.subr.bf16.mxu0 %v647
    %855 = vmatpush1.bf16.msra.mxu0 %v646
    %856 = vmatprep.subr.bf16.mxu0 %v651
    %857 = vmatpush1.bf16.msra.mxu0 %v650
    %858 = vmatprep.subr.bf16.mxu0 0
    %859 = vmatpush1.bf16.msra.mxu0 0
    %860 = vmatprep.subr.bf16.mxu0 0
    %861 = vmatpush1.bf16.msra.mxu0 0
    %862 = vmatprep.subr.bf16.mxu0 0
    %863 = vmatpush1.bf16.msra.mxu0 0
    %864 = vmatprep.subr.bf16.mxu0 0
    %865 = vmatpush1.bf16.msra.mxu0 0
    %866 = vmatprep.subr.bf16.mxu0 0
    %867 = vmatpush1.bf16.msra.mxu0 0
    %868 = vmatprep.subr.bf16.mxu0 0
    %869 = vmatpush1.bf16.msra.mxu0 0
    %870 = vmatprep.subr.bf16.mxu0 0
    %871 = vmatpush1.bf16.msra.mxu0 0
    %872 = vmatprep.subr.bf16.mxu0 0
    %873 = vmatpush1.bf16.msra.mxu0 0
    %874 = vmatprep.mubr.bf16.mxu0 0
    %875 = vmatmul.mubr.bf16.gmra.mrb[0].mxu0 %v800
    %v876 = vpop.f32.mrb[0].mxu0
    %v877 = vadd.f32 0.0, %v876
    %v878 = vpop.f32.mrb[0].mxu0
    %v879 = vadd.f32 0.0, %v878
    %v880 = vpop.f32.mrb[0].mxu0
    %v881 = vpop.f32.mrb[0].mxu0
    %882 = vdwg.mxu0
    %v883 = vadd.f32 %v796, %v836
    %v884 = vadd.f32 %v797, %v838
    %v885 = vadd.f32 %v798, %v877
    %v886 = vadd.f32 %v799, %v879
    %v887 = vxor.u32 %v883, 2147483648
    %v888 = vxor.u32 %v884, 2147483648
    %v889 = vxor.u32 %v885, 2147483648
    %v890 = vmul.f32 %v887, 1.442695
    %v891 = vpow.pop %v890
    %v892 = vmul.f32 %v888, 1.442695
    %v893 = vpow.pop %v892
    %v894 = vmul.f32 %v889, 1.442695
    %v895 = vpow.pop %v894
    %v896 = vadd.f32 %v891, 1.0
    %v897 = vadd.f32 %v893, 1.0
    %v898 = vadd.f32 %v895, 1.0
    %v899 = vrcp.pop %v896
    %v900 = vmul.f32 1.0, %v899
    %v901 = vrcp.pop %v897
    %v902 = vmul.f32 1.0, %v901
    %v903 = vrcp.pop %v898
    %v904 = vmul.f32 1.0, %v903
    %v905 = vtanh.pop %v886
    %v906 = vmul.f32 %v902, %v791
    %v907 = vmul.f32 %v900, %v905
    %v908 = vadd.f32 %v906, %v907
    %v909 = vtanh.pop %v908
    %v910 = vmul.f32 %v904, %v909
    %s911 = scalar_lea.vmem [#allocation9], 8
    %912 = vst [vmem:[%s911] sm:$0xff] %v910
    %s913 = scalar_lea.vmem [#allocation2], 64
    %v914 = vld [vmem:[%s913] sm:$0xff]
    %v915 = vld [vmem:[%s913 + $0x8] sm:$0xff]
    %v916 = vld [vmem:[%s913 + $0x10] sm:$0xff]
    %v917 = vld [vmem:[%s913 + $0x18] sm:$0xff]
    %v918 = vpack.c.bf16 %v910, %v910
    %919 = vmatprep.subr.bf16.mxu0 %v621
    %920 = vmatpush1.bf16.msra.mxu0 %v620
    %921 = vmatprep.subr.bf16.mxu0 %v625
    %922 = vmatpush1.bf16.msra.mxu0 %v624
    %923 = vmatprep.subr.bf16.mxu0 %v629
    %924 = vmatpush1.bf16.msra.mxu0 %v628
    %925 = vmatprep.subr.bf16.mxu0 %v633
    %926 = vmatpush1.bf16.msra.mxu0 %v632
    %927 = vmatprep.subr.bf16.mxu0 %v637
    %928 = vmatpush1.bf16.msra.mxu0 %v636
    %929 = vmatprep.subr.bf16.mxu0 %v641
    %930 = vmatpush1.bf16.msra.mxu0 %v640
    %931 = vmatprep.subr.bf16.mxu0 %v645
    %932 = vmatpush1.bf16.msra.mxu0 %v644
    %933 = vmatprep.subr.bf16.mxu0 %v649
    %934 = vmatpush1.bf16.msra.mxu0 %v648
    %935 = vmatprep.subr.bf16.mxu0 0
    %936 = vmatpush1.bf16.msra.mxu0 0
    %937 = vmatprep.subr.bf16.mxu0 0
    %938 = vmatpush1.bf16.msra.mxu0 0
    %939 = vmatprep.subr.bf16.mxu0 0
    %940 = vmatpush1.bf16.msra.mxu0 0
    %941 = vmatprep.subr.bf16.mxu0 0
    %942 = vmatpush1.bf16.msra.mxu0 0
    %943 = vmatprep.subr.bf16.mxu0 0
    %944 = vmatpush1.bf16.msra.mxu0 0
    %945 = vmatprep.subr.bf16.mxu0 0
    %946 = vmatpush1.bf16.msra.mxu0 0
    %947 = vmatprep.subr.bf16.mxu0 0
    %948 = vmatpush1.bf16.msra.mxu0 0
    %949 = vmatprep.subr.bf16.mxu0 0
    %950 = vmatpush1.bf16.msra.mxu0 0
    %951 = vmatprep.mubr.bf16.mxu0 0
    %952 = vmatmul.mubr.bf16.gmra.mrb[0].mxu0 %v918
    %v953 = vpop.f32.mrb[0].mxu0
    %v954 = vadd.f32 0.0, %v953
    %v955 = vpop.f32.mrb[0].mxu0
    %v956 = vadd.f32 0.0, %v955
    %v957 = vpop.f32.mrb[0].mxu0
    %v958 = vpop.f32.mrb[0].mxu0
    %959 = vdwg.mxu0
    %960 = vmatprep.subr.bf16.mxu0 %v623
    %961 = vmatpush1.bf16.msra.mxu0 %v622
    %962 = vmatprep.subr.bf16.mxu0 %v627
    %963 = vmatpush1.bf16.msra.mxu0 %v626
    %964 = vmatprep.subr.bf16.mxu0 %v631
    %965 = vmatpush1.bf16.msra.mxu0 %v630
    %966 = vmatprep.subr.bf16.mxu0 %v635
    %967 = vmatpush1.bf16.msra.mxu0 %v634
    %968 = vmatprep.subr.bf16.mxu0 %v639
    %969 = vmatpush1.bf16.msra.mxu0 %v638
    %970 = vmatprep.subr.bf16.mxu0 %v643
    %971 = vmatpush1.bf16.msra.mxu0 %v642
    %972 = vmatprep.subr.bf16.mxu0 %v647
    %973 = vmatpush1.bf16.msra.mxu0 %v646
    %974 = vmatprep.subr.bf16.mxu0 %v651
    %975 = vmatpush1.bf16.msra.mxu0 %v650
    %976 = vmatprep.subr.bf16.mxu0 0
    %977 = vmatpush1.bf16.msra.mxu0 0
    %978 = vmatprep.subr.bf16.mxu0 0
    %979 = vmatpush1.bf16.msra.mxu0 0
    %980 = vmatprep.subr.bf16.mxu0 0
    %981 = vmatpush1.bf16.msra.mxu0 0
    %982 = vmatprep.subr.bf16.mxu0 0
    %983 = vmatpush1.bf16.msra.mxu0 0
    %984 = vmatprep.subr.bf16.mxu0 0
    %985 = vmatpush1.bf16.msra.mxu0 0
    %986 = vmatprep.subr.bf16.mxu0 0
    %987 = vmatpush1.bf16.msra.mxu0 0
    %988 = vmatprep.subr.bf16.mxu0 0
    %989 = vmatpush1.bf16.msra.mxu0 0
    %990 = vmatprep.subr.bf16.mxu0 0
    %991 = vmatpush1.bf16.msra.mxu0 0
    %992 = vmatprep.mubr.bf16.mxu0 0
    %993 = vmatmul.mubr.bf16.gmra.mrb[0].mxu0 %v918
    %v994 = vpop.f32.mrb[0].mxu0
    %v995 = vadd.f32 0.0, %v994
    %v996 = vpop.f32.mrb[0].mxu0
    %v997 = vadd.f32 0.0, %v996
    %v998 = vpop.f32.mrb[0].mxu0
    %v999 = vpop.f32.mrb[0].mxu0
    %1000 = vdwg.mxu0
    %v1001 = vadd.f32 %v914, %v954
    %v1002 = vadd.f32 %v915, %v956
    %v1003 = vadd.f32 %v916, %v995
    %v1004 = vadd.f32 %v917, %v997
    %v1005 = vxor.u32 %v1001, 2147483648
    %v1006 = vxor.u32 %v1002, 2147483648
    %v1007 = vxor.u32 %v1003, 2147483648
    %v1008 = vmul.f32 %v1005, 1.442695
    %v1009 = vpow.pop %v1008
    %v1010 = vmul.f32 %v1006, 1.442695
    %v1011 = vpow.pop %v1010
    %v1012 = vmul.f32 %v1007, 1.442695
    %v1013 = vpow.pop %v1012
    %v1014 = vadd.f32 %v1009, 1.0
    %v1015 = vadd.f32 %v1011, 1.0
    %v1016 = vadd.f32 %v1013, 1.0
    %v1017 = vrcp.pop %v1014
    %v1018 = vmul.f32 1.0, %v1017
    %v1019 = vrcp.pop %v1015
    %v1020 = vmul.f32 1.0, %v1019
    %v1021 = vrcp.pop %v1016
    %v1022 = vmul.f32 1.0, %v1021
    %v1023 = vtanh.pop %v1004
    %v1024 = vmul.f32 %v1020, %v908
    %v1025 = vmul.f32 %v1018, %v1023
    %v1026 = vadd.f32 %v1024, %v1025
    %v1027 = vtanh.pop %v1026
    %v1028 = vmul.f32 %v1022, %v1027
    %s1029 = scalar_lea.vmem [#allocation9], 16
    %1030 = vst [vmem:[%s1029] sm:$0xff] %v1028
    %s1031 = scalar_lea.vmem [#allocation2], 96
    %v1032 = vld [vmem:[%s1031] sm:$0xff]
    %v1033 = vld [vmem:[%s1031 + $0x8] sm:$0xff]
    %v1034 = vld [vmem:[%s1031 + $0x10] sm:$0xff]
    %v1035 = vld [vmem:[%s1031 + $0x18] sm:$0xff]
    %v1036 = vpack.c.bf16 %v1028, %v1028
    %1037 = vmatprep.subr.bf16.mxu0 %v621
    %1038 = vmatpush1.bf16.msra.mxu0 %v620
    %1039 = vmatprep.subr.bf16.mxu0 %v625
    %1040 = vmatpush1.bf16.msra.mxu0 %v624
    %1041 = vmatprep.subr.bf16.mxu0 %v629
    %1042 = vmatpush1.bf16.msra.mxu0 %v628
    %1043 = vmatprep.subr.bf16.mxu0 %v633
    %1044 = vmatpush1.bf16.msra.mxu0 %v632
    %1045 = vmatprep.subr.bf16.mxu0 %v637
    %1046 = vmatpush1.bf16.msra.mxu0 %v636
    %1047 = vmatprep.subr.bf16.mxu0 %v641
    %1048 = vmatpush1.bf16.msra.mxu0 %v640
    %1049 = vmatprep.subr.bf16.mxu0 %v645
    %1050 = vmatpush1.bf16.msra.mxu0 %v644
    %1051 = vmatprep.subr.bf16.mxu0 %v649
    %1052 = vmatpush1.bf16.msra.mxu0 %v648
    %1053 = vmatprep.subr.bf16.mxu0 0
    %1054 = vmatpush1.bf16.msra.mxu0 0
    %1055 = vmatprep.subr.bf16.mxu0 0
    %1056 = vmatpush1.bf16.msra.mxu0 0
    %1057 = vmatprep.subr.bf16.mxu0 0
    %1058 = vmatpush1.bf16.msra.mxu0 0
    %1059 = vmatprep.subr.bf16.mxu0 0
    %1060 = vmatpush1.bf16.msra.mxu0 0
    %1061 = vmatprep.subr.bf16.mxu0 0
    %1062 = vmatpush1.bf16.msra.mxu0 0
    %1063 = vmatprep.subr.bf16.mxu0 0
    %1064 = vmatpush1.bf16.msra.mxu0 0
    %1065 = vmatprep.subr.bf16.mxu0 0
    %1066 = vmatpush1.bf16.msra.mxu0 0
    %1067 = vmatprep.subr.bf16.mxu0 0
    %1068 = vmatpush1.bf16.msra.mxu0 0
    %1069 = vmatprep.mubr.bf16.mxu0 0
    %1070 = vmatmul.mubr.bf16.gmra.mrb[0].mxu0 %v1036
    %v1071 = vpop.f32.mrb[0].mxu0
    %v1072 = vadd.f32 0.0, %v1071
    %v1073 = vpop.f32.mrb[0].mxu0
    %v1074 = vadd.f32 0.0, %v1073
    %v1075 = vpop.f32.mrb[0].mxu0
    %v1076 = vpop.f32.mrb[0].mxu0
    %1077 = vdwg.mxu0
    %1078 = vmatprep.subr.bf16.mxu0 %v623
    %1079 = vmatpush1.bf16.msra.mxu0 %v622
    %1080 = vmatprep.subr.bf16.mxu0 %v627
    %1081 = vmatpush1.bf16.msra.mxu0 %v626
    %1082 = vmatprep.subr.bf16.mxu0 %v631
    %1083 = vmatpush1.bf16.msra.mxu0 %v630
    %1084 = vmatprep.subr.bf16.mxu0 %v635
    %1085 = vmatpush1.bf16.msra.mxu0 %v634
    %1086 = vmatprep.subr.bf16.mxu0 %v639
    %1087 = vmatpush1.bf16.msra.mxu0 %v638
    %1088 = vmatprep.subr.bf16.mxu0 %v643
    %1089 = vmatpush1.bf16.msra.mxu0 %v642
    %1090 = vmatprep.subr.bf16.mxu0 %v647
    %1091 = vmatpush1.bf16.msra.mxu0 %v646
    %1092 = vmatprep.subr.bf16.mxu0 %v651
    %1093 = vmatpush1.bf16.msra.mxu0 %v650
    %1094 = vmatprep.subr.bf16.mxu0 0
    %1095 = vmatpush1.bf16.msra.mxu0 0
    %1096 = vmatprep.subr.bf16.mxu0 0
    %1097 = vmatpush1.bf16.msra.mxu0 0
    %1098 = vmatprep.subr.bf16.mxu0 0
    %1099 = vmatpush1.bf16.msra.mxu0 0
    %1100 = vmatprep.subr.bf16.mxu0 0
    %1101 = vmatpush1.bf16.msra.mxu0 0
    %1102 = vmatprep.subr.bf16.mxu0 0
    %1103 = vmatpush1.bf16.msra.mxu0 0
    %1104 = vmatprep.subr.bf16.mxu0 0
    %1105 = vmatpush1.bf16.msra.mxu0 0
    %1106 = vmatprep.subr.bf16.mxu0 0
    %1107 = vmatpush1.bf16.msra.mxu0 0
    %1108 = vmatprep.subr.bf16.mxu0 0
    %1109 = vmatpush1.bf16.msra.mxu0 0
    %1110 = vmatprep.mubr.bf16.mxu0 0
    %1111 = vmatmul.mubr.bf16.gmra.mrb[0].mxu0 %v1036
    %v1112 = vpop.f32.mrb[0].mxu0
    %v1113 = vadd.f32 0.0, %v1112
    %v1114 = vpop.f32.mrb[0].mxu0
    %v1115 = vadd.f32 0.0, %v1114
    %v1116 = vpop.f32.mrb[0].mxu0
    %v1117 = vpop.f32.mrb[0].mxu0
    %1118 = vdwg.mxu0
    %v1119 = vadd.f32 %v1032, %v1072
    %v1120 = vadd.f32 %v1033, %v1074
    %v1121 = vadd.f32 %v1034, %v1113
    %v1122 = vadd.f32 %v1035, %v1115
    %v1123 = vxor.u32 %v1119, 2147483648
    %v1124 = vxor.u32 %v1120, 2147483648
    %v1125 = vxor.u32 %v1121, 2147483648
    %v1126 = vmul.f32 %v1123, 1.442695
    %v1127 = vpow.pop %v1126
    %v1128 = vmul.f32 %v1124, 1.442695
    %v1129 = vpow.pop %v1128
    %v1130 = vmul.f32 %v1125, 1.442695
    %v1131 = vpow.pop %v1130
    %v1132 = vadd.f32 %v1127, 1.0
    %v1133 = vadd.f32 %v1129, 1.0
    %v1134 = vadd.f32 %v1131, 1.0
    %v1135 = vrcp.pop %v1132
    %v1136 = vmul.f32 1.0, %v1135
    %v1137 = vrcp.pop %v1133
    %v1138 = vmul.f32 1.0, %v1137
    %v1139 = vrcp.pop %v1134
    %v1140 = vmul.f32 1.0, %v1139
    %v1141 = vtanh.pop %v1122
    %v1142 = vmul.f32 %v1138, %v1026
    %v1143 = vmul.f32 %v1136, %v1141
    %v1144 = vadd.f32 %v1142, %v1143
    %v1145 = vtanh.pop %v1144
    %v1146 = vmul.f32 %v1140, %v1145
    %s1147 = scalar_lea.vmem [#allocation9], 24
    %1148 = vst [vmem:[%s1147] sm:$0xff] %v1146
    %s1149 = scalar_lea.vmem [#allocation2], 128
    %v1150 = vld [vmem:[%s1149] sm:$0xff]
    %v1151 = vld [vmem:[%s1149 + $0x8] sm:$0xff]
    %v1152 = vld [vmem:[%s1149 + $0x10] sm:$0xff]
    %v1153 = vld [vmem:[%s1149 + $0x18] sm:$0xff]
    %v1154 = vpack.c.bf16 %v1146, %v1146
    %1155 = vmatprep.subr.bf16.mxu0 %v621
    %1156 = vmatpush1.bf16.msra.mxu0 %v620
    %1157 = vmatprep.subr.bf16.mxu0 %v625
    %1158 = vmatpush1.bf16.msra.mxu0 %v624
    %1159 = vmatprep.subr.bf16.mxu0 %v629
    %1160 = vmatpush1.bf16.msra.mxu0 %v628
    %1161 = vmatprep.subr.bf16.mxu0 %v633
    %1162 = vmatpush1.bf16.msra.mxu0 %v632
    %1163 = vmatprep.subr.bf16.mxu0 %v637
    %1164 = vmatpush1.bf16.msra.mxu0 %v636
    %1165 = vmatprep.subr.bf16.mxu0 %v641
    %1166 = vmatpush1.bf16.msra.mxu0 %v640
    %1167 = vmatprep.subr.bf16.mxu0 %v645
    %1168 = vmatpush1.bf16.msra.mxu0 %v644
    %1169 = vmatprep.subr.bf16.mxu0 %v649
    %1170 = vmatpush1.bf16.msra.mxu0 %v648
    %1171 = vmatprep.subr.bf16.mxu0 0
    %1172 = vmatpush1.bf16.msra.mxu0 0
    %1173 = vmatprep.subr.bf16.mxu0 0
    %1174 = vmatpush1.bf16.msra.mxu0 0
    %1175 = vmatprep.subr.bf16.mxu0 0
    %1176 = vmatpush1.bf16.msra.mxu0 0
    %1177 = vmatprep.subr.bf16.mxu0 0
    %1178 = vmatpush1.bf16.msra.mxu0 0
    %1179 = vmatprep.subr.bf16.mxu0 0
    %1180 = vmatpush1.bf16.msra.mxu0 0
    %1181 = vmatprep.subr.bf16.mxu0 0
    %1182 = vmatpush1.bf16.msra.mxu0 0
    %1183 = vmatprep.subr.bf16.mxu0 0
    %1184 = vmatpush1.bf16.msra.mxu0 0
    %1185 = vmatprep.subr.bf16.mxu0 0
    %1186 = vmatpush1.bf16.msra.mxu0 0
    %1187 = vmatprep.mubr.bf16.mxu0 0
    %1188 = vmatmul.mubr.bf16.gmra.mrb[0].mxu0 %v1154
    %v1189 = vpop.f32.mrb[0].mxu0
    %v1190 = vadd.f32 0.0, %v1189
    %v1191 = vpop.f32.mrb[0].mxu0
    %v1192 = vadd.f32 0.0, %v1191
    %v1193 = vpop.f32.mrb[0].mxu0
    %v1194 = vpop.f32.mrb[0].mxu0
    %1195 = vdwg.mxu0
    %1196 = vmatprep.subr.bf16.mxu0 %v623
    %1197 = vmatpush1.bf16.msra.mxu0 %v622
    %1198 = vmatprep.subr.bf16.mxu0 %v627
    %1199 = vmatpush1.bf16.msra.mxu0 %v626
    %1200 = vmatprep.subr.bf16.mxu0 %v631
    %1201 = vmatpush1.bf16.msra.mxu0 %v630
    %1202 = vmatprep.subr.bf16.mxu0 %v635
    %1203 = vmatpush1.bf16.msra.mxu0 %v634
    %1204 = vmatprep.subr.bf16.mxu0 %v639
    %1205 = vmatpush1.bf16.msra.mxu0 %v638
    %1206 = vmatprep.subr.bf16.mxu0 %v643
    %1207 = vmatpush1.bf16.msra.mxu0 %v642
    %1208 = vmatprep.subr.bf16.mxu0 %v647
    %1209 = vmatpush1.bf16.msra.mxu0 %v646
    %1210 = vmatprep.subr.bf16.mxu0 %v651
    %1211 = vmatpush1.bf16.msra.mxu0 %v650
    %1212 = vmatprep.subr.bf16.mxu0 0
    %1213 = vmatpush1.bf16.msra.mxu0 0
    %1214 = vmatprep.subr.bf16.mxu0 0
    %1215 = vmatpush1.bf16.msra.mxu0 0
    %1216 = vmatprep.subr.bf16.mxu0 0
    %1217 = vmatpush1.bf16.msra.mxu0 0
    %1218 = vmatprep.subr.bf16.mxu0 0
    %1219 = vmatpush1.bf16.msra.mxu0 0
    %1220 = vmatprep.subr.bf16.mxu0 0
    %1221 = vmatpush1.bf16.msra.mxu0 0
    %1222 = vmatprep.subr.bf16.mxu0 0
    %1223 = vmatpush1.bf16.msra.mxu0 0
    %1224 = vmatprep.subr.bf16.mxu0 0
    %1225 = vmatpush1.bf16.msra.mxu0 0
    %1226 = vmatprep.subr.bf16.mxu0 0
    %1227 = vmatpush1.bf16.msra.mxu0 0
    %1228 = vmatprep.mubr.bf16.mxu0 0
    %1229 = vmatmul.mubr.bf16.gmra.mrb[0].mxu0 %v1154
    %v1230 = vpop.f32.mrb[0].mxu0
    %v1231 = vadd.f32 0.0, %v1230
    %v1232 = vpop.f32.mrb[0].mxu0
    %v1233 = vadd.f32 0.0, %v1232
    %v1234 = vpop.f32.mrb[0].mxu0
    %v1235 = vpop.f32.mrb[0].mxu0
    %1236 = vdwg.mxu0
    %v1237 = vadd.f32 %v1150, %v1190
    %v1238 = vadd.f32 %v1151, %v1192
    %v1239 = vadd.f32 %v1152, %v1231
    %v1240 = vadd.f32 %v1153, %v1233
    %v1241 = vxor.u32 %v1237, 2147483648
    %v1242 = vxor.u32 %v1238, 2147483648
    %v1243 = vxor.u32 %v1239, 2147483648
    %v1244 = vmul.f32 %v1241, 1.442695
    %v1245 = vpow.pop %v1244
    %v1246 = vmul.f32 %v1242, 1.442695
    %v1247 = vpow.pop %v1246
    %v1248 = vmul.f32 %v1243, 1.442695
    %v1249 = vpow.pop %v1248
    %v1250 = vadd.f32 %v1245, 1.0
    %v1251 = vadd.f32 %v1247, 1.0
    %v1252 = vadd.f32 %v1249, 1.0
    %v1253 = vrcp.pop %v1250
    %v1254 = vmul.f32 1.0, %v1253
    %v1255 = vrcp.pop %v1251
    %v1256 = vmul.f32 1.0, %v1255
    %v1257 = vrcp.pop %v1252
    %v1258 = vmul.f32 1.0, %v1257
    %v1259 = vtanh.pop %v1240
    %v1260 = vmul.f32 %v1256, %v1144
    %v1261 = vmul.f32 %v1254, %v1259
    %v1262 = vadd.f32 %v1260, %v1261
    %v1263 = vtanh.pop %v1262
    %v1264 = vmul.f32 %v1258, %v1263
    %s1265 = scalar_lea.vmem [#allocation9], 32
    %1266 = vst [vmem:[%s1265] sm:$0xff] %v1264
    %s1267 = scalar_lea.vmem [#allocation2], 160
    %v1268 = vld [vmem:[%s1267] sm:$0xff]
    %v1269 = vld [vmem:[%s1267 + $0x8] sm:$0xff]
    %v1270 = vld [vmem:[%s1267 + $0x10] sm:$0xff]
    %v1271 = vld [vmem:[%s1267 + $0x18] sm:$0xff]
    %v1272 = vpack.c.bf16 %v1264, %v1264
    %1273 = vmatprep.subr.bf16.mxu0 %v621
    %1274 = vmatpush1.bf16.msra.mxu0 %v620
    %1275 = vmatprep.subr.bf16.mxu0 %v625
    %1276 = vmatpush1.bf16.msra.mxu0 %v624
    %1277 = vmatprep.subr.bf16.mxu0 %v629
    %1278 = vmatpush1.bf16.msra.mxu0 %v628
    %1279 = vmatprep.subr.bf16.mxu0 %v633
    %1280 = vmatpush1.bf16.msra.mxu0 %v632
    %1281 = vmatprep.subr.bf16.mxu0 %v637
    %1282 = vmatpush1.bf16.msra.mxu0 %v636
    %1283 = vmatprep.subr.bf16.mxu0 %v641
    %1284 = vmatpush1.bf16.msra.mxu0 %v640
    %1285 = vmatprep.subr.bf16.mxu0 %v645
    %1286 = vmatpush1.bf16.msra.mxu0 %v644
    %1287 = vmatprep.subr.bf16.mxu0 %v649
    %1288 = vmatpush1.bf16.msra.mxu0 %v648
    %1289 = vmatprep.subr.bf16.mxu0 0
    %1290 = vmatpush1.bf16.msra.mxu0 0
    %1291 = vmatprep.subr.bf16.mxu0 0
    %1292 = vmatpush1.bf16.msra.mxu0 0
    %1293 = vmatprep.subr.bf16.mxu0 0
    %1294 = vmatpush1.bf16.msra.mxu0 0
    %1295 = vmatprep.subr.bf16.mxu0 0
    %1296 = vmatpush1.bf16.msra.mxu0 0
    %1297 = vmatprep.subr.bf16.mxu0 0
    %1298 = vmatpush1.bf16.msra.mxu0 0
    %1299 = vmatprep.subr.bf16.mxu0 0
    %1300 = vmatpush1.bf16.msra.mxu0 0
    %1301 = vmatprep.subr.bf16.mxu0 0
    %1302 = vmatpush1.bf16.msra.mxu0 0
    %1303 = vmatprep.subr.bf16.mxu0 0
    %1304 = vmatpush1.bf16.msra.mxu0 0
    %1305 = vmatprep.mubr.bf16.mxu0 0
    %1306 = vmatmul.mubr.bf16.gmra.mrb[0].mxu0 %v1272
    %v1307 = vpop.f32.mrb[0].mxu0
    %v1308 = vadd.f32 0.0, %v1307
    %v1309 = vpop.f32.mrb[0].mxu0
    %v1310 = vadd.f32 0.0, %v1309
    %v1311 = vpop.f32.mrb[0].mxu0
    %v1312 = vpop.f32.mrb[0].mxu0
    %1313 = vdwg.mxu0
    %1314 = vmatprep.subr.bf16.mxu0 %v623
    %1315 = vmatpush1.bf16.msra.mxu0 %v622
    %1316 = vmatprep.subr.bf16.mxu0 %v627
    %1317 = vmatpush1.bf16.msra.mxu0 %v626
    %1318 = vmatprep.subr.bf16.mxu0 %v631
    %1319 = vmatpush1.bf16.msra.mxu0 %v630
    %1320 = vmatprep.subr.bf16.mxu0 %v635
    %1321 = vmatpush1.bf16.msra.mxu0 %v634
    %1322 = vmatprep.subr.bf16.mxu0 %v639
    %1323 = vmatpush1.bf16.msra.mxu0 %v638
    %1324 = vmatprep.subr.bf16.mxu0 %v643
    %1325 = vmatpush1.bf16.msra.mxu0 %v642
    %1326 = vmatprep.subr.bf16.mxu0 %v647
    %1327 = vmatpush1.bf16.msra.mxu0 %v646
    %1328 = vmatprep.subr.bf16.mxu0 %v651
    %1329 = vmatpush1.bf16.msra.mxu0 %v650
    %1330 = vmatprep.subr.bf16.mxu0 0
    %1331 = vmatpush1.bf16.msra.mxu0 0
    %1332 = vmatprep.subr.bf16.mxu0 0
    %1333 = vmatpush1.bf16.msra.mxu0 0
    %1334 = vmatprep.subr.bf16.mxu0 0
    %1335 = vmatpush1.bf16.msra.mxu0 0
    %1336 = vmatprep.subr.bf16.mxu0 0
    %1337 = vmatpush1.bf16.msra.mxu0 0
    %1338 = vmatprep.subr.bf16.mxu0 0
    %1339 = vmatpush1.bf16.msra.mxu0 0
    %1340 = vmatprep.subr.bf16.mxu0 0
    %1341 = vmatpush1.bf16.msra.mxu0 0
    %1342 = vmatprep.subr.bf16.mxu0 0
    %1343 = vmatpush1.bf16.msra.mxu0 0
    %1344 = vmatprep.subr.bf16.mxu0 0
    %1345 = vmatpush1.bf16.msra.mxu0 0
    %1346 = vmatprep.mubr.bf16.mxu0 0
    %1347 = vmatmul.mubr.bf16.gmra.mrb[0].mxu0 %v1272
    %v1348 = vpop.f32.mrb[0].mxu0
    %v1349 = vadd.f32 0.0, %v1348
    %v1350 = vpop.f32.mrb[0].mxu0
    %v1351 = vadd.f32 0.0, %v1350
    %v1352 = vpop.f32.mrb[0].mxu0
    %v1353 = vpop.f32.mrb[0].mxu0
    %1354 = vdwg.mxu0
    %v1355 = vadd.f32 %v1268, %v1308
    %v1356 = vadd.f32 %v1269, %v1310
    %v1357 = vadd.f32 %v1270, %v1349
    %v1358 = vadd.f32 %v1271, %v1351
    %v1359 = vxor.u32 %v1355, 2147483648
    %v1360 = vxor.u32 %v1356, 2147483648
    %v1361 = vxor.u32 %v1357, 2147483648
    %v1362 = vmul.f32 %v1359, 1.442695
    %v1363 = vpow.pop %v1362
    %v1364 = vmul.f32 %v1360, 1.442695
    %v1365 = vpow.pop %v1364
    %v1366 = vmul.f32 %v1361, 1.442695
    %v1367 = vpow.pop %v1366
    %v1368 = vadd.f32 %v1363, 1.0
    %v1369 = vadd.f32 %v1365, 1.0
    %v1370 = vadd.f32 %v1367, 1.0
    %v1371 = vrcp.pop %v1368
    %v1372 = vmul.f32 1.0, %v1371
    %v1373 = vrcp.pop %v1369
    %v1374 = vmul.f32 1.0, %v1373
    %v1375 = vrcp.pop %v1370
    %v1376 = vmul.f32 1.0, %v1375
    %v1377 = vtanh.pop %v1358
    %v1378 = vmul.f32 %v1374, %v1262
    %v1379 = vmul.f32 %v1372, %v1377
    %v1380 = vadd.f32 %v1378, %v1379
    %v1381 = vtanh.pop %v1380
    %v1382 = vmul.f32 %v1376, %v1381
    %s1383 = scalar_lea.vmem [#allocation9], 40
    %1384 = vst [vmem:[%s1383] sm:$0xff] %v1382
    %s1385 = scalar_lea.vmem [#allocation2], 192
    %v1386 = vld [vmem:[%s1385] sm:$0xff]
    %v1387 = vld [vmem:[%s1385 + $0x8] sm:$0xff]
    %v1388 = vld [vmem:[%s1385 + $0x10] sm:$0xff]
    %v1389 = vld [vmem:[%s1385 + $0x18] sm:$0xff]
    %v1390 = vpack.c.bf16 %v1382, %v1382
    %1391 = vmatprep.subr.bf16.mxu0 %v621
    %1392 = vmatpush1.bf16.msra.mxu0 %v620
    %1393 = vmatprep.subr.bf16.mxu0 %v625
    %1394 = vmatpush1.bf16.msra.mxu0 %v624
    %1395 = vmatprep.subr.bf16.mxu0 %v629
    %1396 = vmatpush1.bf16.msra.mxu0 %v628
    %1397 = vmatprep.subr.bf16.mxu0 %v633
    %1398 = vmatpush1.bf16.msra.mxu0 %v632
    %1399 = vmatprep.subr.bf16.mxu0 %v637
    %1400 = vmatpush1.bf16.msra.mxu0 %v636
    %1401 = vmatprep.subr.bf16.mxu0 %v641
    %1402 = vmatpush1.bf16.msra.mxu0 %v640
    %1403 = vmatprep.subr.bf16.mxu0 %v645
    %1404 = vmatpush1.bf16.msra.mxu0 %v644
    %1405 = vmatprep.subr.bf16.mxu0 %v649
    %1406 = vmatpush1.bf16.msra.mxu0 %v648
    %1407 = vmatprep.subr.bf16.mxu0 0
    %1408 = vmatpush1.bf16.msra.mxu0 0
    %1409 = vmatprep.subr.bf16.mxu0 0
    %1410 = vmatpush1.bf16.msra.mxu0 0
    %1411 = vmatprep.subr.bf16.mxu0 0
    %1412 = vmatpush1.bf16.msra.mxu0 0
    %1413 = vmatprep.subr.bf16.mxu0 0
    %1414 = vmatpush1.bf16.msra.mxu0 0
    %1415 = vmatprep.subr.bf16.mxu0 0
    %1416 = vmatpush1.bf16.msra.mxu0 0
    %1417 = vmatprep.subr.bf16.mxu0 0
    %1418 = vmatpush1.bf16.msra.mxu0 0
    %1419 = vmatprep.subr.bf16.mxu0 0
    %1420 = vmatpush1.bf16.msra.mxu0 0
    %1421 = vmatprep.subr.bf16.mxu0 0
    %1422 = vmatpush1.bf16.msra.mxu0 0
    %1423 = vmatprep.mubr.bf16.mxu0 0
    %1424 = vmatmul.mubr.bf16.gmra.mrb[0].mxu0 %v1390
    %v1425 = vpop.f32.mrb[0].mxu0
    %v1426 = vadd.f32 0.0, %v1425
    %v1427 = vpop.f32.mrb[0].mxu0
    %v1428 = vadd.f32 0.0, %v1427
    %v1429 = vpop.f32.mrb[0].mxu0
    %v1430 = vpop.f32.mrb[0].mxu0
    %1431 = vdwg.mxu0
    %1432 = vmatprep.subr.bf16.mxu0 %v623
    %1433 = vmatpush1.bf16.msra.mxu0 %v622
    %1434 = vmatprep.subr.bf16.mxu0 %v627
    %1435 = vmatpush1.bf16.msra.mxu0 %v626
    %1436 = vmatprep.subr.bf16.mxu0 %v631
    %1437 = vmatpush1.bf16.msra.mxu0 %v630
    %1438 = vmatprep.subr.bf16.mxu0 %v635
    %1439 = vmatpush1.bf16.msra.mxu0 %v634
    %1440 = vmatprep.subr.bf16.mxu0 %v639
    %1441 = vmatpush1.bf16.msra.mxu0 %v638
    %1442 = vmatprep.subr.bf16.mxu0 %v643
    %1443 = vmatpush1.bf16.msra.mxu0 %v642
    %1444 = vmatprep.subr.bf16.mxu0 %v647
    %1445 = vmatpush1.bf16.msra.mxu0 %v646
    %1446 = vmatprep.subr.bf16.mxu0 %v651
    %1447 = vmatpush1.bf16.msra.mxu0 %v650
    %1448 = vmatprep.subr.bf16.mxu0 0
    %1449 = vmatpush1.bf16.msra.mxu0 0
    %1450 = vmatprep.subr.bf16.mxu0 0
    %1451 = vmatpush1.bf16.msra.mxu0 0
    %1452 = vmatprep.subr.bf16.mxu0 0
    %1453 = vmatpush1.bf16.msra.mxu0 0
    %1454 = vmatprep.subr.bf16.mxu0 0
    %1455 = vmatpush1.bf16.msra.mxu0 0
    %1456 = vmatprep.subr.bf16.mxu0 0
    %1457 = vmatpush1.bf16.msra.mxu0 0
    %1458 = vmatprep.subr.bf16.mxu0 0
    %1459 = vmatpush1.bf16.msra.mxu0 0
    %1460 = vmatprep.subr.bf16.mxu0 0
    %1461 = vmatpush1.bf16.msra.mxu0 0
    %1462 = vmatprep.subr.bf16.mxu0 0
    %1463 = vmatpush1.bf16.msra.mxu0 0
    %1464 = vmatprep.mubr.bf16.mxu0 0
    %1465 = vmatmul.mubr.bf16.gmra.mrb[0].mxu0 %v1390
    %v1466 = vpop.f32.mrb[0].mxu0
    %v1467 = vadd.f32 0.0, %v1466
    %v1468 = vpop.f32.mrb[0].mxu0
    %v1469 = vadd.f32 0.0, %v1468
    %v1470 = vpop.f32.mrb[0].mxu0
    %v1471 = vpop.f32.mrb[0].mxu0
    %1472 = vdwg.mxu0
    %v1473 = vadd.f32 %v1386, %v1426
    %v1474 = vadd.f32 %v1387, %v1428
    %v1475 = vadd.f32 %v1388, %v1467
    %v1476 = vadd.f32 %v1389, %v1469
    %v1477 = vxor.u32 %v1473, 2147483648
    %v1478 = vxor.u32 %v1474, 2147483648
    %v1479 = vxor.u32 %v1475, 2147483648
    %v1480 = vmul.f32 %v1477, 1.442695
    %v1481 = vpow.pop %v1480
    %v1482 = vmul.f32 %v1478, 1.442695
    %v1483 = vpow.pop %v1482
    %v1484 = vmul.f32 %v1479, 1.442695
    %v1485 = vpow.pop %v1484
    %v1486 = vadd.f32 %v1481, 1.0
    %v1487 = vadd.f32 %v1483, 1.0
    %v1488 = vadd.f32 %v1485, 1.0
    %v1489 = vrcp.pop %v1486
    %v1490 = vmul.f32 1.0, %v1489
    %v1491 = vrcp.pop %v1487
    %v1492 = vmul.f32 1.0, %v1491
    %v1493 = vrcp.pop %v1488
    %v1494 = vmul.f32 1.0, %v1493
    %v1495 = vtanh.pop %v1476
    %v1496 = vmul.f32 %v1492, %v1380
    %v1497 = vmul.f32 %v1490, %v1495
    %v1498 = vadd.f32 %v1496, %v1497
    %v1499 = vtanh.pop %v1498
    %v1500 = vmul.f32 %v1494, %v1499
    %s1501 = scalar_lea.vmem [#allocation9], 48
    %1502 = vst [vmem:[%s1501] sm:$0xff] %v1500
    %s1503 = scalar_lea.vmem [#allocation2], 224
    %v1504 = vld [vmem:[%s1503] sm:$0xff]
    %v1505 = vld [vmem:[%s1503 + $0x8] sm:$0xff]
    %v1506 = vld [vmem:[%s1503 + $0x10] sm:$0xff]
    %v1507 = vld [vmem:[%s1503 + $0x18] sm:$0xff]
    %v1508 = vpack.c.bf16 %v1500, %v1500
    %1509 = vmatprep.subr.bf16.mxu0 %v621
    %1510 = vmatpush1.bf16.msra.mxu0 %v620
    %1511 = vmatprep.subr.bf16.mxu0 %v625
    %1512 = vmatpush1.bf16.msra.mxu0 %v624
    %1513 = vmatprep.subr.bf16.mxu0 %v629
    %1514 = vmatpush1.bf16.msra.mxu0 %v628
    %1515 = vmatprep.subr.bf16.mxu0 %v633
    %1516 = vmatpush1.bf16.msra.mxu0 %v632
    %1517 = vmatprep.subr.bf16.mxu0 %v637
    %1518 = vmatpush1.bf16.msra.mxu0 %v636
    %1519 = vmatprep.subr.bf16.mxu0 %v641
    %1520 = vmatpush1.bf16.msra.mxu0 %v640
    %1521 = vmatprep.subr.bf16.mxu0 %v645
    %1522 = vmatpush1.bf16.msra.mxu0 %v644
    %1523 = vmatprep.subr.bf16.mxu0 %v649
    %1524 = vmatpush1.bf16.msra.mxu0 %v648
    %1525 = vmatprep.subr.bf16.mxu0 0
    %1526 = vmatpush1.bf16.msra.mxu0 0
    %1527 = vmatprep.subr.bf16.mxu0 0
    %1528 = vmatpush1.bf16.msra.mxu0 0
    %1529 = vmatprep.subr.bf16.mxu0 0
    %1530 = vmatpush1.bf16.msra.mxu0 0
    %1531 = vmatprep.subr.bf16.mxu0 0
    %1532 = vmatpush1.bf16.msra.mxu0 0
    %1533 = vmatprep.subr.bf16.mxu0 0
    %1534 = vmatpush1.bf16.msra.mxu0 0
    %1535 = vmatprep.subr.bf16.mxu0 0
    %1536 = vmatpush1.bf16.msra.mxu0 0
    %1537 = vmatprep.subr.bf16.mxu0 0
    %1538 = vmatpush1.bf16.msra.mxu0 0
    %1539 = vmatprep.subr.bf16.mxu0 0
    %1540 = vmatpush1.bf16.msra.mxu0 0
    %1541 = vmatprep.mubr.bf16.mxu0 0
    %1542 = vmatmul.mubr.bf16.gmra.mrb[0].mxu0 %v1508
    %v1543 = vpop.f32.mrb[0].mxu0
    %v1544 = vadd.f32 0.0, %v1543
    %v1545 = vpop.f32.mrb[0].mxu0
    %v1546 = vadd.f32 0.0, %v1545
    %v1547 = vpop.f32.mrb[0].mxu0
    %v1548 = vpop.f32.mrb[0].mxu0
    %1549 = vdwg.mxu0
    %1550 = vmatprep.subr.bf16.mxu0 %v623
    %1551 = vmatpush1.bf16.msra.mxu0 %v622
    %1552 = vmatprep.subr.bf16.mxu0 %v627
    %1553 = vmatpush1.bf16.msra.mxu0 %v626
    %1554 = vmatprep.subr.bf16.mxu0 %v631
    %1555 = vmatpush1.bf16.msra.mxu0 %v630
    %1556 = vmatprep.subr.bf16.mxu0 %v635
    %1557 = vmatpush1.bf16.msra.mxu0 %v634
    %1558 = vmatprep.subr.bf16.mxu0 %v639
    %1559 = vmatpush1.bf16.msra.mxu0 %v638
    %1560 = vmatprep.subr.bf16.mxu0 %v643
    %1561 = vmatpush1.bf16.msra.mxu0 %v642
    %1562 = vmatprep.subr.bf16.mxu0 %v647
    %1563 = vmatpush1.bf16.msra.mxu0 %v646
    %1564 = vmatprep.subr.bf16.mxu0 %v651
    %1565 = vmatpush1.bf16.msra.mxu0 %v650
    %1566 = vmatprep.subr.bf16.mxu0 0
    %1567 = vmatpush1.bf16.msra.mxu0 0
    %1568 = vmatprep.subr.bf16.mxu0 0
    %1569 = vmatpush1.bf16.msra.mxu0 0
    %1570 = vmatprep.subr.bf16.mxu0 0
    %1571 = vmatpush1.bf16.msra.mxu0 0
    %1572 = vmatprep.subr.bf16.mxu0 0
    %1573 = vmatpush1.bf16.msra.mxu0 0
    %1574 = vmatprep.subr.bf16.mxu0 0
    %1575 = vmatpush1.bf16.msra.mxu0 0
    %1576 = vmatprep.subr.bf16.mxu0 0
    %1577 = vmatpush1.bf16.msra.mxu0 0
    %1578 = vmatprep.subr.bf16.mxu0 0
    %1579 = vmatpush1.bf16.msra.mxu0 0
    %1580 = vmatprep.subr.bf16.mxu0 0
    %1581 = vmatpush1.bf16.msra.mxu0 0
    %1582 = vmatprep.mubr.bf16.mxu0 0
    %1583 = vmatmul.mubr.bf16.gmra.mrb[0].mxu0 %v1508
    %v1584 = vpop.f32.mrb[0].mxu0
    %v1585 = vadd.f32 0.0, %v1584
    %v1586 = vpop.f32.mrb[0].mxu0
    %v1587 = vadd.f32 0.0, %v1586
    %v1588 = vpop.f32.mrb[0].mxu0
    %v1589 = vpop.f32.mrb[0].mxu0
    %1590 = vdwg.mxu0
    %v1591 = vadd.f32 %v1504, %v1544
    %v1592 = vadd.f32 %v1505, %v1546
    %v1593 = vadd.f32 %v1506, %v1585
    %v1594 = vadd.f32 %v1507, %v1587
    %v1595 = vxor.u32 %v1591, 2147483648
    %v1596 = vxor.u32 %v1592, 2147483648
    %v1597 = vxor.u32 %v1593, 2147483648
    %v1598 = vmul.f32 %v1595, 1.442695
    %v1599 = vpow.pop %v1598
    %v1600 = vmul.f32 %v1596, 1.442695
    %v1601 = vpow.pop %v1600
    %v1602 = vmul.f32 %v1597, 1.442695
    %v1603 = vpow.pop %v1602
    %v1604 = vadd.f32 %v1599, 1.0
    %v1605 = vadd.f32 %v1601, 1.0
    %v1606 = vadd.f32 %v1603, 1.0
    %v1607 = vrcp.pop %v1604
    %v1608 = vmul.f32 1.0, %v1607
    %v1609 = vrcp.pop %v1605
    %v1610 = vmul.f32 1.0, %v1609
    %v1611 = vrcp.pop %v1606
    %v1612 = vmul.f32 1.0, %v1611
    %v1613 = vtanh.pop %v1594
    %v1614 = vmul.f32 %v1610, %v1498
    %v1615 = vmul.f32 %v1608, %v1613
    %v1616 = vadd.f32 %v1614, %v1615
    %v1617 = vtanh.pop %v1616
    %v1618 = vmul.f32 %v1612, %v1617
    %s1619 = scalar_lea.vmem [#allocation9], 56
    %1620 = vst [vmem:[%s1619] sm:$0xff] %v1618
    %1621 = vst [vmem:[#allocation10] sm:$0xff] %v1618
    %1622 = vst [vmem:[#allocation12] sm:$0xff] %v1616
    %v1623 = vld [vmem:[#allocation9] sm:$0xff]
    %v1624 = vld [vmem:[#allocation9 + $0x8] sm:$0xff]
    %v1625 = vld [vmem:[#allocation9 + $0x10] sm:$0xff]
    %v1626 = vld [vmem:[#allocation9 + $0x18] sm:$0xff]
    %v1627 = vld [vmem:[#allocation9 + $0x20] sm:$0xff]
    %v1628 = vld [vmem:[#allocation9 + $0x28] sm:$0xff]
    %v1629 = vld [vmem:[#allocation9 + $0x30] sm:$0xff]
    %v1630 = vld [vmem:[#allocation9 + $0x38] sm:$0xff]
    %v1631 = vpack.c.bf16 %v1624, %v1623
    %v1632 = vpack.c.bf16 %v1626, %v1625
    %v1633 = vpack.c.bf16 %v1628, %v1627
    %v1634 = vpack.c.bf16 %v1630, %v1629
    %s1635 = scalar_lea.vmem [#allocation6], 256
    %v1636 = vld [vmem:[%s1635] sm:$0xff]
    %v1637 = vld [vmem:[%s1635 + $0x8] sm:$0xff]
    %v1638 = vld [vmem:[%s1635 + $0x10] sm:$0xff]
    %v1639 = vld [vmem:[%s1635 + $0x18] sm:$0xff]
    %v1640 = vld [vmem:[%s1635 + $0x20] sm:$0xff]
    %v1641 = vld [vmem:[%s1635 + $0x28] sm:$0xff]
    %v1642 = vld [vmem:[%s1635 + $0x30] sm:$0xff]
    %v1643 = vld [vmem:[%s1635 + $0x38] sm:$0xff]
    %v1644 = vld [vmem:[%s1635 + $0x40] sm:$0xff]
    %v1645 = vld [vmem:[%s1635 + $0x48] sm:$0xff]
    %v1646 = vld [vmem:[%s1635 + $0x50] sm:$0xff]
    %v1647 = vld [vmem:[%s1635 + $0x58] sm:$0xff]
    %v1648 = vld [vmem:[%s1635 + $0x60] sm:$0xff]
    %v1649 = vld [vmem:[%s1635 + $0x68] sm:$0xff]
    %v1650 = vld [vmem:[%s1635 + $0x70] sm:$0xff]
    %v1651 = vld [vmem:[%s1635 + $0x78] sm:$0xff]
    %v1652 = vld [vmem:[%s1635 + $0x80] sm:$0xff]
    %v1653 = vld [vmem:[%s1635 + $0x88] sm:$0xff]
    %v1654 = vld [vmem:[%s1635 + $0x90] sm:$0xff]
    %v1655 = vld [vmem:[%s1635 + $0x98] sm:$0xff]
    %v1656 = vld [vmem:[%s1635 + $0xa0] sm:$0xff]
    %v1657 = vld [vmem:[%s1635 + $0xa8] sm:$0xff]
    %v1658 = vld [vmem:[%s1635 + $0xb0] sm:$0xff]
    %v1659 = vld [vmem:[%s1635 + $0xb8] sm:$0xff]
    %v1660 = vld [vmem:[%s1635 + $0xc0] sm:$0xff]
    %v1661 = vld [vmem:[%s1635 + $0xc8] sm:$0xff]
    %v1662 = vld [vmem:[%s1635 + $0xd0] sm:$0xff]
    %v1663 = vld [vmem:[%s1635 + $0xd8] sm:$0xff]
    %v1664 = vld [vmem:[%s1635 + $0xe0] sm:$0xff]
    %v1665 = vld [vmem:[%s1635 + $0xe8] sm:$0xff]
    %v1666 = vld [vmem:[%s1635 + $0xf0] sm:$0xff]
    %v1667 = vld [vmem:[%s1635 + $0xf8] sm:$0xff]
    %s1668 = scalar_lea.vmem [#allocation8], 256
    %v1669 = vld [vmem:[%s1668] sm:$0xff]
    %v1670 = vld [vmem:[%s1668 + $0x8] sm:$0xff]
    %v1671 = vld [vmem:[%s1668 + $0x10] sm:$0xff]
    %v1672 = vld [vmem:[%s1668 + $0x18] sm:$0xff]
    %v1673 = vld [vmem:[%s1668 + $0x20] sm:$0xff]
    %v1674 = vld [vmem:[%s1668 + $0x28] sm:$0xff]
    %v1675 = vld [vmem:[%s1668 + $0x30] sm:$0xff]
    %v1676 = vld [vmem:[%s1668 + $0x38] sm:$0xff]
    %v1677 = vld [vmem:[%s1668 + $0x40] sm:$0xff]
    %v1678 = vld [vmem:[%s1668 + $0x48] sm:$0xff]
    %v1679 = vld [vmem:[%s1668 + $0x50] sm:$0xff]
    %v1680 = vld [vmem:[%s1668 + $0x58] sm:$0xff]
    %v1681 = vld [vmem:[%s1668 + $0x60] sm:$0xff]
    %v1682 = vld [vmem:[%s1668 + $0x68] sm:$0xff]
    %v1683 = vld [vmem:[%s1668 + $0x70] sm:$0xff]
    %v1684 = vld [vmem:[%s1668 + $0x78] sm:$0xff]
    %v1685 = vld [vmem:[%s1668 + $0x80] sm:$0xff]
    %v1686 = vld [vmem:[%s1668 + $0x88] sm:$0xff]
    %v1687 = vld [vmem:[%s1668 + $0x90] sm:$0xff]
    %v1688 = vld [vmem:[%s1668 + $0x98] sm:$0xff]
    %v1689 = vld [vmem:[%s1668 + $0xa0] sm:$0xff]
    %v1690 = vld [vmem:[%s1668 + $0xa8] sm:$0xff]
    %v1691 = vld [vmem:[%s1668 + $0xb0] sm:$0xff]
    %v1692 = vld [vmem:[%s1668 + $0xb8] sm:$0xff]
    %v1693 = vld [vmem:[%s1668 + $0xc0] sm:$0xff]
    %v1694 = vld [vmem:[%s1668 + $0xc8] sm:$0xff]
    %v1695 = vld [vmem:[%s1668 + $0xd0] sm:$0xff]
    %v1696 = vld [vmem:[%s1668 + $0xd8] sm:$0xff]
    %v1697 = vld [vmem:[%s1668 + $0xe0] sm:$0xff]
    %v1698 = vld [vmem:[%s1668 + $0xe8] sm:$0xff]
    %v1699 = vld [vmem:[%s1668 + $0xf0] sm:$0xff]
    %v1700 = vld [vmem:[%s1668 + $0xf8] sm:$0xff]
    %s1701 = scalar_lea.vmem %s3, 4
    %v1702 = vld [vmem:[%s1701] sm:$0xf]
    %v1704 = vlaneseq
    %v1705 = vshrl.u32 %v1704, 7
    %v1706 = vsub.s32 0, %v1705
    %v1707 = vrot.slane %v1702, %v1706
    %v1708 = vlaneseq
    %v1709 = vshrl.u32 %v1708, 7
    %v1710 = vsub.s32 1, %v1709
    %v1711 = vrot.slane %v1702, %v1710
    %v1712 = vlaneseq
    %v1713 = vshrl.u32 %v1712, 7
    %v1714 = vsub.s32 2, %v1713
    %v1715 = vrot.slane %v1702, %v1714
    %v1716 = vlaneseq
    %v1717 = vshrl.u32 %v1716, 7
    %v1718 = vsub.s32 3, %v1717
    %v1719 = vrot.slane %v1702, %v1718
    %v1756 = vunpack.c.l.b16 %v1636
    %v1757 = vunpack.c.h.b16 %v1636
    %v1758 = vunpack.c.l.b16 %v1637
    %v1759 = vunpack.c.h.b16 %v1637
    %v1760 = vunpack.c.l.b16 %v1638
    %v1761 = vunpack.c.h.b16 %v1638
    %v1762 = vunpack.c.l.b16 %v1639
    %v1763 = vunpack.c.h.b16 %v1639
    %v1764 = vunpack.c.l.b16 %v1640
    %v1765 = vunpack.c.h.b16 %v1640
    %v1766 = vunpack.c.l.b16 %v1641
    %v1767 = vunpack.c.h.b16 %v1641
    %v1768 = vunpack.c.l.b16 %v1642
    %v1769 = vunpack.c.h.b16 %v1642
    %v1770 = vunpack.c.l.b16 %v1643
    %v1771 = vunpack.c.h.b16 %v1643
    %v1772 = vunpack.c.l.b16 %v1644
    %v1773 = vunpack.c.h.b16 %v1644
    %v1774 = vunpack.c.l.b16 %v1645
    %v1775 = vunpack.c.h.b16 %v1645
    %v1776 = vunpack.c.l.b16 %v1646
    %v1777 = vunpack.c.h.b16 %v1646
    %v1778 = vunpack.c.l.b16 %v1647
    %v1779 = vunpack.c.h.b16 %v1647
    %v1780 = vunpack.c.l.b16 %v1648
    %v1781 = vunpack.c.h.b16 %v1648
    %v1782 = vunpack.c.l.b16 %v1649
    %v1783 = vunpack.c.h.b16 %v1649
    %v1784 = vunpack.c.l.b16 %v1650
    %v1785 = vunpack.c.h.b16 %v1650
    %v1786 = vunpack.c.l.b16 %v1651
    %v1787 = vunpack.c.h.b16 %v1651
    %v1788 = vunpack.c.l.b16 %v1652
    %v1789 = vunpack.c.h.b16 %v1652
    %v1790 = vunpack.c.l.b16 %v1653
    %v1791 = vunpack.c.h.b16 %v1653
    %v1792 = vunpack.c.l.b16 %v1654
    %v1793 = vunpack.c.h.b16 %v1654
    %v1794 = vunpack.c.l.b16 %v1655
    %v1795 = vunpack.c.h.b16 %v1655
    %v1796 = vunpack.c.l.b16 %v1656
    %v1797 = vunpack.c.h.b16 %v1656
    %v1798 = vunpack.c.l.b16 %v1657
    %v1799 = vunpack.c.h.b16 %v1657
    %v1800 = vunpack.c.l.b16 %v1658
    %v1801 = vunpack.c.h.b16 %v1658
    %v1802 = vunpack.c.l.b16 %v1659
    %v1803 = vunpack.c.h.b16 %v1659
    %v1804 = vunpack.c.l.b16 %v1660
    %v1805 = vunpack.c.h.b16 %v1660
    %v1806 = vunpack.c.l.b16 %v1661
    %v1807 = vunpack.c.h.b16 %v1661
    %v1808 = vunpack.c.l.b16 %v1662
    %v1809 = vunpack.c.h.b16 %v1662
    %v1810 = vunpack.c.l.b16 %v1663
    %v1811 = vunpack.c.h.b16 %v1663
    %v1812 = vunpack.c.l.b16 %v1664
    %v1813 = vunpack.c.h.b16 %v1664
    %v1814 = vunpack.c.l.b16 %v1665
    %v1815 = vunpack.c.h.b16 %v1665
    %v1816 = vunpack.c.l.b16 %v1666
    %v1817 = vunpack.c.h.b16 %v1666
    %v1818 = vunpack.c.l.b16 %v1667
    %v1819 = vunpack.c.h.b16 %v1667
    %v1820 = vpack.c.b16 %v1760, %v1756
    %v1821 = vpack.c.b16 %v1761, %v1757
    %v1822 = vpack.c.b16 %v1762, %v1758
    %v1823 = vpack.c.b16 %v1763, %v1759
    %v1824 = vpack.c.b16 %v1768, %v1764
    %v1825 = vpack.c.b16 %v1769, %v1765
    %v1826 = vpack.c.b16 %v1770, %v1766
    %v1827 = vpack.c.b16 %v1771, %v1767
    %v1828 = vpack.c.b16 %v1776, %v1772
    %v1829 = vpack.c.b16 %v1777, %v1773
    %v1830 = vpack.c.b16 %v1778, %v1774
    %v1831 = vpack.c.b16 %v1779, %v1775
    %v1832 = vpack.c.b16 %v1784, %v1780
    %v1833 = vpack.c.b16 %v1785, %v1781
    %v1834 = vpack.c.b16 %v1786, %v1782
    %v1835 = vpack.c.b16 %v1787, %v1783
    %v1836 = vpack.c.b16 %v1792, %v1788
    %v1837 = vpack.c.b16 %v1793, %v1789
    %v1838 = vpack.c.b16 %v1794, %v1790
    %v1839 = vpack.c.b16 %v1795, %v1791
    %v1840 = vpack.c.b16 %v1800, %v1796
    %v1841 = vpack.c.b16 %v1801, %v1797
    %v1842 = vpack.c.b16 %v1802, %v1798
    %v1843 = vpack.c.b16 %v1803, %v1799
    %v1844 = vpack.c.b16 %v1808, %v1804
    %v1845 = vpack.c.b16 %v1809, %v1805
    %v1846 = vpack.c.b16 %v1810, %v1806
    %v1847 = vpack.c.b16 %v1811, %v1807
    %v1848 = vpack.c.b16 %v1816, %v1812
    %v1849 = vpack.c.b16 %v1817, %v1813
    %v1850 = vpack.c.b16 %v1818, %v1814
    %v1851 = vpack.c.b16 %v1819, %v1815
    %1884 = vmatprep.subr.bf16.mxu0 %v1821
    %1885 = vmatpush1.bf16.msra.mxu0 %v1820
    %1886 = vmatprep.subr.bf16.mxu0 %v1825
    %1887 = vmatpush1.bf16.msra.mxu0 %v1824
    %1888 = vmatprep.subr.bf16.mxu0 %v1829
    %1889 = vmatpush1.bf16.msra.mxu0 %v1828
    %1890 = vmatprep.subr.bf16.mxu0 %v1833
    %1891 = vmatpush1.bf16.msra.mxu0 %v1832
    %1892 = vmatprep.subr.bf16.mxu0 %v1837
    %1893 = vmatpush1.bf16.msra.mxu0 %v1836
    %1894 = vmatprep.subr.bf16.mxu0 %v1841
    %1895 = vmatpush1.bf16.msra.mxu0 %v1840
    %1896 = vmatprep.subr.bf16.mxu0 %v1845
    %1897 = vmatpush1.bf16.msra.mxu0 %v1844
    %1898 = vmatprep.subr.bf16.mxu0 %v1849
    %1899 = vmatpush1.bf16.msra.mxu0 %v1848
    %1900 = vmatprep.subr.bf16.mxu0 0
    %1901 = vmatpush1.bf16.msra.mxu0 0
    %1902 = vmatprep.subr.bf16.mxu0 0
    %1903 = vmatpush1.bf16.msra.mxu0 0
    %1904 = vmatprep.subr.bf16.mxu0 0
    %1905 = vmatpush1.bf16.msra.mxu0 0
    %1906 = vmatprep.subr.bf16.mxu0 0
    %1907 = vmatpush1.bf16.msra.mxu0 0
    %1908 = vmatprep.subr.bf16.mxu0 0
    %1909 = vmatpush1.bf16.msra.mxu0 0
    %1910 = vmatprep.subr.bf16.mxu0 0
    %1911 = vmatpush1.bf16.msra.mxu0 0
    %1912 = vmatprep.subr.bf16.mxu0 0
    %1913 = vmatpush1.bf16.msra.mxu0 0
    %1914 = vmatprep.subr.bf16.mxu0 0
    %1915 = vmatpush1.bf16.msra.mxu0 0
    %1916 = vmatprep.mubr.bf16.mxu0 0
    %1917 = vmatmul.mubr.bf16.gmra.mrb[0].mxu0 %v1631
    %v1918 = vpop.f32.mrb[0].mxu0
    %v1919 = vadd.f32 %v1707, %v1918
    %v1920 = vpop.f32.mrb[0].mxu0
    %v1921 = vadd.f32 %v1711, %v1920
    %v1922 = vpop.f32.mrb[0].mxu0
    %v1923 = vadd.f32 %v1707, %v1922
    %v1924 = vpop.f32.mrb[0].mxu0
    %v1925 = vadd.f32 %v1711, %v1924
    %1926 = vmatprep.mubr.bf16.mxu0 0
    %1927 = vmatmul.mubr.bf16.gmra.mrb[0].mxu0 %v1632
    %v1928 = vpop.f32.mrb[0].mxu0
    %v1929 = vadd.f32 %v1707, %v1928
    %v1930 = vpop.f32.mrb[0].mxu0
    %v1931 = vadd.f32 %v1711, %v1930
    %v1932 = vpop.f32.mrb[0].mxu0
    %v1933 = vadd.f32 %v1707, %v1932
    %v1934 = vpop.f32.mrb[0].mxu0
    %v1935 = vadd.f32 %v1711, %v1934
    %1936 = vmatprep.mubr.bf16.mxu0 0
    %1937 = vmatmul.mubr.bf16.gmra.mrb[0].mxu0 %v1633
    %v1938 = vpop.f32.mrb[0].mxu0
    %v1939 = vadd.f32 %v1707, %v1938
    %v1940 = vpop.f32.mrb[0].mxu0
    %v1941 = vadd.f32 %v1711, %v1940
    %v1942 = vpop.f32.mrb[0].mxu0
    %v1943 = vadd.f32 %v1707, %v1942
    %v1944 = vpop.f32.mrb[0].mxu0
    %v1945 = vadd.f32 %v1711, %v1944
    %1946 = vmatprep.mubr.bf16.mxu0 0
    %1947 = vmatmul.mubr.bf16.gmra.mrb[0].mxu0 %v1634
    %v1948 = vpop.f32.mrb[0].mxu0
    %v1949 = vadd.f32 %v1707, %v1948
    %v1950 = vpop.f32.mrb[0].mxu0
    %v1951 = vadd.f32 %v1711, %v1950
    %v1952 = vpop.f32.mrb[0].mxu0
    %v1953 = vadd.f32 %v1707, %v1952
    %v1954 = vpop.f32.mrb[0].mxu0
    %v1955 = vadd.f32 %v1711, %v1954
    %1956 = vdwg.mxu0
    %1957 = vmatprep.subr.bf16.mxu0 %v1823
    %1958 = vmatpush1.bf16.msra.mxu0 %v1822
    %1959 = vmatprep.subr.bf16.mxu0 %v1827
    %1960 = vmatpush1.bf16.msra.mxu0 %v1826
    %1961 = vmatprep.subr.bf16.mxu0 %v1831
    %1962 = vmatpush1.bf16.msra.mxu0 %v1830
    %1963 = vmatprep.subr.bf16.mxu0 %v1835
    %1964 = vmatpush1.bf16.msra.mxu0 %v1834
    %1965 = vmatprep.subr.bf16.mxu0 %v1839
    %1966 = vmatpush1.bf16.msra.mxu0 %v1838
    %1967 = vmatprep.subr.bf16.mxu0 %v1843
    %1968 = vmatpush1.bf16.msra.mxu0 %v1842
    %1969 = vmatprep.subr.bf16.mxu0 %v1847
    %1970 = vmatpush1.bf16.msra.mxu0 %v1846
    %1971 = vmatprep.subr.bf16.mxu0 %v1851
    %1972 = vmatpush1.bf16.msra.mxu0 %v1850
    %1973 = vmatprep.subr.bf16.mxu0 0
    %1974 = vmatpush1.bf16.msra.mxu0 0
    %1975 = vmatprep.subr.bf16.mxu0 0
    %1976 = vmatpush1.bf16.msra.mxu0 0
    %1977 = vmatprep.subr.bf16.mxu0 0
    %1978 = vmatpush1.bf16.msra.mxu0 0
    %1979 = vmatprep.subr.bf16.mxu0 0
    %1980 = vmatpush1.bf16.msra.mxu0 0
    %1981 = vmatprep.subr.bf16.mxu0 0
    %1982 = vmatpush1.bf16.msra.mxu0 0
    %1983 = vmatprep.subr.bf16.mxu0 0
    %1984 = vmatpush1.bf16.msra.mxu0 0
    %1985 = vmatprep.subr.bf16.mxu0 0
    %1986 = vmatpush1.bf16.msra.mxu0 0
    %1987 = vmatprep.subr.bf16.mxu0 0
    %1988 = vmatpush1.bf16.msra.mxu0 0
    %1989 = vmatprep.mubr.bf16.mxu0 0
    %1990 = vmatmul.mubr.bf16.gmra.mrb[0].mxu0 %v1631
    %v1991 = vpop.f32.mrb[0].mxu0
    %v1992 = vadd.f32 %v1715, %v1991
    %v1993 = vpop.f32.mrb[0].mxu0
    %v1994 = vadd.f32 %v1719, %v1993
    %v1995 = vpop.f32.mrb[0].mxu0
    %v1996 = vadd.f32 %v1715, %v1995
    %v1997 = vpop.f32.mrb[0].mxu0
    %v1998 = vadd.f32 %v1719, %v1997
    %1999 = vmatprep.mubr.bf16.mxu0 0
    %2000 = vmatmul.mubr.bf16.gmra.mrb[0].mxu0 %v1632
    %v2001 = vpop.f32.mrb[0].mxu0
    %v2002 = vadd.f32 %v1715, %v2001
    %v2003 = vpop.f32.mrb[0].mxu0
    %v2004 = vadd.f32 %v1719, %v2003
    %v2005 = vpop.f32.mrb[0].mxu0
    %v2006 = vadd.f32 %v1715, %v2005
    %v2007 = vpop.f32.mrb[0].mxu0
    %v2008 = vadd.f32 %v1719, %v2007
    %2009 = vmatprep.mubr.bf16.mxu0 0
    %2010 = vmatmul.mubr.bf16.gmra.mrb[0].mxu0 %v1633
    %v2011 = vpop.f32.mrb[0].mxu0
    %v2012 = vadd.f32 %v1715, %v2011
    %v2013 = vpop.f32.mrb[0].mxu0
    %v2014 = vadd.f32 %v1719, %v2013
    %v2015 = vpop.f32.mrb[0].mxu0
    %v2016 = vadd.f32 %v1715, %v2015
    %v2017 = vpop.f32.mrb[0].mxu0
    %v2018 = vadd.f32 %v1719, %v2017
    %2019 = vmatprep.mubr.bf16.mxu0 0
    %2020 = vmatmul.mubr.bf16.gmra.mrb[0].mxu0 %v1634
    %v2021 = vpop.f32.mrb[0].mxu0
    %v2022 = vadd.f32 %v1715, %v2021
    %v2023 = vpop.f32.mrb[0].mxu0
    %v2024 = vadd.f32 %v1719, %v2023
    %v2025 = vpop.f32.mrb[0].mxu0
    %v2026 = vadd.f32 %v1715, %v2025
    %v2027 = vpop.f32.mrb[0].mxu0
    %v2028 = vadd.f32 %v1719, %v2027
    %2029 = vdwg.mxu0
    %2030 = vst [vmem:[#allocation2] sm:$0xff] %v1919
    %2031 = vst [vmem:[#allocation2 + $0x8] sm:$0xff] %v1921
    %2032 = vst [vmem:[#allocation2 + $0x10] sm:$0xff] %v1992
    %2033 = vst [vmem:[#allocation2 + $0x18] sm:$0xff] %v1994
    %2034 = vst [vmem:[#allocation2 + $0x20] sm:$0xff] %v1923
    %2035 = vst [vmem:[#allocation2 + $0x28] sm:$0xff] %v1925
    %2036 = vst [vmem:[#allocation2 + $0x30] sm:$0xff] %v1996
    %2037 = vst [vmem:[#allocation2 + $0x38] sm:$0xff] %v1998
    %2038 = vst [vmem:[#allocation2 + $0x40] sm:$0xff] %v1929
    %2039 = vst [vmem:[#allocation2 + $0x48] sm:$0xff] %v1931
    %2040 = vst [vmem:[#allocation2 + $0x50] sm:$0xff] %v2002
    %2041 = vst [vmem:[#allocation2 + $0x58] sm:$0xff] %v2004
    %2042 = vst [vmem:[#allocation2 + $0x60] sm:$0xff] %v1933
    %2043 = vst [vmem:[#allocation2 + $0x68] sm:$0xff] %v1935
    %2044 = vst [vmem:[#allocation2 + $0x70] sm:$0xff] %v2006
    %2045 = vst [vmem:[#allocation2 + $0x78] sm:$0xff] %v2008
    %2046 = vst [vmem:[#allocation2 + $0x80] sm:$0xff] %v1939
    %2047 = vst [vmem:[#allocation2 + $0x88] sm:$0xff] %v1941
    %2048 = vst [vmem:[#allocation2 + $0x90] sm:$0xff] %v2012
    %2049 = vst [vmem:[#allocation2 + $0x98] sm:$0xff] %v2014
    %2050 = vst [vmem:[#allocation2 + $0xa0] sm:$0xff] %v1943
    %2051 = vst [vmem:[#allocation2 + $0xa8] sm:$0xff] %v1945
    %2052 = vst [vmem:[#allocation2 + $0xb0] sm:$0xff] %v2016
    %2053 = vst [vmem:[#allocation2 + $0xb8] sm:$0xff] %v2018
    %2054 = vst [vmem:[#allocation2 + $0xc0] sm:$0xff] %v1949
    %2055 = vst [vmem:[#allocation2 + $0xc8] sm:$0xff] %v1951
    %2056 = vst [vmem:[#allocation2 + $0xd0] sm:$0xff] %v2022
    %2057 = vst [vmem:[#allocation2 + $0xd8] sm:$0xff] %v2024
    %2058 = vst [vmem:[#allocation2 + $0xe0] sm:$0xff] %v1953
    %2059 = vst [vmem:[#allocation2 + $0xe8] sm:$0xff] %v1955
    %2060 = vst [vmem:[#allocation2 + $0xf0] sm:$0xff] %v2026
    %2061 = vst [vmem:[#allocation2 + $0xf8] sm:$0xff] %v2028
    %v2062 = vld [vmem:[#allocation2] sm:$0xff]
    %v2063 = vld [vmem:[#allocation2 + $0x8] sm:$0xff]
    %v2064 = vld [vmem:[#allocation2 + $0x10] sm:$0xff]
    %v2065 = vld [vmem:[#allocation2 + $0x18] sm:$0xff]
    %v2098 = vunpack.c.l.b16 %v1669
    %v2099 = vunpack.c.h.b16 %v1669
    %v2100 = vunpack.c.l.b16 %v1670
    %v2101 = vunpack.c.h.b16 %v1670
    %v2102 = vunpack.c.l.b16 %v1671
    %v2103 = vunpack.c.h.b16 %v1671
    %v2104 = vunpack.c.l.b16 %v1672
    %v2105 = vunpack.c.h.b16 %v1672
    %v2106 = vunpack.c.l.b16 %v1673
    %v2107 = vunpack.c.h.b16 %v1673
    %v2108 = vunpack.c.l.b16 %v1674
    %v2109 = vunpack.c.h.b16 %v1674
    %v2110 = vunpack.c.l.b16 %v1675
    %v2111 = vunpack.c.h.b16 %v1675
    %v2112 = vunpack.c.l.b16 %v1676
    %v2113 = vunpack.c.h.b16 %v1676
    %v2114 = vunpack.c.l.b16 %v1677
    %v2115 = vunpack.c.h.b16 %v1677
    %v2116 = vunpack.c.l.b16 %v1678
    %v2117 = vunpack.c.h.b16 %v1678
    %v2118 = vunpack.c.l.b16 %v1679
    %v2119 = vunpack.c.h.b16 %v1679
    %v2120 = vunpack.c.l.b16 %v1680
    %v2121 = vunpack.c.h.b16 %v1680
    %v2122 = vunpack.c.l.b16 %v1681
    %v2123 = vunpack.c.h.b16 %v1681
    %v2124 = vunpack.c.l.b16 %v1682
    %v2125 = vunpack.c.h.b16 %v1682
    %v2126 = vunpack.c.l.b16 %v1683
    %v2127 = vunpack.c.h.b16 %v1683
    %v2128 = vunpack.c.l.b16 %v1684
    %v2129 = vunpack.c.h.b16 %v1684
    %v2130 = vunpack.c.l.b16 %v1685
    %v2131 = vunpack.c.h.b16 %v1685
    %v2132 = vunpack.c.l.b16 %v1686
    %v2133 = vunpack.c.h.b16 %v1686
    %v2134 = vunpack.c.l.b16 %v1687
    %v2135 = vunpack.c.h.b16 %v1687
    %v2136 = vunpack.c.l.b16 %v1688
    %v2137 = vunpack.c.h.b16 %v1688
    %v2138 = vunpack.c.l.b16 %v1689
    %v2139 = vunpack.c.h.b16 %v1689
    %v2140 = vunpack.c.l.b16 %v1690
    %v2141 = vunpack.c.h.b16 %v1690
    %v2142 = vunpack.c.l.b16 %v1691
    %v2143 = vunpack.c.h.b16 %v1691
    %v2144 = vunpack.c.l.b16 %v1692
    %v2145 = vunpack.c.h.b16 %v1692
    %v2146 = vunpack.c.l.b16 %v1693
    %v2147 = vunpack.c.h.b16 %v1693
    %v2148 = vunpack.c.l.b16 %v1694
    %v2149 = vunpack.c.h.b16 %v1694
    %v2150 = vunpack.c.l.b16 %v1695
    %v2151 = vunpack.c.h.b16 %v1695
    %v2152 = vunpack.c.l.b16 %v1696
    %v2153 = vunpack.c.h.b16 %v1696
    %v2154 = vunpack.c.l.b16 %v1697
    %v2155 = vunpack.c.h.b16 %v1697
    %v2156 = vunpack.c.l.b16 %v1698
    %v2157 = vunpack.c.h.b16 %v1698
    %v2158 = vunpack.c.l.b16 %v1699
    %v2159 = vunpack.c.h.b16 %v1699
    %v2160 = vunpack.c.l.b16 %v1700
    %v2161 = vunpack.c.h.b16 %v1700
    %v2162 = vpack.c.b16 %v2102, %v2098
    %v2163 = vpack.c.b16 %v2103, %v2099
    %v2164 = vpack.c.b16 %v2104, %v2100
    %v2165 = vpack.c.b16 %v2105, %v2101
    %v2166 = vpack.c.b16 %v2110, %v2106
    %v2167 = vpack.c.b16 %v2111, %v2107
    %v2168 = vpack.c.b16 %v2112, %v2108
    %v2169 = vpack.c.b16 %v2113, %v2109
    %v2170 = vpack.c.b16 %v2118, %v2114
    %v2171 = vpack.c.b16 %v2119, %v2115
    %v2172 = vpack.c.b16 %v2120, %v2116
    %v2173 = vpack.c.b16 %v2121, %v2117
    %v2174 = vpack.c.b16 %v2126, %v2122
    %v2175 = vpack.c.b16 %v2127, %v2123
    %v2176 = vpack.c.b16 %v2128, %v2124
    %v2177 = vpack.c.b16 %v2129, %v2125
    %v2178 = vpack.c.b16 %v2134, %v2130
    %v2179 = vpack.c.b16 %v2135, %v2131
    %v2180 = vpack.c.b16 %v2136, %v2132
    %v2181 = vpack.c.b16 %v2137, %v2133
    %v2182 = vpack.c.b16 %v2142, %v2138
    %v2183 = vpack.c.b16 %v2143, %v2139
    %v2184 = vpack.c.b16 %v2144, %v2140
    %v2185 = vpack.c.b16 %v2145, %v2141
    %v2186 = vpack.c.b16 %v2150, %v2146
    %v2187 = vpack.c.b16 %v2151, %v2147
    %v2188 = vpack.c.b16 %v2152, %v2148
    %v2189 = vpack.c.b16 %v2153, %v2149
    %v2190 = vpack.c.b16 %v2158, %v2154
    %v2191 = vpack.c.b16 %v2159, %v2155
    %v2192 = vpack.c.b16 %v2160, %v2156
    %v2193 = vpack.c.b16 %v2161, %v2157
    %2226 = vmatprep.subr.bf16.mxu0 %v2163
    %2227 = vmatpush1.bf16.msra.mxu0 %v2162
    %2228 = vmatprep.subr.bf16.mxu0 %v2167
    %2229 = vmatpush1.bf16.msra.mxu0 %v2166
    %2230 = vmatprep.subr.bf16.mxu0 %v2171
    %2231 = vmatpush1.bf16.msra.mxu0 %v2170
    %2232 = vmatprep.subr.bf16.mxu0 %v2175
    %2233 = vmatpush1.bf16.msra.mxu0 %v2174
    %2234 = vmatprep.subr.bf16.mxu0 %v2179
    %2235 = vmatpush1.bf16.msra.mxu0 %v2178
    %2236 = vmatprep.subr.bf16.mxu0 %v2183
    %2237 = vmatpush1.bf16.msra.mxu0 %v2182
    %2238 = vmatprep.subr.bf16.mxu0 %v2187
    %2239 = vmatpush1.bf16.msra.mxu0 %v2186
    %2240 = vmatprep.subr.bf16.mxu0 %v2191
    %2241 = vmatpush1.bf16.msra.mxu0 %v2190
    %2242 = vmatprep.subr.bf16.mxu0 0
    %2243 = vmatpush1.bf16.msra.mxu0 0
    %2244 = vmatprep.subr.bf16.mxu0 0
    %2245 = vmatpush1.bf16.msra.mxu0 0
    %2246 = vmatprep.subr.bf16.mxu0 0
    %2247 = vmatpush1.bf16.msra.mxu0 0
    %2248 = vmatprep.subr.bf16.mxu0 0
    %2249 = vmatpush1.bf16.msra.mxu0 0
    %2250 = vmatprep.subr.bf16.mxu0 0
    %2251 = vmatpush1.bf16.msra.mxu0 0
    %2252 = vmatprep.subr.bf16.mxu0 0
    %2253 = vmatpush1.bf16.msra.mxu0 0
    %2254 = vmatprep.subr.bf16.mxu0 0
    %2255 = vmatpush1.bf16.msra.mxu0 0
    %2256 = vmatprep.subr.bf16.mxu0 0
    %2257 = vmatpush1.bf16.msra.mxu0 0
    %2258 = vmatprep.mubr.bf16.mxu0 0
    %2259 = vmatmul.mubr.bf16.gmra.mrb[0].mxu0 0
    %v2260 = vpop.f32.mrb[0].mxu0
    %v2261 = vadd.f32 0.0, %v2260
    %v2262 = vpop.f32.mrb[0].mxu0
    %v2263 = vadd.f32 0.0, %v2262
    %v2264 = vpop.f32.mrb[0].mxu0
    %v2265 = vpop.f32.mrb[0].mxu0
    %2266 = vdwg.mxu0
    %2267 = vmatprep.subr.bf16.mxu0 %v2165
    %2268 = vmatpush1.bf16.msra.mxu0 %v2164
    %2269 = vmatprep.subr.bf16.mxu0 %v2169
    %2270 = vmatpush1.bf16.msra.mxu0 %v2168
    %2271 = vmatprep.subr.bf16.mxu0 %v2173
    %2272 = vmatpush1.bf16.msra.mxu0 %v2172
    %2273 = vmatprep.subr.bf16.mxu0 %v2177
    %2274 = vmatpush1.bf16.msra.mxu0 %v2176
    %2275 = vmatprep.subr.bf16.mxu0 %v2181
    %2276 = vmatpush1.bf16.msra.mxu0 %v2180
    %2277 = vmatprep.subr.bf16.mxu0 %v2185
    %2278 = vmatpush1.bf16.msra.mxu0 %v2184
    %2279 = vmatprep.subr.bf16.mxu0 %v2189
    %2280 = vmatpush1.bf16.msra.mxu0 %v2188
    %2281 = vmatprep.subr.bf16.mxu0 %v2193
    %2282 = vmatpush1.bf16.msra.mxu0 %v2192
    %2283 = vmatprep.subr.bf16.mxu0 0
    %2284 = vmatpush1.bf16.msra.mxu0 0
    %2285 = vmatprep.subr.bf16.mxu0 0
    %2286 = vmatpush1.bf16.msra.mxu0 0
    %2287 = vmatprep.subr.bf16.mxu0 0
    %2288 = vmatpush1.bf16.msra.mxu0 0
    %2289 = vmatprep.subr.bf16.mxu0 0
    %2290 = vmatpush1.bf16.msra.mxu0 0
    %2291 = vmatprep.subr.bf16.mxu0 0
    %2292 = vmatpush1.bf16.msra.mxu0 0
    %2293 = vmatprep.subr.bf16.mxu0 0
    %2294 = vmatpush1.bf16.msra.mxu0 0
    %2295 = vmatprep.subr.bf16.mxu0 0
    %2296 = vmatpush1.bf16.msra.mxu0 0
    %2297 = vmatprep.subr.bf16.mxu0 0
    %2298 = vmatpush1.bf16.msra.mxu0 0
    %2299 = vmatprep.mubr.bf16.mxu0 0
    %2300 = vmatmul.mubr.bf16.gmra.mrb[0].mxu0 0
    %v2301 = vpop.f32.mrb[0].mxu0
    %v2302 = vadd.f32 0.0, %v2301
    %v2303 = vpop.f32.mrb[0].mxu0
    %v2304 = vadd.f32 0.0, %v2303
    %v2305 = vpop.f32.mrb[0].mxu0
    %v2306 = vpop.f32.mrb[0].mxu0
    %2307 = vdwg.mxu0
    %v2308 = vadd.f32 %v2062, %v2261
    %v2309 = vadd.f32 %v2063, %v2263
    %v2310 = vadd.f32 %v2064, %v2302
    %v2311 = vadd.f32 %v2065, %v2304
    %v2312 = vxor.u32 %v2308, 2147483648
    %v2313 = vxor.u32 %v2309, 2147483648
    %v2314 = vxor.u32 %v2310, 2147483648
    %v2315 = vmul.f32 %v2312, 1.442695
    %v2316 = vpow.pop %v2315
    %v2317 = vmul.f32 %v2313, 1.442695
    %v2318 = vpow.pop %v2317
    %v2319 = vmul.f32 %v2314, 1.442695
    %v2320 = vpow.pop %v2319
    %v2321 = vadd.f32 %v2316, 1.0
    %v2322 = vadd.f32 %v2318, 1.0
    %v2323 = vadd.f32 %v2320, 1.0
    %v2324 = vrcp.pop %v2321
    %v2325 = vmul.f32 1.0, %v2324
    %v2326 = vrcp.pop %v2322
    %v2327 = vmul.f32 1.0, %v2326
    %v2328 = vrcp.pop %v2323
    %v2329 = vmul.f32 1.0, %v2328
    %v2330 = vtanh.pop %v2311
    %v2331 = vmul.f32 %v2327, 0.0
    %v2332 = vmul.f32 %v2325, %v2330
    %v2333 = vadd.f32 %v2331, %v2332
    %v2334 = vtanh.pop %v2333
    %v2335 = vmul.f32 %v2329, %v2334
    %2336 = vst [vmem:[#allocation9] sm:$0xff] %v2335
    %v2337 = vld [vmem:[%s795] sm:$0xff]
    %v2338 = vld [vmem:[%s795 + $0x8] sm:$0xff]
    %v2339 = vld [vmem:[%s795 + $0x10] sm:$0xff]
    %v2340 = vld [vmem:[%s795 + $0x18] sm:$0xff]
    %v2341 = vpack.c.bf16 %v2335, %v2335
    %2342 = vmatprep.subr.bf16.mxu0 %v2163
    %2343 = vmatpush1.bf16.msra.mxu0 %v2162
    %2344 = vmatprep.subr.bf16.mxu0 %v2167
    %2345 = vmatpush1.bf16.msra.mxu0 %v2166
    %2346 = vmatprep.subr.bf16.mxu0 %v2171
    %2347 = vmatpush1.bf16.msra.mxu0 %v2170
    %2348 = vmatprep.subr.bf16.mxu0 %v2175
    %2349 = vmatpush1.bf16.msra.mxu0 %v2174
    %2350 = vmatprep.subr.bf16.mxu0 %v2179
    %2351 = vmatpush1.bf16.msra.mxu0 %v2178
    %2352 = vmatprep.subr.bf16.mxu0 %v2183
    %2353 = vmatpush1.bf16.msra.mxu0 %v2182
    %2354 = vmatprep.subr.bf16.mxu0 %v2187
    %2355 = vmatpush1.bf16.msra.mxu0 %v2186
    %2356 = vmatprep.subr.bf16.mxu0 %v2191
    %2357 = vmatpush1.bf16.msra.mxu0 %v2190
    %2358 = vmatprep.subr.bf16.mxu0 0
    %2359 = vmatpush1.bf16.msra.mxu0 0
    %2360 = vmatprep.subr.bf16.mxu0 0
    %2361 = vmatpush1.bf16.msra.mxu0 0
    %2362 = vmatprep.subr.bf16.mxu0 0
    %2363 = vmatpush1.bf16.msra.mxu0 0
    %2364 = vmatprep.subr.bf16.mxu0 0
    %2365 = vmatpush1.bf16.msra.mxu0 0
    %2366 = vmatprep.subr.bf16.mxu0 0
    %2367 = vmatpush1.bf16.msra.mxu0 0
    %2368 = vmatprep.subr.bf16.mxu0 0
    %2369 = vmatpush1.bf16.msra.mxu0 0
    %2370 = vmatprep.subr.bf16.mxu0 0
    %2371 = vmatpush1.bf16.msra.mxu0 0
    %2372 = vmatprep.subr.bf16.mxu0 0
    %2373 = vmatpush1.bf16.msra.mxu0 0
    %2374 = vmatprep.mubr.bf16.mxu0 0
    %2375 = vmatmul.mubr.bf16.gmra.mrb[0].mxu0 %v2341
    %v2376 = vpop.f32.mrb[0].mxu0
    %v2377 = vadd.f32 0.0, %v2376
    %v2378 = vpop.f32.mrb[0].mxu0
    %v2379 = vadd.f32 0.0, %v2378
    %v2380 = vpop.f32.mrb[0].mxu0
    %v2381 = vpop.f32.mrb[0].mxu0
    %2382 = vdwg.mxu0
    %2383 = vmatprep.subr.bf16.mxu0 %v2165
    %2384 = vmatpush1.bf16.msra.mxu0 %v2164
    %2385 = vmatprep.subr.bf16.mxu0 %v2169
    %2386 = vmatpush1.bf16.msra.mxu0 %v2168
    %2387 = vmatprep.subr.bf16.mxu0 %v2173
    %2388 = vmatpush1.bf16.msra.mxu0 %v2172
    %2389 = vmatprep.subr.bf16.mxu0 %v2177
    %2390 = vmatpush1.bf16.msra.mxu0 %v2176
    %2391 = vmatprep.subr.bf16.mxu0 %v2181
    %2392 = vmatpush1.bf16.msra.mxu0 %v2180
    %2393 = vmatprep.subr.bf16.mxu0 %v2185
    %2394 = vmatpush1.bf16.msra.mxu0 %v2184
    %2395 = vmatprep.subr.bf16.mxu0 %v2189
    %2396 = vmatpush1.bf16.msra.mxu0 %v2188
    %2397 = vmatprep.subr.bf16.mxu0 %v2193
    %2398 = vmatpush1.bf16.msra.mxu0 %v2192
    %2399 = vmatprep.subr.bf16.mxu0 0
    %2400 = vmatpush1.bf16.msra.mxu0 0
    %2401 = vmatprep.subr.bf16.mxu0 0
    %2402 = vmatpush1.bf16.msra.mxu0 0
    %2403 = vmatprep.subr.bf16.mxu0 0
    %2404 = vmatpush1.bf16.msra.mxu0 0
    %2405 = vmatprep.subr.bf16.mxu0 0
    %2406 = vmatpush1.bf16.msra.mxu0 0
    %2407 = vmatprep.subr.bf16.mxu0 0
    %2408 = vmatpush1.bf16.msra.mxu0 0
    %2409 = vmatprep.subr.bf16.mxu0 0
    %2410 = vmatpush1.bf16.msra.mxu0 0
    %2411 = vmatprep.subr.bf16.mxu0 0
    %2412 = vmatpush1.bf16.msra.mxu0 0
    %2413 = vmatprep.subr.bf16.mxu0 0
    %2414 = vmatpush1.bf16.msra.mxu0 0
    %2415 = vmatprep.mubr.bf16.mxu0 0
    %2416 = vmatmul.mubr.bf16.gmra.mrb[0].mxu0 %v2341
    %v2417 = vpop.f32.mrb[0].mxu0
    %v2418 = vadd.f32 0.0, %v2417
    %v2419 = vpop.f32.mrb[0].mxu0
    %v2420 = vadd.f32 0.0, %v2419
    %v2421 = vpop.f32.mrb[0].mxu0
    %v2422 = vpop.f32.mrb[0].mxu0
    %2423 = vdwg.mxu0
    %v2424 = vadd.f32 %v2337, %v2377
    %v2425 = vadd.f32 %v2338, %v2379
    %v2426 = vadd.f32 %v2339, %v2418
    %v2427 = vadd.f32 %v2340, %v2420
    %v2428 = vxor.u32 %v2424, 2147483648
    %v2429 = vxor.u32 %v2425, 2147483648
    %v2430 = vxor.u32 %v2426, 2147483648
    %v2431 = vmul.f32 %v2428, 1.442695
    %v2432 = vpow.pop %v2431
    %v2433 = vmul.f32 %v2429, 1.442695
    %v2434 = vpow.pop %v2433
    %v2435 = vmul.f32 %v2430, 1.442695
    %v2436 = vpow.pop %v2435
    %v2437 = vadd.f32 %v2432, 1.0
    %v2438 = vadd.f32 %v2434, 1.0
    %v2439 = vadd.f32 %v2436, 1.0
    %v2440 = vrcp.pop %v2437
    %v2441 = vmul.f32 1.0, %v2440
    %v2442 = vrcp.pop %v2438
    %v2443 = vmul.f32 1.0, %v2442
    %v2444 = vrcp.pop %v2439
    %v2445 = vmul.f32 1.0, %v2444
    %v2446 = vtanh.pop %v2427
    %v2447 = vmul.f32 %v2443, %v2333
    %v2448 = vmul.f32 %v2441, %v2446
    %v2449 = vadd.f32 %v2447, %v2448
    %v2450 = vtanh.pop %v2449
    %v2451 = vmul.f32 %v2445, %v2450
    %2452 = vst [vmem:[%s911] sm:$0xff] %v2451
    %v2453 = vld [vmem:[%s913] sm:$0xff]
    %v2454 = vld [vmem:[%s913 + $0x8] sm:$0xff]
    %v2455 = vld [vmem:[%s913 + $0x10] sm:$0xff]
    %v2456 = vld [vmem:[%s913 + $0x18] sm:$0xff]
    %v2457 = vpack.c.bf16 %v2451, %v2451
    %2458 = vmatprep.subr.bf16.mxu0 %v2163
    %2459 = vmatpush1.bf16.msra.mxu0 %v2162
    %2460 = vmatprep.subr.bf16.mxu0 %v2167
    %2461 = vmatpush1.bf16.msra.mxu0 %v2166
    %2462 = vmatprep.subr.bf16.mxu0 %v2171
    %2463 = vmatpush1.bf16.msra.mxu0 %v2170
    %2464 = vmatprep.subr.bf16.mxu0 %v2175
    %2465 = vmatpush1.bf16.msra.mxu0 %v2174
    %2466 = vmatprep.subr.bf16.mxu0 %v2179
    %2467 = vmatpush1.bf16.msra.mxu0 %v2178
    %2468 = vmatprep.subr.bf16.mxu0 %v2183
    %2469 = vmatpush1.bf16.msra.mxu0 %v2182
    %2470 = vmatprep.subr.bf16.mxu0 %v2187
    %2471 = vmatpush1.bf16.msra.mxu0 %v2186
    %2472 = vmatprep.subr.bf16.mxu0 %v2191
    %2473 = vmatpush1.bf16.msra.mxu0 %v2190
    %2474 = vmatprep.subr.bf16.mxu0 0
    %2475 = vmatpush1.bf16.msra.mxu0 0
    %2476 = vmatprep.subr.bf16.mxu0 0
    %2477 = vmatpush1.bf16.msra.mxu0 0
    %2478 = vmatprep.subr.bf16.mxu0 0
    %2479 = vmatpush1.bf16.msra.mxu0 0
    %2480 = vmatprep.subr.bf16.mxu0 0
    %2481 = vmatpush1.bf16.msra.mxu0 0
    %2482 = vmatprep.subr.bf16.mxu0 0
    %2483 = vmatpush1.bf16.msra.mxu0 0
    %2484 = vmatprep.subr.bf16.mxu0 0
    %2485 = vmatpush1.bf16.msra.mxu0 0
    %2486 = vmatprep.subr.bf16.mxu0 0
    %2487 = vmatpush1.bf16.msra.mxu0 0
    %2488 = vmatprep.subr.bf16.mxu0 0
    %2489 = vmatpush1.bf16.msra.mxu0 0
    %2490 = vmatprep.mubr.bf16.mxu0 0
    %2491 = vmatmul.mubr.bf16.gmra.mrb[0].mxu0 %v2457
    %v2492 = vpop.f32.mrb[0].mxu0
    %v2493 = vadd.f32 0.0, %v2492
    %v2494 = vpop.f32.mrb[0].mxu0
    %v2495 = vadd.f32 0.0, %v2494
    %v2496 = vpop.f32.mrb[0].mxu0
    %v2497 = vpop.f32.mrb[0].mxu0
    %2498 = vdwg.mxu0
    %2499 = vmatprep.subr.bf16.mxu0 %v2165
    %2500 = vmatpush1.bf16.msra.mxu0 %v2164
    %2501 = vmatprep.subr.bf16.mxu0 %v2169
    %2502 = vmatpush1.bf16.msra.mxu0 %v2168
    %2503 = vmatprep.subr.bf16.mxu0 %v2173
    %2504 = vmatpush1.bf16.msra.mxu0 %v2172
    %2505 = vmatprep.subr.bf16.mxu0 %v2177
    %2506 = vmatpush1.bf16.msra.mxu0 %v2176
    %2507 = vmatprep.subr.bf16.mxu0 %v2181
    %2508 = vmatpush1.bf16.msra.mxu0 %v2180
    %2509 = vmatprep.subr.bf16.mxu0 %v2185
    %2510 = vmatpush1.bf16.msra.mxu0 %v2184
    %2511 = vmatprep.subr.bf16.mxu0 %v2189
    %2512 = vmatpush1.bf16.msra.mxu0 %v2188
    %2513 = vmatprep.subr.bf16.mxu0 %v2193
    %2514 = vmatpush1.bf16.msra.mxu0 %v2192
    %2515 = vmatprep.subr.bf16.mxu0 0
    %2516 = vmatpush1.bf16.msra.mxu0 0
    %2517 = vmatprep.subr.bf16.mxu0 0
    %2518 = vmatpush1.bf16.msra.mxu0 0
    %2519 = vmatprep.subr.bf16.mxu0 0
    %2520 = vmatpush1.bf16.msra.mxu0 0
    %2521 = vmatprep.subr.bf16.mxu0 0
    %2522 = vmatpush1.bf16.msra.mxu0 0
    %2523 = vmatprep.subr.bf16.mxu0 0
    %2524 = vmatpush1.bf16.msra.mxu0 0
    %2525 = vmatprep.subr.bf16.mxu0 0
    %2526 = vmatpush1.bf16.msra.mxu0 0
    %2527 = vmatprep.subr.bf16.mxu0 0
    %2528 = vmatpush1.bf16.msra.mxu0 0
    %2529 = vmatprep.subr.bf16.mxu0 0
    %2530 = vmatpush1.bf16.msra.mxu0 0
    %2531 = vmatprep.mubr.bf16.mxu0 0
    %2532 = vmatmul.mubr.bf16.gmra.mrb[0].mxu0 %v2457
    %v2533 = vpop.f32.mrb[0].mxu0
    %v2534 = vadd.f32 0.0, %v2533
    %v2535 = vpop.f32.mrb[0].mxu0
    %v2536 = vadd.f32 0.0, %v2535
    %v2537 = vpop.f32.mrb[0].mxu0
    %v2538 = vpop.f32.mrb[0].mxu0
    %2539 = vdwg.mxu0
    %v2540 = vadd.f32 %v2453, %v2493
    %v2541 = vadd.f32 %v2454, %v2495
    %v2542 = vadd.f32 %v2455, %v2534
    %v2543 = vadd.f32 %v2456, %v2536
    %v2544 = vxor.u32 %v2540, 2147483648
    %v2545 = vxor.u32 %v2541, 2147483648
    %v2546 = vxor.u32 %v2542, 2147483648
    %v2547 = vmul.f32 %v2544, 1.442695
    %v2548 = vpow.pop %v2547
    %v2549 = vmul.f32 %v2545, 1.442695
    %v2550 = vpow.pop %v2549
    %v2551 = vmul.f32 %v2546, 1.442695
    %v2552 = vpow.pop %v2551
    %v2553 = vadd.f32 %v2548, 1.0
    %v2554 = vadd.f32 %v2550, 1.0
    %v2555 = vadd.f32 %v2552, 1.0
    %v2556 = vrcp.pop %v2553
    %v2557 = vmul.f32 1.0, %v2556
    %v2558 = vrcp.pop %v2554
    %v2559 = vmul.f32 1.0, %v2558
    %v2560 = vrcp.pop %v2555
    %v2561 = vmul.f32 1.0, %v2560
    %v2562 = vtanh.pop %v2543
    %v2563 = vmul.f32 %v2559, %v2449
    %v2564 = vmul.f32 %v2557, %v2562
    %v2565 = vadd.f32 %v2563, %v2564
    %v2566 = vtanh.pop %v2565
    %v2567 = vmul.f32 %v2561, %v2566
    %2568 = vst [vmem:[%s1029] sm:$0xff] %v2567
    %v2569 = vld [vmem:[%s1031] sm:$0xff]
    %v2570 = vld [vmem:[%s1031 + $0x8] sm:$0xff]
    %v2571 = vld [vmem:[%s1031 + $0x10] sm:$0xff]
    %v2572 = vld [vmem:[%s1031 + $0x18] sm:$0xff]
    %v2573 = vpack.c.bf16 %v2567, %v2567
    %2574 = vmatprep.subr.bf16.mxu0 %v2163
    %2575 = vmatpush1.bf16.msra.mxu0 %v2162
    %2576 = vmatprep.subr.bf16.mxu0 %v2167
    %2577 = vmatpush1.bf16.msra.mxu0 %v2166
    %2578 = vmatprep.subr.bf16.mxu0 %v2171
    %2579 = vmatpush1.bf16.msra.mxu0 %v2170
    %2580 = vmatprep.subr.bf16.mxu0 %v2175
    %2581 = vmatpush1.bf16.msra.mxu0 %v2174
    %2582 = vmatprep.subr.bf16.mxu0 %v2179
    %2583 = vmatpush1.bf16.msra.mxu0 %v2178
    %2584 = vmatprep.subr.bf16.mxu0 %v2183
    %2585 = vmatpush1.bf16.msra.mxu0 %v2182
    %2586 = vmatprep.subr.bf16.mxu0 %v2187
    %2587 = vmatpush1.bf16.msra.mxu0 %v2186
    %2588 = vmatprep.subr.bf16.mxu0 %v2191
    %2589 = vmatpush1.bf16.msra.mxu0 %v2190
    %2590 = vmatprep.subr.bf16.mxu0 0
    %2591 = vmatpush1.bf16.msra.mxu0 0
    %2592 = vmatprep.subr.bf16.mxu0 0
    %2593 = vmatpush1.bf16.msra.mxu0 0
    %2594 = vmatprep.subr.bf16.mxu0 0
    %2595 = vmatpush1.bf16.msra.mxu0 0
    %2596 = vmatprep.subr.bf16.mxu0 0
    %2597 = vmatpush1.bf16.msra.mxu0 0
    %2598 = vmatprep.subr.bf16.mxu0 0
    %2599 = vmatpush1.bf16.msra.mxu0 0
    %2600 = vmatprep.subr.bf16.mxu0 0
    %2601 = vmatpush1.bf16.msra.mxu0 0
    %2602 = vmatprep.subr.bf16.mxu0 0
    %2603 = vmatpush1.bf16.msra.mxu0 0
    %2604 = vmatprep.subr.bf16.mxu0 0
    %2605 = vmatpush1.bf16.msra.mxu0 0
    %2606 = vmatprep.mubr.bf16.mxu0 0
    %2607 = vmatmul.mubr.bf16.gmra.mrb[0].mxu0 %v2573
    %v2608 = vpop.f32.mrb[0].mxu0
    %v2609 = vadd.f32 0.0, %v2608
    %v2610 = vpop.f32.mrb[0].mxu0
    %v2611 = vadd.f32 0.0, %v2610
    %v2612 = vpop.f32.mrb[0].mxu0
    %v2613 = vpop.f32.mrb[0].mxu0
    %2614 = vdwg.mxu0
    %2615 = vmatprep.subr.bf16.mxu0 %v2165
    %2616 = vmatpush1.bf16.msra.mxu0 %v2164
    %2617 = vmatprep.subr.bf16.mxu0 %v2169
    %2618 = vmatpush1.bf16.msra.mxu0 %v2168
    %2619 = vmatprep.subr.bf16.mxu0 %v2173
    %2620 = vmatpush1.bf16.msra.mxu0 %v2172
    %2621 = vmatprep.subr.bf16.mxu0 %v2177
    %2622 = vmatpush1.bf16.msra.mxu0 %v2176
    %2623 = vmatprep.subr.bf16.mxu0 %v2181
    %2624 = vmatpush1.bf16.msra.mxu0 %v2180
    %2625 = vmatprep.subr.bf16.mxu0 %v2185
    %2626 = vmatpush1.bf16.msra.mxu0 %v2184
    %2627 = vmatprep.subr.bf16.mxu0 %v2189
    %2628 = vmatpush1.bf16.msra.mxu0 %v2188
    %2629 = vmatprep.subr.bf16.mxu0 %v2193
    %2630 = vmatpush1.bf16.msra.mxu0 %v2192
    %2631 = vmatprep.subr.bf16.mxu0 0
    %2632 = vmatpush1.bf16.msra.mxu0 0
    %2633 = vmatprep.subr.bf16.mxu0 0
    %2634 = vmatpush1.bf16.msra.mxu0 0
    %2635 = vmatprep.subr.bf16.mxu0 0
    %2636 = vmatpush1.bf16.msra.mxu0 0
    %2637 = vmatprep.subr.bf16.mxu0 0
    %2638 = vmatpush1.bf16.msra.mxu0 0
    %2639 = vmatprep.subr.bf16.mxu0 0
    %2640 = vmatpush1.bf16.msra.mxu0 0
    %2641 = vmatprep.subr.bf16.mxu0 0
    %2642 = vmatpush1.bf16.msra.mxu0 0
    %2643 = vmatprep.subr.bf16.mxu0 0
    %2644 = vmatpush1.bf16.msra.mxu0 0
    %2645 = vmatprep.subr.bf16.mxu0 0
    %2646 = vmatpush1.bf16.msra.mxu0 0
    %2647 = vmatprep.mubr.bf16.mxu0 0
    %2648 = vmatmul.mubr.bf16.gmra.mrb[0].mxu0 %v2573
    %v2649 = vpop.f32.mrb[0].mxu0
    %v2650 = vadd.f32 0.0, %v2649
    %v2651 = vpop.f32.mrb[0].mxu0
    %v2652 = vadd.f32 0.0, %v2651
    %v2653 = vpop.f32.mrb[0].mxu0
    %v2654 = vpop.f32.mrb[0].mxu0
    %2655 = vdwg.mxu0
    %v2656 = vadd.f32 %v2569, %v2609
    %v2657 = vadd.f32 %v2570, %v2611
    %v2658 = vadd.f32 %v2571, %v2650
    %v2659 = vadd.f32 %v2572, %v2652
    %v2660 = vxor.u32 %v2656, 2147483648
    %v2661 = vxor.u32 %v2657, 2147483648
    %v2662 = vxor.u32 %v2658, 2147483648
    %v2663 = vmul.f32 %v2660, 1.442695
    %v2664 = vpow.pop %v2663
    %v2665 = vmul.f32 %v2661, 1.442695
    %v2666 = vpow.pop %v2665
    %v2667 = vmul.f32 %v2662, 1.442695
    %v2668 = vpow.pop %v2667
    %v2669 = vadd.f32 %v2664, 1.0
    %v2670 = vadd.f32 %v2666, 1.0
    %v2671 = vadd.f32 %v2668, 1.0
    %v2672 = vrcp.pop %v2669
    %v2673 = vmul.f32 1.0, %v2672
    %v2674 = vrcp.pop %v2670
    %v2675 = vmul.f32 1.0, %v2674
    %v2676 = vrcp.pop %v2671
    %v2677 = vmul.f32 1.0, %v2676
    %v2678 = vtanh.pop %v2659
    %v2679 = vmul.f32 %v2675, %v2565
    %v2680 = vmul.f32 %v2673, %v2678
    %v2681 = vadd.f32 %v2679, %v2680
    %v2682 = vtanh.pop %v2681
    %v2683 = vmul.f32 %v2677, %v2682
    %2684 = vst [vmem:[%s1147] sm:$0xff] %v2683
    %v2685 = vld [vmem:[%s1149] sm:$0xff]
    %v2686 = vld [vmem:[%s1149 + $0x8] sm:$0xff]
    %v2687 = vld [vmem:[%s1149 + $0x10] sm:$0xff]
    %v2688 = vld [vmem:[%s1149 + $0x18] sm:$0xff]
    %v2689 = vpack.c.bf16 %v2683, %v2683
    %2690 = vmatprep.subr.bf16.mxu0 %v2163
    %2691 = vmatpush1.bf16.msra.mxu0 %v2162
    %2692 = vmatprep.subr.bf16.mxu0 %v2167
    %2693 = vmatpush1.bf16.msra.mxu0 %v2166
    %2694 = vmatprep.subr.bf16.mxu0 %v2171
    %2695 = vmatpush1.bf16.msra.mxu0 %v2170
    %2696 = vmatprep.subr.bf16.mxu0 %v2175
    %2697 = vmatpush1.bf16.msra.mxu0 %v2174
    %2698 = vmatprep.subr.bf16.mxu0 %v2179
    %2699 = vmatpush1.bf16.msra.mxu0 %v2178
    %2700 = vmatprep.subr.bf16.mxu0 %v2183
    %2701 = vmatpush1.bf16.msra.mxu0 %v2182
    %2702 = vmatprep.subr.bf16.mxu0 %v2187
    %2703 = vmatpush1.bf16.msra.mxu0 %v2186
    %2704 = vmatprep.subr.bf16.mxu0 %v2191
    %2705 = vmatpush1.bf16.msra.mxu0 %v2190
    %2706 = vmatprep.subr.bf16.mxu0 0
    %2707 = vmatpush1.bf16.msra.mxu0 0
    %2708 = vmatprep.subr.bf16.mxu0 0
    %2709 = vmatpush1.bf16.msra.mxu0 0
    %2710 = vmatprep.subr.bf16.mxu0 0
    %2711 = vmatpush1.bf16.msra.mxu0 0
    %2712 = vmatprep.subr.bf16.mxu0 0
    %2713 = vmatpush1.bf16.msra.mxu0 0
    %2714 = vmatprep.subr.bf16.mxu0 0
    %2715 = vmatpush1.bf16.msra.mxu0 0
    %2716 = vmatprep.subr.bf16.mxu0 0
    %2717 = vmatpush1.bf16.msra.mxu0 0
    %2718 = vmatprep.subr.bf16.mxu0 0
    %2719 = vmatpush1.bf16.msra.mxu0 0
    %2720 = vmatprep.subr.bf16.mxu0 0
    %2721 = vmatpush1.bf16.msra.mxu0 0
    %2722 = vmatprep.mubr.bf16.mxu0 0
    %2723 = vmatmul.mubr.bf16.gmra.mrb[0].mxu0 %v2689
    %v2724 = vpop.f32.mrb[0].mxu0
    %v2725 = vadd.f32 0.0, %v2724
    %v2726 = vpop.f32.mrb[0].mxu0
    %v2727 = vadd.f32 0.0, %v2726
    %v2728 = vpop.f32.mrb[0].mxu0
    %v2729 = vpop.f32.mrb[0].mxu0
    %2730 = vdwg.mxu0
    %2731 = vmatprep.subr.bf16.mxu0 %v2165
    %2732 = vmatpush1.bf16.msra.mxu0 %v2164
    %2733 = vmatprep.subr.bf16.mxu0 %v2169
    %2734 = vmatpush1.bf16.msra.mxu0 %v2168
    %2735 = vmatprep.subr.bf16.mxu0 %v2173
    %2736 = vmatpush1.bf16.msra.mxu0 %v2172
    %2737 = vmatprep.subr.bf16.mxu0 %v2177
    %2738 = vmatpush1.bf16.msra.mxu0 %v2176
    %2739 = vmatprep.subr.bf16.mxu0 %v2181
    %2740 = vmatpush1.bf16.msra.mxu0 %v2180
    %2741 = vmatprep.subr.bf16.mxu0 %v2185
    %2742 = vmatpush1.bf16.msra.mxu0 %v2184
    %2743 = vmatprep.subr.bf16.mxu0 %v2189
    %2744 = vmatpush1.bf16.msra.mxu0 %v2188
    %2745 = vmatprep.subr.bf16.mxu0 %v2193
    %2746 = vmatpush1.bf16.msra.mxu0 %v2192
    %2747 = vmatprep.subr.bf16.mxu0 0
    %2748 = vmatpush1.bf16.msra.mxu0 0
    %2749 = vmatprep.subr.bf16.mxu0 0
    %2750 = vmatpush1.bf16.msra.mxu0 0
    %2751 = vmatprep.subr.bf16.mxu0 0
    %2752 = vmatpush1.bf16.msra.mxu0 0
    %2753 = vmatprep.subr.bf16.mxu0 0
    %2754 = vmatpush1.bf16.msra.mxu0 0
    %2755 = vmatprep.subr.bf16.mxu0 0
    %2756 = vmatpush1.bf16.msra.mxu0 0
    %2757 = vmatprep.subr.bf16.mxu0 0
    %2758 = vmatpush1.bf16.msra.mxu0 0
    %2759 = vmatprep.subr.bf16.mxu0 0
    %2760 = vmatpush1.bf16.msra.mxu0 0
    %2761 = vmatprep.subr.bf16.mxu0 0
    %2762 = vmatpush1.bf16.msra.mxu0 0
    %2763 = vmatprep.mubr.bf16.mxu0 0
    %2764 = vmatmul.mubr.bf16.gmra.mrb[0].mxu0 %v2689
    %v2765 = vpop.f32.mrb[0].mxu0
    %v2766 = vadd.f32 0.0, %v2765
    %v2767 = vpop.f32.mrb[0].mxu0
    %v2768 = vadd.f32 0.0, %v2767
    %v2769 = vpop.f32.mrb[0].mxu0
    %v2770 = vpop.f32.mrb[0].mxu0
    %2771 = vdwg.mxu0
    %v2772 = vadd.f32 %v2685, %v2725
    %v2773 = vadd.f32 %v2686, %v2727
    %v2774 = vadd.f32 %v2687, %v2766
    %v2775 = vadd.f32 %v2688, %v2768
    %v2776 = vxor.u32 %v2772, 2147483648
    %v2777 = vxor.u32 %v2773, 2147483648
    %v2778 = vxor.u32 %v2774, 2147483648
    %v2779 = vmul.f32 %v2776, 1.442695
    %v2780 = vpow.pop %v2779
    %v2781 = vmul.f32 %v2777, 1.442695
    %v2782 = vpow.pop %v2781
    %v2783 = vmul.f32 %v2778, 1.442695
    %v2784 = vpow.pop %v2783
    %v2785 = vadd.f32 %v2780, 1.0
    %v2786 = vadd.f32 %v2782, 1.0
    %v2787 = vadd.f32 %v2784, 1.0
    %v2788 = vrcp.pop %v2785
    %v2789 = vmul.f32 1.0, %v2788
    %v2790 = vrcp.pop %v2786
    %v2791 = vmul.f32 1.0, %v2790
    %v2792 = vrcp.pop %v2787
    %v2793 = vmul.f32 1.0, %v2792
    %v2794 = vtanh.pop %v2775
    %v2795 = vmul.f32 %v2791, %v2681
    %v2796 = vmul.f32 %v2789, %v2794
    %v2797 = vadd.f32 %v2795, %v2796
    %v2798 = vtanh.pop %v2797
    %v2799 = vmul.f32 %v2793, %v2798
    %2800 = vst [vmem:[%s1265] sm:$0xff] %v2799
    %v2801 = vld [vmem:[%s1267] sm:$0xff]
    %v2802 = vld [vmem:[%s1267 + $0x8] sm:$0xff]
    %v2803 = vld [vmem:[%s1267 + $0x10] sm:$0xff]
    %v2804 = vld [vmem:[%s1267 + $0x18] sm:$0xff]
    %v2805 = vpack.c.bf16 %v2799, %v2799
    %2806 = vmatprep.subr.bf16.mxu0 %v2163
    %2807 = vmatpush1.bf16.msra.mxu0 %v2162
    %2808 = vmatprep.subr.bf16.mxu0 %v2167
    %2809 = vmatpush1.bf16.msra.mxu0 %v2166
    %2810 = vmatprep.subr.bf16.mxu0 %v2171
    %2811 = vmatpush1.bf16.msra.mxu0 %v2170
    %2812 = vmatprep.subr.bf16.mxu0 %v2175
    %2813 = vmatpush1.bf16.msra.mxu0 %v2174
    %2814 = vmatprep.subr.bf16.mxu0 %v2179
    %2815 = vmatpush1.bf16.msra.mxu0 %v2178
    %2816 = vmatprep.subr.bf16.mxu0 %v2183
    %2817 = vmatpush1.bf16.msra.mxu0 %v2182
    %2818 = vmatprep.subr.bf16.mxu0 %v2187
    %2819 = vmatpush1.bf16.msra.mxu0 %v2186
    %2820 = vmatprep.subr.bf16.mxu0 %v2191
    %2821 = vmatpush1.bf16.msra.mxu0 %v2190
    %2822 = vmatprep.subr.bf16.mxu0 0
    %2823 = vmatpush1.bf16.msra.mxu0 0
    %2824 = vmatprep.subr.bf16.mxu0 0
    %2825 = vmatpush1.bf16.msra.mxu0 0
    %2826 = vmatprep.subr.bf16.mxu0 0
    %2827 = vmatpush1.bf16.msra.mxu0 0
    %2828 = vmatprep.subr.bf16.mxu0 0
    %2829 = vmatpush1.bf16.msra.mxu0 0
    %2830 = vmatprep.subr.bf16.mxu0 0
    %2831 = vmatpush1.bf16.msra.mxu0 0
    %2832 = vmatprep.subr.bf16.mxu0 0
    %2833 = vmatpush1.bf16.msra.mxu0 0
    %2834 = vmatprep.subr.bf16.mxu0 0
    %2835 = vmatpush1.bf16.msra.mxu0 0
    %2836 = vmatprep.subr.bf16.mxu0 0
    %2837 = vmatpush1.bf16.msra.mxu0 0
    %2838 = vmatprep.mubr.bf16.mxu0 0
    %2839 = vmatmul.mubr.bf16.gmra.mrb[0].mxu0 %v2805
    %v2840 = vpop.f32.mrb[0].mxu0
    %v2841 = vadd.f32 0.0, %v2840
    %v2842 = vpop.f32.mrb[0].mxu0
    %v2843 = vadd.f32 0.0, %v2842
    %v2844 = vpop.f32.mrb[0].mxu0
    %v2845 = vpop.f32.mrb[0].mxu0
    %2846 = vdwg.mxu0
    %2847 = vmatprep.subr.bf16.mxu0 %v2165
    %2848 = vmatpush1.bf16.msra.mxu0 %v2164
    %2849 = vmatprep.subr.bf16.mxu0 %v2169
    %2850 = vmatpush1.bf16.msra.mxu0 %v2168
    %2851 = vmatprep.subr.bf16.mxu0 %v2173
    %2852 = vmatpush1.bf16.msra.mxu0 %v2172
    %2853 = vmatprep.subr.bf16.mxu0 %v2177
    %2854 = vmatpush1.bf16.msra.mxu0 %v2176
    %2855 = vmatprep.subr.bf16.mxu0 %v2181
    %2856 = vmatpush1.bf16.msra.mxu0 %v2180
    %2857 = vmatprep.subr.bf16.mxu0 %v2185
    %2858 = vmatpush1.bf16.msra.mxu0 %v2184
    %2859 = vmatprep.subr.bf16.mxu0 %v2189
    %2860 = vmatpush1.bf16.msra.mxu0 %v2188
    %2861 = vmatprep.subr.bf16.mxu0 %v2193
    %2862 = vmatpush1.bf16.msra.mxu0 %v2192
    %2863 = vmatprep.subr.bf16.mxu0 0
    %2864 = vmatpush1.bf16.msra.mxu0 0
    %2865 = vmatprep.subr.bf16.mxu0 0
    %2866 = vmatpush1.bf16.msra.mxu0 0
    %2867 = vmatprep.subr.bf16.mxu0 0
    %2868 = vmatpush1.bf16.msra.mxu0 0
    %2869 = vmatprep.subr.bf16.mxu0 0
    %2870 = vmatpush1.bf16.msra.mxu0 0
    %2871 = vmatprep.subr.bf16.mxu0 0
    %2872 = vmatpush1.bf16.msra.mxu0 0
    %2873 = vmatprep.subr.bf16.mxu0 0
    %2874 = vmatpush1.bf16.msra.mxu0 0
    %2875 = vmatprep.subr.bf16.mxu0 0
    %2876 = vmatpush1.bf16.msra.mxu0 0
    %2877 = vmatprep.subr.bf16.mxu0 0
    %2878 = vmatpush1.bf16.msra.mxu0 0
    %2879 = vmatprep.mubr.bf16.mxu0 0
    %2880 = vmatmul.mubr.bf16.gmra.mrb[0].mxu0 %v2805
    %v2881 = vpop.f32.mrb[0].mxu0
    %v2882 = vadd.f32 0.0, %v2881
    %v2883 = vpop.f32.mrb[0].mxu0
    %v2884 = vadd.f32 0.0, %v2883
    %v2885 = vpop.f32.mrb[0].mxu0
    %v2886 = vpop.f32.mrb[0].mxu0
    %2887 = vdwg.mxu0
    %v2888 = vadd.f32 %v2801, %v2841
    %v2889 = vadd.f32 %v2802, %v2843
    %v2890 = vadd.f32 %v2803, %v2882
    %v2891 = vadd.f32 %v2804, %v2884
    %v2892 = vxor.u32 %v2888, 2147483648
    %v2893 = vxor.u32 %v2889, 2147483648
    %v2894 = vxor.u32 %v2890, 2147483648
    %v2895 = vmul.f32 %v2892, 1.442695
    %v2896 = vpow.pop %v2895
    %v2897 = vmul.f32 %v2893, 1.442695
    %v2898 = vpow.pop %v2897
    %v2899 = vmul.f32 %v2894, 1.442695
    %v2900 = vpow.pop %v2899
    %v2901 = vadd.f32 %v2896, 1.0
    %v2902 = vadd.f32 %v2898, 1.0
    %v2903 = vadd.f32 %v2900, 1.0
    %v2904 = vrcp.pop %v2901
    %v2905 = vmul.f32 1.0, %v2904
    %v2906 = vrcp.pop %v2902
    %v2907 = vmul.f32 1.0, %v2906
    %v2908 = vrcp.pop %v2903
    %v2909 = vmul.f32 1.0, %v2908
    %v2910 = vtanh.pop %v2891
    %v2911 = vmul.f32 %v2907, %v2797
    %v2912 = vmul.f32 %v2905, %v2910
    %v2913 = vadd.f32 %v2911, %v2912
    %v2914 = vtanh.pop %v2913
    %v2915 = vmul.f32 %v2909, %v2914
    %2916 = vst [vmem:[%s1383] sm:$0xff] %v2915
    %v2917 = vld [vmem:[%s1385] sm:$0xff]
    %v2918 = vld [vmem:[%s1385 + $0x8] sm:$0xff]
    %v2919 = vld [vmem:[%s1385 + $0x10] sm:$0xff]
    %v2920 = vld [vmem:[%s1385 + $0x18] sm:$0xff]
    %v2921 = vpack.c.bf16 %v2915, %v2915
    %2922 = vmatprep.subr.bf16.mxu0 %v2163
    %2923 = vmatpush1.bf16.msra.mxu0 %v2162
    %2924 = vmatprep.subr.bf16.mxu0 %v2167
    %2925 = vmatpush1.bf16.msra.mxu0 %v2166
    %2926 = vmatprep.subr.bf16.mxu0 %v2171
    %2927 = vmatpush1.bf16.msra.mxu0 %v2170
    %2928 = vmatprep.subr.bf16.mxu0 %v2175
    %2929 = vmatpush1.bf16.msra.mxu0 %v2174
    %2930 = vmatprep.subr.bf16.mxu0 %v2179
    %2931 = vmatpush1.bf16.msra.mxu0 %v2178
    %2932 = vmatprep.subr.bf16.mxu0 %v2183
    %2933 = vmatpush1.bf16.msra.mxu0 %v2182
    %2934 = vmatprep.subr.bf16.mxu0 %v2187
    %2935 = vmatpush1.bf16.msra.mxu0 %v2186
    %2936 = vmatprep.subr.bf16.mxu0 %v2191
    %2937 = vmatpush1.bf16.msra.mxu0 %v2190
    %2938 = vmatprep.subr.bf16.mxu0 0
    %2939 = vmatpush1.bf16.msra.mxu0 0
    %2940 = vmatprep.subr.bf16.mxu0 0
    %2941 = vmatpush1.bf16.msra.mxu0 0
    %2942 = vmatprep.subr.bf16.mxu0 0
    %2943 = vmatpush1.bf16.msra.mxu0 0
    %2944 = vmatprep.subr.bf16.mxu0 0
    %2945 = vmatpush1.bf16.msra.mxu0 0
    %2946 = vmatprep.subr.bf16.mxu0 0
    %2947 = vmatpush1.bf16.msra.mxu0 0
    %2948 = vmatprep.subr.bf16.mxu0 0
    %2949 = vmatpush1.bf16.msra.mxu0 0
    %2950 = vmatprep.subr.bf16.mxu0 0
    %2951 = vmatpush1.bf16.msra.mxu0 0
    %2952 = vmatprep.subr.bf16.mxu0 0
    %2953 = vmatpush1.bf16.msra.mxu0 0
    %2954 = vmatprep.mubr.bf16.mxu0 0
    %2955 = vmatmul.mubr.bf16.gmra.mrb[0].mxu0 %v2921
    %v2956 = vpop.f32.mrb[0].mxu0
    %v2957 = vadd.f32 0.0, %v2956
    %v2958 = vpop.f32.mrb[0].mxu0
    %v2959 = vadd.f32 0.0, %v2958
    %v2960 = vpop.f32.mrb[0].mxu0
    %v2961 = vpop.f32.mrb[0].mxu0
    %2962 = vdwg.mxu0
    %2963 = vmatprep.subr.bf16.mxu0 %v2165
    %2964 = vmatpush1.bf16.msra.mxu0 %v2164
    %2965 = vmatprep.subr.bf16.mxu0 %v2169
    %2966 = vmatpush1.bf16.msra.mxu0 %v2168
    %2967 = vmatprep.subr.bf16.mxu0 %v2173
    %2968 = vmatpush1.bf16.msra.mxu0 %v2172
    %2969 = vmatprep.subr.bf16.mxu0 %v2177
    %2970 = vmatpush1.bf16.msra.mxu0 %v2176
    %2971 = vmatprep.subr.bf16.mxu0 %v2181
    %2972 = vmatpush1.bf16.msra.mxu0 %v2180
    %2973 = vmatprep.subr.bf16.mxu0 %v2185
    %2974 = vmatpush1.bf16.msra.mxu0 %v2184
    %2975 = vmatprep.subr.bf16.mxu0 %v2189
    %2976 = vmatpush1.bf16.msra.mxu0 %v2188
    %2977 = vmatprep.subr.bf16.mxu0 %v2193
    %2978 = vmatpush1.bf16.msra.mxu0 %v2192
    %2979 = vmatprep.subr.bf16.mxu0 0
    %2980 = vmatpush1.bf16.msra.mxu0 0
    %2981 = vmatprep.subr.bf16.mxu0 0
    %2982 = vmatpush1.bf16.msra.mxu0 0
    %2983 = vmatprep.subr.bf16.mxu0 0
    %2984 = vmatpush1.bf16.msra.mxu0 0
    %2985 = vmatprep.subr.bf16.mxu0 0
    %2986 = vmatpush1.bf16.msra.mxu0 0
    %2987 = vmatprep.subr.bf16.mxu0 0
    %2988 = vmatpush1.bf16.msra.mxu0 0
    %2989 = vmatprep.subr.bf16.mxu0 0
    %2990 = vmatpush1.bf16.msra.mxu0 0
    %2991 = vmatprep.subr.bf16.mxu0 0
    %2992 = vmatpush1.bf16.msra.mxu0 0
    %2993 = vmatprep.subr.bf16.mxu0 0
    %2994 = vmatpush1.bf16.msra.mxu0 0
    %2995 = vmatprep.mubr.bf16.mxu0 0
    %2996 = vmatmul.mubr.bf16.gmra.mrb[0].mxu0 %v2921
    %v2997 = vpop.f32.mrb[0].mxu0
    %v2998 = vadd.f32 0.0, %v2997
    %v2999 = vpop.f32.mrb[0].mxu0
    %v3000 = vadd.f32 0.0, %v2999
    %v3001 = vpop.f32.mrb[0].mxu0
    %v3002 = vpop.f32.mrb[0].mxu0
    %3003 = vdwg.mxu0
    %v3004 = vadd.f32 %v2917, %v2957
    %v3005 = vadd.f32 %v2918, %v2959
    %v3006 = vadd.f32 %v2919, %v2998
    %v3007 = vadd.f32 %v2920, %v3000
    %v3008 = vxor.u32 %v3004, 2147483648
    %v3009 = vxor.u32 %v3005, 2147483648
    %v3010 = vxor.u32 %v3006, 2147483648
    %v3011 = vmul.f32 %v3008, 1.442695
    %v3012 = vpow.pop %v3011
    %v3013 = vmul.f32 %v3009, 1.442695
    %v3014 = vpow.pop %v3013
    %v3015 = vmul.f32 %v3010, 1.442695
    %v3016 = vpow.pop %v3015
    %v3017 = vadd.f32 %v3012, 1.0
    %v3018 = vadd.f32 %v3014, 1.0
    %v3019 = vadd.f32 %v3016, 1.0
    %v3020 = vrcp.pop %v3017
    %v3021 = vmul.f32 1.0, %v3020
    %v3022 = vrcp.pop %v3018
    %v3023 = vmul.f32 1.0, %v3022
    %v3024 = vrcp.pop %v3019
    %v3025 = vmul.f32 1.0, %v3024
    %v3026 = vtanh.pop %v3007
    %v3027 = vmul.f32 %v3023, %v2913
    %v3028 = vmul.f32 %v3021, %v3026
    %v3029 = vadd.f32 %v3027, %v3028
    %v3030 = vtanh.pop %v3029
    %v3031 = vmul.f32 %v3025, %v3030
    %3032 = vst [vmem:[%s1501] sm:$0xff] %v3031
    %v3033 = vld [vmem:[%s1503] sm:$0xff]
    %v3034 = vld [vmem:[%s1503 + $0x8] sm:$0xff]
    %v3035 = vld [vmem:[%s1503 + $0x10] sm:$0xff]
    %v3036 = vld [vmem:[%s1503 + $0x18] sm:$0xff]
    %v3037 = vpack.c.bf16 %v3031, %v3031
    %3038 = vmatprep.subr.bf16.mxu0 %v2163
    %3039 = vmatpush1.bf16.msra.mxu0 %v2162
    %3040 = vmatprep.subr.bf16.mxu0 %v2167
    %3041 = vmatpush1.bf16.msra.mxu0 %v2166
    %3042 = vmatprep.subr.bf16.mxu0 %v2171
    %3043 = vmatpush1.bf16.msra.mxu0 %v2170
    %3044 = vmatprep.subr.bf16.mxu0 %v2175
    %3045 = vmatpush1.bf16.msra.mxu0 %v2174
    %3046 = vmatprep.subr.bf16.mxu0 %v2179
    %3047 = vmatpush1.bf16.msra.mxu0 %v2178
    %3048 = vmatprep.subr.bf16.mxu0 %v2183
    %3049 = vmatpush1.bf16.msra.mxu0 %v2182
    %3050 = vmatprep.subr.bf16.mxu0 %v2187
    %3051 = vmatpush1.bf16.msra.mxu0 %v2186
    %3052 = vmatprep.subr.bf16.mxu0 %v2191
    %3053 = vmatpush1.bf16.msra.mxu0 %v2190
    %3054 = vmatprep.subr.bf16.mxu0 0
    %3055 = vmatpush1.bf16.msra.mxu0 0
    %3056 = vmatprep.subr.bf16.mxu0 0
    %3057 = vmatpush1.bf16.msra.mxu0 0
    %3058 = vmatprep.subr.bf16.mxu0 0
    %3059 = vmatpush1.bf16.msra.mxu0 0
    %3060 = vmatprep.subr.bf16.mxu0 0
    %3061 = vmatpush1.bf16.msra.mxu0 0
    %3062 = vmatprep.subr.bf16.mxu0 0
    %3063 = vmatpush1.bf16.msra.mxu0 0
    %3064 = vmatprep.subr.bf16.mxu0 0
    %3065 = vmatpush1.bf16.msra.mxu0 0
    %3066 = vmatprep.subr.bf16.mxu0 0
    %3067 = vmatpush1.bf16.msra.mxu0 0
    %3068 = vmatprep.subr.bf16.mxu0 0
    %3069 = vmatpush1.bf16.msra.mxu0 0
    %3070 = vmatprep.mubr.bf16.mxu0 0
    %3071 = vmatmul.mubr.bf16.gmra.mrb[0].mxu0 %v3037
    %v3072 = vpop.f32.mrb[0].mxu0
    %v3073 = vadd.f32 0.0, %v3072
    %v3074 = vpop.f32.mrb[0].mxu0
    %v3075 = vadd.f32 0.0, %v3074
    %v3076 = vpop.f32.mrb[0].mxu0
    %v3077 = vpop.f32.mrb[0].mxu0
    %3078 = vdwg.mxu0
    %3079 = vmatprep.subr.bf16.mxu0 %v2165
    %3080 = vmatpush1.bf16.msra.mxu0 %v2164
    %3081 = vmatprep.subr.bf16.mxu0 %v2169
    %3082 = vmatpush1.bf16.msra.mxu0 %v2168
    %3083 = vmatprep.subr.bf16.mxu0 %v2173
    %3084 = vmatpush1.bf16.msra.mxu0 %v2172
    %3085 = vmatprep.subr.bf16.mxu0 %v2177
    %3086 = vmatpush1.bf16.msra.mxu0 %v2176
    %3087 = vmatprep.subr.bf16.mxu0 %v2181
    %3088 = vmatpush1.bf16.msra.mxu0 %v2180
    %3089 = vmatprep.subr.bf16.mxu0 %v2185
    %3090 = vmatpush1.bf16.msra.mxu0 %v2184
    %3091 = vmatprep.subr.bf16.mxu0 %v2189
    %3092 = vmatpush1.bf16.msra.mxu0 %v2188
    %3093 = vmatprep.subr.bf16.mxu0 %v2193
    %3094 = vmatpush1.bf16.msra.mxu0 %v2192
    %3095 = vmatprep.subr.bf16.mxu0 0
    %3096 = vmatpush1.bf16.msra.mxu0 0
    %3097 = vmatprep.subr.bf16.mxu0 0
    %3098 = vmatpush1.bf16.msra.mxu0 0
    %3099 = vmatprep.subr.bf16.mxu0 0
    %3100 = vmatpush1.bf16.msra.mxu0 0
    %3101 = vmatprep.subr.bf16.mxu0 0
    %3102 = vmatpush1.bf16.msra.mxu0 0
    %3103 = vmatprep.subr.bf16.mxu0 0
    %3104 = vmatpush1.bf16.msra.mxu0 0
    %3105 = vmatprep.subr.bf16.mxu0 0
    %3106 = vmatpush1.bf16.msra.mxu0 0
    %3107 = vmatprep.subr.bf16.mxu0 0
    %3108 = vmatpush1.bf16.msra.mxu0 0
    %3109 = vmatprep.subr.bf16.mxu0 0
    %3110 = vmatpush1.bf16.msra.mxu0 0
    %3111 = vmatprep.mubr.bf16.mxu0 0
    %3112 = vmatmul.mubr.bf16.gmra.mrb[0].mxu0 %v3037
    %v3113 = vpop.f32.mrb[0].mxu0
    %v3114 = vadd.f32 0.0, %v3113
    %v3115 = vpop.f32.mrb[0].mxu0
    %v3116 = vadd.f32 0.0, %v3115
    %v3117 = vpop.f32.mrb[0].mxu0
    %v3118 = vpop.f32.mrb[0].mxu0
    %3119 = vdwg.mxu0
    %v3120 = vadd.f32 %v3033, %v3073
    %v3121 = vadd.f32 %v3034, %v3075
    %v3122 = vadd.f32 %v3035, %v3114
    %v3123 = vadd.f32 %v3036, %v3116
    %v3124 = vxor.u32 %v3120, 2147483648
    %v3125 = vxor.u32 %v3121, 2147483648
    %v3126 = vxor.u32 %v3122, 2147483648
    %v3127 = vmul.f32 %v3124, 1.442695
    %v3128 = vpow.pop %v3127
    %v3129 = vmul.f32 %v3125, 1.442695
    %v3130 = vpow.pop %v3129
    %v3131 = vmul.f32 %v3126, 1.442695
    %v3132 = vpow.pop %v3131
    %v3133 = vadd.f32 %v3128, 1.0
    %v3134 = vadd.f32 %v3130, 1.0
    %v3135 = vadd.f32 %v3132, 1.0
    %v3136 = vrcp.pop %v3133
    %v3137 = vmul.f32 1.0, %v3136
    %v3138 = vrcp.pop %v3134
    %v3139 = vmul.f32 1.0, %v3138
    %v3140 = vrcp.pop %v3135
    %v3141 = vmul.f32 1.0, %v3140
    %v3142 = vtanh.pop %v3123
    %v3143 = vmul.f32 %v3139, %v3029
    %v3144 = vmul.f32 %v3137, %v3142
    %v3145 = vadd.f32 %v3143, %v3144
    %v3146 = vtanh.pop %v3145
    %v3147 = vmul.f32 %v3141, %v3146
    %3148 = vst [vmem:[%s1619] sm:$0xff] %v3147
    %s3149 = scalar_lea.vmem [#allocation10], 8
    %3150 = vst [vmem:[%s3149] sm:$0xff] %v3147
    %s3151 = scalar_lea.vmem [#allocation12], 8
    %3152 = vst [vmem:[%s3151] sm:$0xff] %v3145
    // Predicated region
    $region30: #{tpu_custom_call.1} parent=1 // pred_check
      _
    $region31: #{tpu_custom_call.1} parent=1 // pred_check_branch
      %3154 = sbr.rel (0) target = $region33
    $region32: #{tpu_custom_call.1} parent=1 // pred_region
      %s3156 = ssub.s32 1024, 1024
      %3157 = vsyncadd [#allocation5], %s3156
      %s3158 = sshll.u32 [#allocation9], 4
      %s3159 = int_to_ptr.vmem [resolvable:$true] %s3158
      %3164 = dma.vmem_to_hbm [thread:$0]  %s3159, 1024, %s4, [#allocation5], 128, 128, 8
    $region33: #{tpu_custom_call.1} parent=1 // pred_fallthru
      _
    // Predicated region
    $region34: #{tpu_custom_call.1} parent=1 // pred_check
      _
    $region35: #{tpu_custom_call.1} parent=1 // pred_check_branch
      %3166 = sbr.rel (0) target = $region37
    $region36: #{tpu_custom_call.1} parent=1 // pred_region
      %s3168 = ssub.s32 256, 256
      %3169 = vsyncadd [#allocation11], %s3168
      %s3170 = sshll.u32 [#allocation10], 4
      %s3171 = int_to_ptr.vmem [resolvable:$true] %s3170
      %3176 = dma.vmem_to_hbm [thread:$0]  %s3171, 256, %s5, [#allocation11], 128, 128, 8
    $region37: #{tpu_custom_call.1} parent=1 // pred_fallthru
      _
    // Predicated region
    $region38: #{tpu_custom_call.1} parent=1 // pred_check
      _
    $region39: #{tpu_custom_call.1} parent=1 // pred_check_branch
      %3178 = sbr.rel (0) target = $region41
    $region40: #{tpu_custom_call.1} parent=1 // pred_region
      %s3180 = ssub.s32 256, 256
      %3181 = vsyncadd [#allocation11], %s3180
      %s3182 = sshll.u32 [#allocation12], 4
      %s3183 = int_to_ptr.vmem [resolvable:$true] %s3182
      %3188 = dma.vmem_to_hbm [thread:$0]  %s3183, 256, %s6, [#allocation11], 128, 128, 8
    $region41: #{tpu_custom_call.1} parent=1 // pred_fallthru
      _
    // Predicated region
    $region42: #{tpu_custom_call.1} parent=1 // pred_check
      _
    $region43: #{tpu_custom_call.1} parent=1 // pred_check_branch
      %3190 = sbr.rel (0) target = $region45
    $region44: #{tpu_custom_call.1} parent=1 // pred_region
      %3191 = dma.done [#allocation5], 1024
    $region45: #{tpu_custom_call.1} parent=1 // pred_fallthru
      _
    // Predicated region
    $region46: #{tpu_custom_call.1} parent=1 // pred_check
      _
    $region47: #{tpu_custom_call.1} parent=1 // pred_check_branch
      %3193 = sbr.rel (0) target = $region49
    $region48: #{tpu_custom_call.1} parent=1 // pred_region
      %3194 = dma.done [#allocation11], 256
    $region49: #{tpu_custom_call.1} parent=1 // pred_fallthru
      _
    // Predicated region
    $region50: #{tpu_custom_call.1} parent=1 // pred_check
      _
    $region51: #{tpu_custom_call.1} parent=1 // pred_check_branch
      %3196 = sbr.rel (0) target = $region53
    $region52: #{tpu_custom_call.1} parent=1 // pred_region
      %3197 = dma.done [#allocation11], 256
    $region53: #{tpu_custom_call.1} parent=1 // pred_fallthru
      _
    %3198 = vsyncpa [#allocation4], 1
    %3199 = vsyncpa [#allocation7], 1
    %3200 = vsyncpa [#allocation5], 1
    %3201 = vsyncpa [#allocation11], 1

</llo_original>
